<compile_context>
chip_gen: v6e
topology: v6e:2x2x1
jax: 0.10.0
libtpu: 0.0.40
codegen_flags: <defaults>
</compile_context>

<pallas_src>
import jax
import jax.numpy as jnp
from jax import lax
from jax.experimental import pallas as pl
from jax.experimental.pallas import tpu as pltpu


def _stage_body(x_ref, scale_ref, shift_ref, w_ref, res_ref, o_ref, pad_ref, col_ref):
    """One fused BN(affine) -> ReLU -> Conv3x3 [-> +residual] stage for one image.

    x_ref    : (H, W, C)        pre-BN input                                   (bf16)
    scale_ref: (1, C)           folded BN scale  gamma / sqrt(var + eps)       (f32)
    shift_ref: (1, C)           folded BN shift  beta - mean * scale           (f32)
    w_ref    : (9*C, C)         conv weight, HWIO flattened to im2col layout   (bf16)
    res_ref  : (H*W, C) | None  residual (second conv only)                    (bf16)
    o_ref    : (H*W, C)         output                                         (f32)
    pad_ref  : (H+2, W+2, C)    VMEM scratch: zero-padded post-BN/ReLU act     (f32)
    col_ref  : (H, W, 9*C)      VMEM scratch: im2col patches                   (bf16)
    """
    H, W, C = x_ref.shape
    HW = H * W

    # 1) BatchNorm (folded per-channel affine) + ReLU on the VPU, f32.
    scale = scale_ref[...].reshape(1, 1, C)
    shift = shift_ref[...].reshape(1, 1, C)
    a = jnp.maximum(x_ref[...].astype(jnp.float32) * scale + shift, 0.0)

    # 2) conv "same" zero-padding entirely on-chip: zero the scratch, write the
    #    activation into its interior (padding applied *after* BN+ReLU, like
    #    nn.Conv2d(padding=1) following BN/ReLU).
    pad_ref[...] = jnp.zeros_like(pad_ref)
    pad_ref[pl.ds(1, H), pl.ds(1, W), :] = a

    # 3) im2col into VMEM scratch: col[h, w, (3*dy+dx)*C + c] = pad[h+dy, w+dx, c].
    for tap in range(9):
        dy, dx = divmod(tap, 3)
        col_ref[:, :, pl.ds(tap * C, C)] = (
            pad_ref[pl.ds(dy, H), pl.ds(dx, W), :].astype(col_ref.dtype))

    # 4) one MXU matmul with contraction depth K = 9*C (bf16 x bf16 -> f32 accum).
    col = col_ref[...].reshape(HW, 9 * C)   # merge leading dims, lane dim unchanged
    acc = jnp.dot(col, w_ref[...], preferred_element_type=jnp.float32)   # (HW, C)

    # 5) residual add (second conv only) + lane-dense store.
    if res_ref is not None:
        acc = acc + res_ref[...].astype(jnp.float32)
    o_ref[...] = acc.astype(o_ref.dtype)


def _stage_kernel_res(x_ref, s_ref, b_ref, w_ref, res_ref, o_ref, pad_ref, col_ref):
    _stage_body(x_ref, s_ref, b_ref, w_ref, res_ref, o_ref, pad_ref, col_ref)


def _stage_kernel_nores(x_ref, s_ref, b_ref, w_ref, o_ref, pad_ref, col_ref):
    _stage_body(x_ref, s_ref, b_ref, w_ref, None, o_ref, pad_ref, col_ref)


def _bn_relu_conv(x_nhwc, scale, shift, w_flat, res_flat=None,
                  *, compute_dtype=jnp.bfloat16):
    """conv3x3(relu(bn(x))) [+ res].

    x_nhwc: (N,H,W,C); scale/shift: (C,) f32; w_flat: (9C,C); res_flat: (N,H*W,C)|None.
    Returns (N, H*W, C) f32.
    """
    N, H, W, C = x_nhwc.shape
    HW = H * W

    x_in = x_nhwc.astype(compute_dtype)
    w_in = w_flat.astype(compute_dtype)
    scale_in = scale.reshape(1, C).astype(jnp.float32)
    shift_in = shift.reshape(1, C).astype(jnp.float32)

    in_specs = [
        pl.BlockSpec((None, H, W, C), lambda i: (i, 0, 0, 0)),   # x, one image / step
        pl.BlockSpec((1, C), lambda i: (0, 0)),                  # BN scale
        pl.BlockSpec((1, C), lambda i: (0, 0)),                  # BN shift
        pl.BlockSpec((9 * C, C), lambda i: (0, 0)),              # im2col weight
    ]
    args = [x_in, scale_in, shift_in, w_in]
    if res_flat is None:
        kernel = _stage_kernel_nores                              # no zeros residual DMA
    else:
        kernel = _stage_kernel_res
        in_specs.append(pl.BlockSpec((None, HW, C), lambda i: (i, 0, 0)))
        args.append(res_flat.astype(compute_dtype))

    return pl.pallas_call(
        kernel,
        out_shape=jax.ShapeDtypeStruct((N, HW, C), jnp.float32),
        grid=(N,),
        in_specs=in_specs,
        out_specs=pl.BlockSpec((None, HW, C), lambda i: (i, 0, 0)),
        scratch_shapes=[
            pltpu.VMEM((H + 2, W + 2, C), jnp.float32),           # padded activation
            pltpu.VMEM((H, W, 9 * C), compute_dtype),             # im2col patches
        ],
        compiler_params=pltpu.CompilerParams(
            dimension_semantics=("parallel",),
            vmem_limit_bytes=48 * 1024 * 1024,
        ),
    )(*args)


def _bn_fold(x_nhwc, gamma, beta, eps=1e-5):
    # Training-mode BatchNorm2d statistics (biased variance) folded to a per-channel
    # affine y = x*scale + shift, computed in one pass (mean and mean-of-squares fuse).
    # TODO(synk): running_mean/var (eval-mode) tracking is not modeled; this matches
    # PyTorch's training-mode forward, the nn.BatchNorm2d default.
    x = x_nhwc.astype(jnp.float32)
    mean = jnp.mean(x, axis=(0, 1, 2))
    mean_sq = jnp.mean(jnp.square(x), axis=(0, 1, 2))
    var = jnp.maximum(mean_sq - jnp.square(mean), 0.0)
    scale = gamma.astype(jnp.float32) / jnp.sqrt(var + eps)
    shift = beta.astype(jnp.float32) - mean * scale
    return scale, shift


def res_block_forward(x_nchw, params, eps=1e-5, compute_dtype=jnp.bfloat16):
    """ResBlock.forward for NCHW input (PyTorch convention)."""
    N, C, H, W = x_nchw.shape
    # Single NCHW -> NHWC transpose at the boundary; everything else stays NHWC.
    x = jnp.transpose(x_nchw, (0, 2, 3, 1)).astype(jnp.float32)      # (N,H,W,C)
    x_flat = x.reshape(N, H * W, C)                                  # free (row-major)

    w1 = params["w1"].reshape(9 * C, C)     # HWIO -> (9C, C) im2col layout
    w2 = params["w2"].reshape(9 * C, C)

    s1, b1 = _bn_fold(x, params["gamma1"], params["beta1"], eps)
    y1 = _bn_relu_conv(x, s1, b1, w1, None, compute_dtype=compute_dtype)   # (N,HW,C)

    y1_nhwc = y1.reshape(N, H, W, C)
    s2, b2 = _bn_fold(y1_nhwc, params["gamma2"], params["beta2"], eps)
    out = _bn_relu_conv(y1_nhwc, s2, b2, w2, res_flat=x_flat,
                        compute_dtype=compute_dtype)                        # (N,HW,C)

    return jnp.transpose(out.reshape(N, H, W, C), (0, 3, 1, 2))             # -> NCHW


def res_block_reference(x_nchw, params, eps=1e-5):
    """Pure-JAX f32 reference mirroring PyTorch (training-mode BN, conv pad=1)."""
    def bn(x, gamma, beta):
        mean = jnp.mean(x, axis=(0, 2, 3), keepdims=True)
        var = jnp.mean(jnp.square(x - mean), axis=(0, 2, 3), keepdims=True)
        return (gamma.reshape(1, -1, 1, 1) * (x - mean) /
                jnp.sqrt(var + eps) + beta.reshape(1, -1, 1, 1))

    def conv(x, w_hwio):
        w = jnp.transpose(w_hwio, (3, 2, 0, 1))  # HWIO -> OIHW
        return lax.conv_general_dilated(
            x, w, (1, 1), ((1, 1), (1, 1)),
            dimension_numbers=("NCHW", "OIHW", "NCHW"))

    h = conv(jax.nn.relu(bn(x_nchw, params["gamma1"], params["beta1"])), params["w1"])
    h = conv(jax.nn.relu(bn(h, params["gamma2"], params["beta2"])), params["w2"])
    return h + x_nchw


if __name__ == "__main__":
    key = jax.random.PRNGKey(0)
    kx, k1, k2, kg1, kb1, kg2, kb2 = jax.random.split(key, 7)

    # AFWM ResBlocks run at >=128 channels; C=128 also exactly fills the 128-lane axis.
    N, C, H, W = 2, 128, 16, 16
    x = jax.random.normal(kx, (N, C, H, W), jnp.float32)

    wscale = 0.03   # ~ 1/sqrt(9*C)
    params = dict(
        w1=wscale * jax.random.normal(k1, (3, 3, C, C), jnp.float32),   # HWIO
        w2=wscale * jax.random.normal(k2, (3, 3, C, C), jnp.float32),   # HWIO
        gamma1=1.0 + 0.1 * jax.random.normal(kg1, (C,), jnp.float32),
        beta1=0.1 * jax.random.normal(kb1, (C,), jnp.float32),
        gamma2=1.0 + 0.1 * jax.random.normal(kg2, (C,), jnp.float32),
        beta2=0.1 * jax.random.normal(kb2, (C,), jnp.float32),
    )

    out = jax.block_until_ready(res_block_forward(x, params))
    ref = jax.block_until_ready(res_block_reference(x, params))

    assert out.shape == (N, C, H, W)
    err = float(jnp.max(jnp.abs(out - ref)))
    # bf16 activations/weights with f32 accumulation: allow a few bf16 ULPs of slack.
    if err < 5e-2:
        print("KERNEL_OK")
    else:
        print(f"MISMATCH max_abs_err={err}")
</pallas_src>

<mosaic_0001>
module attributes {stable_mosaic.version = 11 : i64} {
  func.func @_stage_kernel_nores(%arg0: i32, %arg1: memref<1x16x16x128xbf16, #tpu.memory_space<vmem>>, %arg2: memref<1x128xf32, #tpu.memory_space<vmem>>, %arg3: memref<1x128xf32, #tpu.memory_space<vmem>>, %arg4: memref<1152x128xbf16, #tpu.memory_space<vmem>>, %arg5: memref<1x256x128xf32, #tpu.memory_space<vmem>>, %arg6: memref<18x18x128xf32, #tpu.memory_space<vmem>>, %arg7: memref<16x16x1152xbf16, #tpu.memory_space<vmem>>) attributes {dimension_semantics = [#tpu.dimension_semantics<parallel>], iteration_bounds = array<i64: 2>, scalar_prefetch = 0 : i64, scratch_operands = 2 : i64, tpu.core_type = #tpu.core_type<tc>, window_params = [{transform_indices = @transform_0, window_bounds = array<i64: 1, 16, 16, 128>}, {pipeline_mode = #tpu.pipeline_mode<synchronous>, transform_indices = @transform_1, window_bounds = array<i64: 1, 128>}, {pipeline_mode = #tpu.pipeline_mode<synchronous>, transform_indices = @transform_2, window_bounds = array<i64: 1, 128>}, {pipeline_mode = #tpu.pipeline_mode<synchronous>, transform_indices = @transform_3, window_bounds = array<i64: 1152, 128>}, {transform_indices = @transform_4, window_bounds = array<i64: 1, 256, 128>}]} {
    %c0 = arith.constant 0 : index
    %c0_0 = arith.constant 0 : index
    %0 = vector.load %arg2[%c0, %c0_0] : memref<1x128xf32, #tpu.memory_space<vmem>>, vector<1x128xf32>
    %1 = vector.shape_cast %0 : vector<1x128xf32> to vector<1x1x128xf32>
    %c0_1 = arith.constant 0 : index
    %c0_2 = arith.constant 0 : index
    %2 = vector.load %arg3[%c0_1, %c0_2] : memref<1x128xf32, #tpu.memory_space<vmem>>, vector<1x128xf32>
    %3 = vector.shape_cast %2 : vector<1x128xf32> to vector<1x1x128xf32>
    %c0_3 = arith.constant 0 : index
    %c0_4 = arith.constant 0 : index
    %c0_5 = arith.constant 0 : index
    %c0_6 = arith.constant 0 : index
    %4 = vector.load %arg1[%c0_3, %c0_4, %c0_5, %c0_6] : memref<1x16x16x128xbf16, #tpu.memory_space<vmem>>, vector<1x16x16x128xbf16>
    %5 = vector.shape_cast %4 : vector<1x16x16x128xbf16> to vector<16x16x128xbf16>
    %6 = arith.extf %5 : vector<16x16x128xbf16> to vector<16x16x128xf32>
    %7 = vector.broadcast %1 : vector<1x1x128xf32> to vector<16x16x128xf32>
    %8 = arith.mulf %6, %7 : vector<16x16x128xf32>
    %9 = vector.broadcast %3 : vector<1x1x128xf32> to vector<16x16x128xf32>
    %10 = arith.addf %8, %9 : vector<16x16x128xf32>
    %cst = arith.constant 0.000000e+00 : f32
    %11 = vector.broadcast %cst : f32 to vector<16x16x128xf32>
    %12 = arith.maximumf %10, %11 : vector<16x16x128xf32>
    %cst_7 = arith.constant 0.000000e+00 : f32
    %13 = vector.broadcast %cst_7 : f32 to vector<18x18x128xf32>
    %c0_8 = arith.constant 0 : index
    %c0_9 = arith.constant 0 : index
    %c0_10 = arith.constant 0 : index
    %14 = vector.load %arg6[%c0_8, %c0_9, %c0_10] : memref<18x18x128xf32, #tpu.memory_space<vmem>>, vector<18x18x128xf32>
    tpu.vector_store %arg6[%c0_8, %c0_9, %c0_10], %13 {strides = array<i32>} : memref<18x18x128xf32, #tpu.memory_space<vmem>>, vector<18x18x128xf32>,
    %c1 = arith.constant 1 : index
    %c1_11 = arith.constant 1 : index
    %c0_12 = arith.constant 0 : index
    %15 = vector.load %arg6[%c1, %c1_11, %c0_12] : memref<18x18x128xf32, #tpu.memory_space<vmem>>, vector<16x16x128xf32>
    tpu.vector_store %arg6[%c1, %c1_11, %c0_12], %12 {strides = array<i32>} : memref<18x18x128xf32, #tpu.memory_space<vmem>>, vector<16x16x128xf32>,
    %c0_13 = arith.constant 0 : index
    %c0_14 = arith.constant 0 : index
    %c0_15 = arith.constant 0 : index
    %16 = vector.load %arg6[%c0_13, %c0_14, %c0_15] : memref<18x18x128xf32, #tpu.memory_space<vmem>>, vector<16x16x128xf32>
    %17 = arith.truncf %16 : vector<16x16x128xf32> to vector<16x16x128xbf16>
    %c0_16 = arith.constant 0 : index
    %c0_17 = arith.constant 0 : index
    %c0_18 = arith.constant 0 : index
    %18 = vector.load %arg7[%c0_16, %c0_17, %c0_18] : memref<16x16x1152xbf16, #tpu.memory_space<vmem>>, vector<16x16x128xbf16>
    tpu.vector_store %arg7[%c0_16, %c0_17, %c0_18], %17 {strides = array<i32>} : memref<16x16x1152xbf16, #tpu.memory_space<vmem>>, vector<16x16x128xbf16>,
    %c0_19 = arith.constant 0 : index
    %c1_20 = arith.constant 1 : index
    %c0_21 = arith.constant 0 : index
    %19 = vector.load %arg6[%c0_19, %c1_20, %c0_21] : memref<18x18x128xf32, #tpu.memory_space<vmem>>, vector<16x16x128xf32>
    %20 = arith.truncf %19 : vector<16x16x128xf32> to vector<16x16x128xbf16>
    %c0_22 = arith.constant 0 : index
    %c0_23 = arith.constant 0 : index
    %c128 = arith.constant 128 : index
    %21 = vector.load %arg7[%c0_22, %c0_23, %c128] : memref<16x16x1152xbf16, #tpu.memory_space<vmem>>, vector<16x16x128xbf16>
    tpu.vector_store %arg7[%c0_22, %c0_23, %c128], %20 {strides = array<i32>} : memref<16x16x1152xbf16, #tpu.memory_space<vmem>>, vector<16x16x128xbf16>,
    %c0_24 = arith.constant 0 : index
    %c2 = arith.constant 2 : index
    %c0_25 = arith.constant 0 : index
    %22 = vector.load %arg6[%c0_24, %c2, %c0_25] : memref<18x18x128xf32, #tpu.memory_space<vmem>>, vector<16x16x128xf32>
    %23 = arith.truncf %22 : vector<16x16x128xf32> to vector<16x16x128xbf16>
    %c0_26 = arith.constant 0 : index
    %c0_27 = arith.constant 0 : index
    %c256 = arith.constant 256 : index
    %24 = vector.load %arg7[%c0_26, %c0_27, %c256] : memref<16x16x1152xbf16, #tpu.memory_space<vmem>>, vector<16x16x128xbf16>
    tpu.vector_store %arg7[%c0_26, %c0_27, %c256], %23 {strides = array<i32>} : memref<16x16x1152xbf16, #tpu.memory_space<vmem>>, vector<16x16x128xbf16>,
    %c1_28 = arith.constant 1 : index
    %c0_29 = arith.constant 0 : index
    %c0_30 = arith.constant 0 : index
    %25 = vector.load %arg6[%c1_28, %c0_29, %c0_30] : memref<18x18x128xf32, #tpu.memory_space<vmem>>, vector<16x16x128xf32>
    %26 = arith.truncf %25 : vector<16x16x128xf32> to vector<16x16x128xbf16>
    %c0_31 = arith.constant 0 : index
    %c0_32 = arith.constant 0 : index
    %c384 = arith.constant 384 : index
    %27 = vector.load %arg7[%c0_31, %c0_32, %c384] : memref<16x16x1152xbf16, #tpu.memory_space<vmem>>, vector<16x16x128xbf16>
    tpu.vector_store %arg7[%c0_31, %c0_32, %c384], %26 {strides = array<i32>} : memref<16x16x1152xbf16, #tpu.memory_space<vmem>>, vector<16x16x128xbf16>,
    %c1_33 = arith.constant 1 : index
    %c1_34 = arith.constant 1 : index
    %c0_35 = arith.constant 0 : index
    %28 = vector.load %arg6[%c1_33, %c1_34, %c0_35] : memref<18x18x128xf32, #tpu.memory_space<vmem>>, vector<16x16x128xf32>
    %29 = arith.truncf %28 : vector<16x16x128xf32> to vector<16x16x128xbf16>
    %c0_36 = arith.constant 0 : index
    %c0_37 = arith.constant 0 : index
    %c512 = arith.constant 512 : index
    %30 = vector.load %arg7[%c0_36, %c0_37, %c512] : memref<16x16x1152xbf16, #tpu.memory_space<vmem>>, vector<16x16x128xbf16>
    tpu.vector_store %arg7[%c0_36, %c0_37, %c512], %29 {strides = array<i32>} : memref<16x16x1152xbf16, #tpu.memory_space<vmem>>, vector<16x16x128xbf16>,
    %c1_38 = arith.constant 1 : index
    %c2_39 = arith.constant 2 : index
    %c0_40 = arith.constant 0 : index
    %31 = vector.load %arg6[%c1_38, %c2_39, %c0_40] : memref<18x18x128xf32, #tpu.memory_space<vmem>>, vector<16x16x128xf32>
    %32 = arith.truncf %31 : vector<16x16x128xf32> to vector<16x16x128xbf16>
    %c0_41 = arith.constant 0 : index
    %c0_42 = arith.constant 0 : index
    %c640 = arith.constant 640 : index
    %33 = vector.load %arg7[%c0_41, %c0_42, %c640] : memref<16x16x1152xbf16, #tpu.memory_space<vmem>>, vector<16x16x128xbf16>
    tpu.vector_store %arg7[%c0_41, %c0_42, %c640], %32 {strides = array<i32>} : memref<16x16x1152xbf16, #tpu.memory_space<vmem>>, vector<16x16x128xbf16>,
    %c2_43 = arith.constant 2 : index
    %c0_44 = arith.constant 0 : index
    %c0_45 = arith.constant 0 : index
    %34 = vector.load %arg6[%c2_43, %c0_44, %c0_45] : memref<18x18x128xf32, #tpu.memory_space<vmem>>, vector<16x16x128xf32>
    %35 = arith.truncf %34 : vector<16x16x128xf32> to vector<16x16x128xbf16>
    %c0_46 = arith.constant 0 : index
    %c0_47 = arith.constant 0 : index
    %c768 = arith.constant 768 : index
    %36 = vector.load %arg7[%c0_46, %c0_47, %c768] : memref<16x16x1152xbf16, #tpu.memory_space<vmem>>, vector<16x16x128xbf16>
    tpu.vector_store %arg7[%c0_46, %c0_47, %c768], %35 {strides = array<i32>} : memref<16x16x1152xbf16, #tpu.memory_space<vmem>>, vector<16x16x128xbf16>,
    %c2_48 = arith.constant 2 : index
    %c1_49 = arith.constant 1 : index
    %c0_50 = arith.constant 0 : index
    %37 = vector.load %arg6[%c2_48, %c1_49, %c0_50] : memref<18x18x128xf32, #tpu.memory_space<vmem>>, vector<16x16x128xf32>
    %38 = arith.truncf %37 : vector<16x16x128xf32> to vector<16x16x128xbf16>
    %c0_51 = arith.constant 0 : index
    %c0_52 = arith.constant 0 : index
    %c896 = arith.constant 896 : index
    %39 = vector.load %arg7[%c0_51, %c0_52, %c896] : memref<16x16x1152xbf16, #tpu.memory_space<vmem>>, vector<16x16x128xbf16>
    tpu.vector_store %arg7[%c0_51, %c0_52, %c896], %38 {strides = array<i32>} : memref<16x16x1152xbf16, #tpu.memory_space<vmem>>, vector<16x16x128xbf16>,
    %c2_53 = arith.constant 2 : index
    %c2_54 = arith.constant 2 : index
    %c0_55 = arith.constant 0 : index
    %40 = vector.load %arg6[%c2_53, %c2_54, %c0_55] : memref<18x18x128xf32, #tpu.memory_space<vmem>>, vector<16x16x128xf32>
    %41 = arith.truncf %40 : vector<16x16x128xf32> to vector<16x16x128xbf16>
    %c0_56 = arith.constant 0 : index
    %c0_57 = arith.constant 0 : index
    %c1024 = arith.constant 1024 : index
    %42 = vector.load %arg7[%c0_56, %c0_57, %c1024] : memref<16x16x1152xbf16, #tpu.memory_space<vmem>>, vector<16x16x128xbf16>
    tpu.vector_store %arg7[%c0_56, %c0_57, %c1024], %41 {strides = array<i32>} : memref<16x16x1152xbf16, #tpu.memory_space<vmem>>, vector<16x16x128xbf16>,
    %c0_58 = arith.constant 0 : index
    %c0_59 = arith.constant 0 : index
    %c0_60 = arith.constant 0 : index
    %43 = vector.load %arg7[%c0_58, %c0_59, %c0_60] : memref<16x16x1152xbf16, #tpu.memory_space<vmem>>, vector<16x16x1152xbf16>
    %44 = vector.shape_cast %43 : vector<16x16x1152xbf16> to vector<256x1152xbf16>
    %c0_61 = arith.constant 0 : index
    %c0_62 = arith.constant 0 : index
    %45 = vector.load %arg4[%c0_61, %c0_62] : memref<1152x128xbf16, #tpu.memory_space<vmem>>, vector<1152x128xbf16>
    %cst_63 = arith.constant dense<0.000000e+00> : vector<256x128xf32>
    %46 = tpu.matmul %44, %45, %cst_63 {dimension_numbers = #tpu.dot_dimension_numbers<[1], [0], [0], [1], [0, 0, 1, 1], [], []>} : vector<256x1152xbf16>, vector<1152x128xbf16>, vector<256x128xf32> -> vector<256x128xf32>
    %c0_64 = arith.constant 0 : index
    %c0_65 = arith.constant 0 : index
    %c0_66 = arith.constant 0 : index
    %47 = vector.load %arg5[%c0_64, %c0_65, %c0_66] : memref<1x256x128xf32, #tpu.memory_space<vmem>>, vector<1x256x128xf32>
    %48 = vector.shape_cast %47 : vector<1x256x128xf32> to vector<256x128xf32>
    %49 = vector.shape_cast %46 : vector<256x128xf32> to vector<1x256x128xf32>
    tpu.vector_store %arg5[%c0_64, %c0_65, %c0_66], %49 {strides = array<i32>} : memref<1x256x128xf32, #tpu.memory_space<vmem>>, vector<1x256x128xf32>,
    return
  }
  func.func @transform_0(%arg0: i32) -> (i32, i32, i32, i32) {
    %c0_i32 = arith.constant 0 : i32
    %c0_i32_0 = arith.constant 0 : i32
    %c0_i32_1 = arith.constant 0 : i32
    %c0_i32_2 = arith.constant 0 : i32
    return %arg0, %c0_i32, %c0_i32_0, %c0_i32_1 : i32, i32, i32, i32
  }
  func.func @transform_1(%arg0: i32) -> (i32, i32) {
    %c0_i32 = arith.constant 0 : i32
    %c0_i32_0 = arith.constant 0 : i32
    %c0_i32_1 = arith.constant 0 : i32
    return %c0_i32, %c0_i32_0 : i32, i32
  }
  func.func @transform_2(%arg0: i32) -> (i32, i32) {
    %c0_i32 = arith.constant 0 : i32
    %c0_i32_0 = arith.constant 0 : i32
    %c0_i32_1 = arith.constant 0 : i32
    return %c0_i32, %c0_i32_0 : i32, i32
  }
  func.func @transform_3(%arg0: i32) -> (i32, i32) {
    %c0_i32 = arith.constant 0 : i32
    %c0_i32_0 = arith.constant 0 : i32
    %c0_i32_1 = arith.constant 0 : i32
    return %c0_i32, %c0_i32_0 : i32, i32
  }
  func.func @transform_4(%arg0: i32) -> (i32, i32, i32) {
    %c0_i32 = arith.constant 0 : i32
    %c0_i32_0 = arith.constant 0 : i32
    %c0_i32_1 = arith.constant 0 : i32
    return %arg0, %c0_i32, %c0_i32_0 : i32, i32, i32
  }
}

</mosaic_0001>

<llo_original>
// kernel: tpu_custom_call.1
$region0: #{tpu_custom_call.1}
  #allocation0 [shape = 'u32[]', space=smem, size = 0x4, offset = 0x4, fixed_abs, tag = 'smem constant byte address 0x4 - core index']
  #allocation1 [shape = 'u32[144,128]{1,0:T(1,128)}', space=vmem, size = 0x12000, scoped, tag = 'internal scratch']
  #allocation2 [shape = 'f32[18,18,128]{2,1,0:T(8,128)}', space=vmem, size = 0x36000, scoped, tag = 'scratch operand']
  #allocation3 [shape = 'bf16[16,16,1152]{2,1,0:T(8,128)(2,1)}', space=vmem, size = 0x90000, scoped, tag = 'scratch operand']
  %s0 = inlined_call_operand.hbm [shape: bf16[2,16,16,128], index: 0, kind: input, shape index: {}]
  %s1 = inlined_call_operand.vmem [shape: f32[1,128], index: 1, kind: input, shape index: {}]
  %s2 = inlined_call_operand.vmem [shape: f32[1,128], index: 2, kind: input, shape index: {}]
  %s3 = inlined_call_operand.hbm [shape: bf16[1152,128], index: 3, kind: input, shape index: {}]
  %s4 = inlined_call_operand.hbm [shape: f32[2,256,128], index: 4, kind: output, shape index: {}]
  %s5 = sld [smem:[#allocation0]]
  $region57: #{tpu_custom_call.1} parent=0
    _
  %s7 = ssub.s32 1, %s5
  %s8 = scalar_select 0, %s7, %s5
  $region1: #{tpu_custom_call.1} parent=0
    #allocation4 [shape = 'u8[131072]{0}', space=vmem, size = 0x20000, scoped, tag = 'input window, operand 0']
    #allocation5 [shape = 's32[2]{0}', space=sflag, size = 0x8, scoped, tag = 'scoped memory for tpu_custom_call.1']
    #allocation6 [shape = 's32[2]{0}', space=sflag, size = 0x8, scoped, tag = 'scoped memory for tpu_custom_call.1']
    #allocation7 [shape = 'u8[294912]{0}', space=vmem, size = 0x48000, scoped, tag = 'input window, operand 3, single buffered']
    #allocation8 [shape = 's32[1]{0}', space=sflag, size = 0x4, scoped, tag = 'scoped memory for tpu_custom_call.1']
    #allocation9 [shape = 'u8[262144]{0}', space=vmem, size = 0x40000, scoped, tag = 'output window, operand 0']
    %9 = vsyncpa [#allocation5], 0
    %s10 = scalar_lea.sflag [#allocation5], 1
    %11 = vsyncpa %s10, 0
    %12 = vsyncpa [#allocation8], 0
    %13 = vsyncpa [#allocation6], 0
    %s14 = scalar_lea.sflag [#allocation6], 1
    %15 = vsyncpa %s14, 0
    loop: start=0, step=1, limit=4
    $region2: #{tpu_custom_call.1} parent=1 // loop_pre_header
      _
    $region3: #{tpu_custom_call.1} parent=1 // loop_header
      %s17 = sphi 0, %s21
      %p18 = scmp.ge.s32.totalorder %s17, 4
      %s27 = sphi 0, %s29
      %s30 = sphi 0, %s27
      %s31 = sphi 0, %s30
      %s47 = sphi 0, %s31
      %s51 = sphi 0, %s51
      %s53 = sphi 0, %s51
      %s54 = sphi 0, %s53
      %s68 = sphi 0, %s54
      %s72 = sphi 0, %s72
      %s74 = sphi 0, %s72
      %s75 = sphi 0, %s74
      %s89 = sphi 0, %s75
      %s93 = sphi 0, %s93
      %s95 = sphi 0, %s93
      %s96 = sphi 0, %s95
      %s110 = sphi 0, %s96
      %s116 = sphi 0, %s118
      %s119 = sphi 0, %s116
      %s120 = sphi 0, %s119
      %s136 = sphi 0, %s120
    $region4: #{tpu_custom_call.1} parent=1 // loop_header_branch
      %20 = sbr.rel (%p18) target = $region8
    $region5: #{tpu_custom_call.1} parent=1 // loop_body
      %s22 = ssub.s32 %s17, 1
      %s23 = ssub.s32 %s17, 2
      %s24 = sadd.s32 %s17, 1
      %s25 = ssub.s32 %s17, %s24
      %p26 = scmp.eq.s32.totalorder %s25, 0
      %s28 = sadd.s32 %s27, 1
      %s29 = scalar_select %p26, %s27, %s28
      %p32 = pneg %p26
      %p33 = scmp.eq.s32.totalorder %s17, 1
      %p34 = por %p32, %p33
      %p35 = scmp.ne.s32.totalorder %s27, %s30
      %p36 = scmp.eq.s32.totalorder %s17, 0
      %p37 = por %p35, %p36
      %p38 = scmp.ne.s32.totalorder %s27, %s30
      %p39 = scmp.eq.s32.totalorder %s22, 1
      %p40 = por %p38, %p39
      %p41 = scmp.ne.s32.totalorder %s30, %s31
      %p42 = scmp.eq.s32.totalorder %s22, 0
      %p43 = por %p41, %p42
      %p44 = scmp.ne.s32.totalorder %s30, %s31
      %p45 = scmp.eq.s32.totalorder %s23, 1
      %p46 = por %p44, %p45
      %p48 = scmp.ne.s32.totalorder %s31, %s47
      %p49 = scmp.eq.s32.totalorder %s23, 0
      %p50 = por %p48, %p49
      %s52 = sadd.s32 %s51, 1
      %p55 = scmp.eq.s32.totalorder %s17, 1
      %p56 = scmp.ne.s32.totalorder %s51, %s53
      %p57 = scmp.eq.s32.totalorder %s17, 0
      %p58 = por %p56, %p57
      %p59 = scmp.ne.s32.totalorder %s51, %s53
      %p60 = scmp.eq.s32.totalorder %s22, 1
      %p61 = por %p59, %p60
      %p62 = scmp.ne.s32.totalorder %s53, %s54
      %p63 = scmp.eq.s32.totalorder %s22, 0
      %p64 = por %p62, %p63
      %p65 = scmp.ne.s32.totalorder %s53, %s54
      %p66 = scmp.eq.s32.totalorder %s23, 1
      %p67 = por %p65, %p66
      %p69 = scmp.ne.s32.totalorder %s54, %s68
      %p70 = scmp.eq.s32.totalorder %s23, 0
      %p71 = por %p69, %p70
      %s73 = sadd.s32 %s72, 1
      %p76 = scmp.eq.s32.totalorder %s17, 1
      %p77 = scmp.ne.s32.totalorder %s72, %s74
      %p78 = scmp.eq.s32.totalorder %s17, 0
      %p79 = por %p77, %p78
      %p80 = scmp.ne.s32.totalorder %s72, %s74
      %p81 = scmp.eq.s32.totalorder %s22, 1
      %p82 = por %p80, %p81
      %p83 = scmp.ne.s32.totalorder %s74, %s75
      %p84 = scmp.eq.s32.totalorder %s22, 0
      %p85 = por %p83, %p84
      %p86 = scmp.ne.s32.totalorder %s74, %s75
      %p87 = scmp.eq.s32.totalorder %s23, 1
      %p88 = por %p86, %p87
      %p90 = scmp.ne.s32.totalorder %s75, %s89
      %p91 = scmp.eq.s32.totalorder %s23, 0
      %p92 = por %p90, %p91
      %s94 = sadd.s32 %s93, 1
      %p97 = scmp.eq.s32.totalorder %s17, 1
      %p98 = scmp.ne.s32.totalorder %s93, %s95
      %p99 = scmp.eq.s32.totalorder %s17, 0
      %p100 = por %p98, %p99
      %p101 = scmp.ne.s32.totalorder %s93, %s95
      %p102 = scmp.eq.s32.totalorder %s22, 1
      %p103 = por %p101, %p102
      %p104 = scmp.ne.s32.totalorder %s95, %s96
      %p105 = scmp.eq.s32.totalorder %s22, 0
      %p106 = por %p104, %p105
      %p107 = scmp.ne.s32.totalorder %s95, %s96
      %p108 = scmp.eq.s32.totalorder %s23, 1
      %p109 = por %p107, %p108
      %p111 = scmp.ne.s32.totalorder %s96, %s110
      %p112 = scmp.eq.s32.totalorder %s23, 0
      %p113 = por %p111, %p112
      %s114 = ssub.s32 %s17, %s24
      %p115 = scmp.eq.s32.totalorder %s114, 0
      %s117 = sadd.s32 %s116, 1
      %s118 = scalar_select %p115, %s116, %s117
      %p121 = pneg %p115
      %p122 = scmp.eq.s32.totalorder %s17, 1
      %p123 = por %p121, %p122
      %p124 = scmp.ne.s32.totalorder %s116, %s119
      %p125 = scmp.eq.s32.totalorder %s17, 0
      %p126 = por %p124, %p125
      %p127 = scmp.ne.s32.totalorder %s116, %s119
      %p128 = scmp.eq.s32.totalorder %s22, 1
      %p129 = por %p127, %p128
      %p130 = scmp.ne.s32.totalorder %s119, %s120
      %p131 = scmp.eq.s32.totalorder %s22, 0
      %p132 = por %p130, %p131
      %p133 = scmp.ne.s32.totalorder %s119, %s120
      %p134 = scmp.eq.s32.totalorder %s23, 1
      %p135 = por %p133, %p134
      %p137 = scmp.ne.s32.totalorder %s120, %s136
      %p138 = scmp.eq.s32.totalorder %s23, 0
      %p139 = por %p137, %p138
      %p140 = scmp.le.s32.totalorder 1, %s17
      %p141 = scmp.lt.s32.totalorder %s17, 3
      %p142 = pnand %p140, %p141
      %p143 = pneg %p142
      // Predicated region
      $region9: #{tpu_custom_call.1} parent=5 // pred_check
        _
      $region10: #{tpu_custom_call.1} parent=5 // pred_check_branch
        %145 = sbr.rel (%p142) target = $region12
      $region11: #{tpu_custom_call.1} parent=5 // pred_region
        %s146 = ssub.s32 %s17, 1
        // Predicated region
        $region13: #{tpu_custom_call.1} parent=11 // pred_check
          %p147 = pneg %p64
        $region14: #{tpu_custom_call.1} parent=11 // pred_check_branch
          %149 = sbr.rel (%p147) target = $region16
        $region15: #{tpu_custom_call.1} parent=11 // pred_region
          _
        $region16: #{tpu_custom_call.1} parent=11 // pred_fallthru
          _
        // Predicated region
        $region17: #{tpu_custom_call.1} parent=11 // pred_check
          %p150 = pneg %p85
        $region18: #{tpu_custom_call.1} parent=11 // pred_check_branch
          %152 = sbr.rel (%p150) target = $region20
        $region19: #{tpu_custom_call.1} parent=11 // pred_region
          _
        $region20: #{tpu_custom_call.1} parent=11 // pred_fallthru
          _
        // Predicated region
        $region21: #{tpu_custom_call.1} parent=11 // pred_check
          %p153 = pneg %p106
        $region22: #{tpu_custom_call.1} parent=11 // pred_check_branch
          %155 = sbr.rel (%p153) target = $region24
        $region23: #{tpu_custom_call.1} parent=11 // pred_region
          %s157 = ssub.s32 9216, 9216
          %158 = vsyncadd [#allocation8], %s157
          %s159 = sshll.u32 [#allocation7], 4
          %s160 = int_to_ptr.vmem [resolvable:$true] %s159
          %165 = dma.hbm_to_vmem [thread:$0]  %s3, 9216, %s160, [#allocation8], 64, 64, 4
        $region24: #{tpu_custom_call.1} parent=11 // pred_fallthru
          _
      $region12: #{tpu_custom_call.1} parent=5 // pred_fallthru
        _
      %p166 = scmp.lt.s32.totalorder %s17, 2
      // Predicated region
      $region25: #{tpu_custom_call.1} parent=5 // pred_check
        %p167 = pneg %p166
      $region26: #{tpu_custom_call.1} parent=5 // pred_check_branch
        %169 = sbr.rel (%p167) target = $region28
      $region27: #{tpu_custom_call.1} parent=5 // pred_region
        // Predicated region
        $region29: #{tpu_custom_call.1} parent=27 // pred_check
          %p170 = pneg %p37
        $region30: #{tpu_custom_call.1} parent=27 // pred_check_branch
          %172 = sbr.rel (%p170) target = $region32
        $region31: #{tpu_custom_call.1} parent=27 // pred_region
          %s173 = sand.u32 %s27, 1
          %s174 = scalar_lea.sflag [#allocation5], %s173
          %s175 = sand.u32 %s27, 1
          %s176 = smul.addr %s175, 128
          %s177 = scalar_lea.vmem [#allocation4], %s176
          %s179 = ssub.s32 2048, 2048
          %180 = vsyncadd %s174, %s179
          %s181 = smul.addr %s17, 32
          %s182 = smul.addr %s181, 64
          %s183 = scalar_lea.hbm %s0, %s182
          %s184 = sshll.u32 %s177, 4
          %s185 = int_to_ptr.vmem [resolvable:$true] %s184
          %190 = dma.hbm_to_vmem [thread:$0]  %s183, 2048, %s185, %s174, 64, 64, 4
        $region32: #{tpu_custom_call.1} parent=27 // pred_fallthru
          _
      $region28: #{tpu_custom_call.1} parent=5 // pred_fallthru
        _
      %p191 = scmp.le.s32.totalorder 1, %s17
      %p192 = scmp.lt.s32.totalorder %s17, 3
      %p193 = pnand %p191, %p192
      %p194 = pneg %p193
      // Predicated region
      $region33: #{tpu_custom_call.1} parent=5 // pred_check
        _
      $region34: #{tpu_custom_call.1} parent=5 // pred_check_branch
        %196 = sbr.rel (%p193) target = $region36
      $region35: #{tpu_custom_call.1} parent=5 // pred_region
        %s197 = ssub.s32 %s17, 1
        %s198 = sand.u32 %s30, 1
        %s199 = scalar_lea.sflag [#allocation5], %s198
        %s200 = sand.u32 %s30, 1
        %s201 = smul.addr %s200, 128
        %s202 = scalar_lea.vmem [#allocation4], %s201
        // Predicated region
        $region37: #{tpu_custom_call.1} parent=35 // pred_check
          %p203 = pneg %p43
        $region38: #{tpu_custom_call.1} parent=35 // pred_check_branch
          %205 = sbr.rel (%p203) target = $region40
        $region39: #{tpu_custom_call.1} parent=35 // pred_region
          %206 = dma.done %s199, 2048
        $region40: #{tpu_custom_call.1} parent=35 // pred_fallthru
          _
        // Predicated region
        $region41: #{tpu_custom_call.1} parent=35 // pred_check
          %p207 = pneg %p106
        $region42: #{tpu_custom_call.1} parent=35 // pred_check_branch
          %209 = sbr.rel (%p207) target = $region44
        $region43: #{tpu_custom_call.1} parent=35 // pred_region
          %210 = dma.done [#allocation8], 9216
        $region44: #{tpu_custom_call.1} parent=35 // pred_fallthru
          _
        %s211 = sand.u32 %s30, 1
        %s212 = scalar_lea.sflag [#allocation5], %s211
        %s213 = sand.u32 %s30, 1
        %s214 = smul.addr %s213, 128
        %s215 = scalar_lea.vmem [#allocation4], %s214
        %p216 = pneg %p43
        %p217 = pneg %p40
        %p218 = pneg %p64
        %p219 = pneg %p61
        %p220 = pneg %p85
        %p221 = pneg %p82
        %p222 = pneg %p106
        %p223 = pneg %p103
        %p224 = pneg %p132
        %p225 = pneg %p129
        %s226 = sand.u32 %s119, 1
        %s227 = scalar_lea.sflag [#allocation6], %s226
        %s228 = sand.u32 %s119, 1
        %s229 = smul.addr %s228, 256
        %s230 = scalar_lea.vmem [#allocation9], %s229
        %v232 = vld [vmem:[%s1] sm:$0x1]
        %v233 = vld [vmem:[%s2] sm:$0x1]
        %v234 = vld [vmem:[%s202] sm:$0xf]
        %v235 = vld [vmem:[%s202 + $0x4] sm:$0xf]
        %v236 = vld [vmem:[%s202 + $0x8] sm:$0xf]
        %v237 = vld [vmem:[%s202 + $0xc] sm:$0xf]
        %v238 = vld [vmem:[%s202 + $0x10] sm:$0xf]
        %v239 = vld [vmem:[%s202 + $0x14] sm:$0xf]
        %v240 = vld [vmem:[%s202 + $0x18] sm:$0xf]
        %v241 = vld [vmem:[%s202 + $0x1c] sm:$0xf]
        %v242 = vld [vmem:[%s202 + $0x20] sm:$0xf]
        %v243 = vld [vmem:[%s202 + $0x24] sm:$0xf]
        %v244 = vld [vmem:[%s202 + $0x28] sm:$0xf]
        %v245 = vld [vmem:[%s202 + $0x2c] sm:$0xf]
        %v246 = vld [vmem:[%s202 + $0x30] sm:$0xf]
        %v247 = vld [vmem:[%s202 + $0x34] sm:$0xf]
        %v248 = vld [vmem:[%s202 + $0x38] sm:$0xf]
        %v249 = vld [vmem:[%s202 + $0x3c] sm:$0xf]
        %v250 = vld [vmem:[%s202 + $0x40] sm:$0xf]
        %v251 = vld [vmem:[%s202 + $0x44] sm:$0xf]
        %v252 = vld [vmem:[%s202 + $0x48] sm:$0xf]
        %v253 = vld [vmem:[%s202 + $0x4c] sm:$0xf]
        %v254 = vld [vmem:[%s202 + $0x50] sm:$0xf]
        %v255 = vld [vmem:[%s202 + $0x54] sm:$0xf]
        %v256 = vld [vmem:[%s202 + $0x58] sm:$0xf]
        %v257 = vld [vmem:[%s202 + $0x5c] sm:$0xf]
        %v258 = vld [vmem:[%s202 + $0x60] sm:$0xf]
        %v259 = vld [vmem:[%s202 + $0x64] sm:$0xf]
        %v260 = vld [vmem:[%s202 + $0x68] sm:$0xf]
        %v261 = vld [vmem:[%s202 + $0x6c] sm:$0xf]
        %v262 = vld [vmem:[%s202 + $0x70] sm:$0xf]
        %v263 = vld [vmem:[%s202 + $0x74] sm:$0xf]
        %v264 = vld [vmem:[%s202 + $0x78] sm:$0xf]
        %v265 = vld [vmem:[%s202 + $0x7c] sm:$0xf]
        %v266 = vunpack.c.l.bf16 %v234
        %v267 = vunpack.c.l.bf16 %v235
        %v268 = vunpack.c.l.bf16 %v236
        %v269 = vunpack.c.l.bf16 %v237
        %v270 = vunpack.c.l.bf16 %v238
        %v271 = vunpack.c.l.bf16 %v239
        %v272 = vunpack.c.l.bf16 %v240
        %v273 = vunpack.c.l.bf16 %v241
        %v274 = vunpack.c.l.bf16 %v242
        %v275 = vunpack.c.l.bf16 %v243
        %v276 = vunpack.c.l.bf16 %v244
        %v277 = vunpack.c.l.bf16 %v245
        %v278 = vunpack.c.l.bf16 %v246
        %v279 = vunpack.c.l.bf16 %v247
        %v280 = vunpack.c.l.bf16 %v248
        %v281 = vunpack.c.l.bf16 %v249
        %v282 = vunpack.c.l.bf16 %v250
        %v283 = vunpack.c.l.bf16 %v251
        %v284 = vunpack.c.l.bf16 %v252
        %v285 = vunpack.c.l.bf16 %v253
        %v286 = vunpack.c.l.bf16 %v254
        %v287 = vunpack.c.l.bf16 %v255
        %v288 = vunpack.c.l.bf16 %v256
        %v289 = vunpack.c.l.bf16 %v257
        %v290 = vunpack.c.l.bf16 %v258
        %v291 = vunpack.c.l.bf16 %v259
        %v292 = vunpack.c.l.bf16 %v260
        %v293 = vunpack.c.l.bf16 %v261
        %v294 = vunpack.c.l.bf16 %v262
        %v295 = vunpack.c.l.bf16 %v263
        %v296 = vunpack.c.l.bf16 %v264
        %v297 = vunpack.c.l.bf16 %v265
        %v299 = vlaneseq
        %v300 = vshrl.u32 %v299, 7
        %v301 = vsub.s32 0, %v300
        %v302 = vrot.slane %v232, %v301
        %v304 = vmul.f32 %v266, %v302
        %v305 = vmul.f32 %v267, %v302
        %v306 = vmul.f32 %v268, %v302
        %v307 = vmul.f32 %v269, %v302
        %v308 = vmul.f32 %v270, %v302
        %v309 = vmul.f32 %v271, %v302
        %v310 = vmul.f32 %v272, %v302
        %v311 = vmul.f32 %v273, %v302
        %v312 = vmul.f32 %v274, %v302
        %v313 = vmul.f32 %v275, %v302
        %v314 = vmul.f32 %v276, %v302
        %v315 = vmul.f32 %v277, %v302
        %v316 = vmul.f32 %v278, %v302
        %v317 = vmul.f32 %v279, %v302
        %v318 = vmul.f32 %v280, %v302
        %v319 = vmul.f32 %v281, %v302
        %v320 = vmul.f32 %v282, %v302
        %v321 = vmul.f32 %v283, %v302
        %v322 = vmul.f32 %v284, %v302
        %v323 = vmul.f32 %v285, %v302
        %v324 = vmul.f32 %v286, %v302
        %v325 = vmul.f32 %v287, %v302
        %v326 = vmul.f32 %v288, %v302
        %v327 = vmul.f32 %v289, %v302
        %v328 = vmul.f32 %v290, %v302
        %v329 = vmul.f32 %v291, %v302
        %v330 = vmul.f32 %v292, %v302
        %v331 = vmul.f32 %v293, %v302
        %v332 = vmul.f32 %v294, %v302
        %v333 = vmul.f32 %v295, %v302
        %v334 = vmul.f32 %v296, %v302
        %v335 = vmul.f32 %v297, %v302
        %v337 = vlaneseq
        %v338 = vshrl.u32 %v337, 7
        %v339 = vsub.s32 0, %v338
        %v340 = vrot.slane %v233, %v339
        %v342 = vadd.f32 %v304, %v340
        %v343 = vadd.f32 %v305, %v340
        %v344 = vadd.f32 %v306, %v340
        %v345 = vadd.f32 %v307, %v340
        %v346 = vadd.f32 %v308, %v340
        %v347 = vadd.f32 %v309, %v340
        %v348 = vadd.f32 %v310, %v340
        %v349 = vadd.f32 %v311, %v340
        %v350 = vadd.f32 %v312, %v340
        %v351 = vadd.f32 %v313, %v340
        %v352 = vadd.f32 %v314, %v340
        %v353 = vadd.f32 %v315, %v340
        %v354 = vadd.f32 %v316, %v340
        %v355 = vadd.f32 %v317, %v340
        %v356 = vadd.f32 %v318, %v340
        %v357 = vadd.f32 %v319, %v340
        %v358 = vadd.f32 %v320, %v340
        %v359 = vadd.f32 %v321, %v340
        %v360 = vadd.f32 %v322, %v340
        %v361 = vadd.f32 %v323, %v340
        %v362 = vadd.f32 %v324, %v340
        %v363 = vadd.f32 %v325, %v340
        %v364 = vadd.f32 %v326, %v340
        %v365 = vadd.f32 %v327, %v340
        %v366 = vadd.f32 %v328, %v340
        %v367 = vadd.f32 %v329, %v340
        %v368 = vadd.f32 %v330, %v340
        %v369 = vadd.f32 %v331, %v340
        %v370 = vadd.f32 %v332, %v340
        %v371 = vadd.f32 %v333, %v340
        %v372 = vadd.f32 %v334, %v340
        %v373 = vadd.f32 %v335, %v340
        %v374 = vmax.f32 %v342, 0.0
        %v375 = vmax.f32 %v343, 0.0
        %v376 = vmax.f32 %v344, 0.0
        %v377 = vmax.f32 %v345, 0.0
        %v378 = vmax.f32 %v346, 0.0
        %v379 = vmax.f32 %v347, 0.0
        %v380 = vmax.f32 %v348, 0.0
        %v381 = vmax.f32 %v349, 0.0
        %v382 = vmax.f32 %v350, 0.0
        %v383 = vmax.f32 %v351, 0.0
        %v384 = vmax.f32 %v352, 0.0
        %v385 = vmax.f32 %v353, 0.0
        %v386 = vmax.f32 %v354, 0.0
        %v387 = vmax.f32 %v355, 0.0
        %v388 = vmax.f32 %v356, 0.0
        %v389 = vmax.f32 %v357, 0.0
        %v390 = vmax.f32 %v358, 0.0
        %v391 = vmax.f32 %v359, 0.0
        %v392 = vmax.f32 %v360, 0.0
        %v393 = vmax.f32 %v361, 0.0
        %v394 = vmax.f32 %v362, 0.0
        %v395 = vmax.f32 %v363, 0.0
        %v396 = vmax.f32 %v364, 0.0
        %v397 = vmax.f32 %v365, 0.0
        %v398 = vmax.f32 %v366, 0.0
        %v399 = vmax.f32 %v367, 0.0
        %v400 = vmax.f32 %v368, 0.0
        %v401 = vmax.f32 %v369, 0.0
        %v402 = vmax.f32 %v370, 0.0
        %v403 = vmax.f32 %v371, 0.0
        %v404 = vmax.f32 %v372, 0.0
        %v405 = vmax.f32 %v373, 0.0
        %406 = vst [vmem:[#allocation2] sm:$0xff] 0.0
        %407 = vst [vmem:[#allocation2 + $0x8] sm:$0xff] 0.0
        %408 = vst [vmem:[#allocation2 + $0x10] sm:$0x3] 0.0
        %409 = vst [vmem:[#allocation2 + $0x18] sm:$0xff] 0.0
        %410 = vst [vmem:[#allocation2 + $0x20] sm:$0xff] 0.0
        %411 = vst [vmem:[#allocation2 + $0x28] sm:$0x3] 0.0
        %412 = vst [vmem:[#allocation2 + $0x30] sm:$0xff] 0.0
        %413 = vst [vmem:[#allocation2 + $0x38] sm:$0xff] 0.0
        %414 = vst [vmem:[#allocation2 + $0x40] sm:$0x3] 0.0
        %415 = vst [vmem:[#allocation2 + $0x48] sm:$0xff] 0.0
        %416 = vst [vmem:[#allocation2 + $0x50] sm:$0xff] 0.0
        %417 = vst [vmem:[#allocation2 + $0x58] sm:$0x3] 0.0
        %418 = vst [vmem:[#allocation2 + $0x60] sm:$0xff] 0.0
        %419 = vst [vmem:[#allocation2 + $0x68] sm:$0xff] 0.0
        %420 = vst [vmem:[#allocation2 + $0x70] sm:$0x3] 0.0
        %421 = vst [vmem:[#allocation2 + $0x78] sm:$0xff] 0.0
        %422 = vst [vmem:[#allocation2 + $0x80] sm:$0xff] 0.0
        %423 = vst [vmem:[#allocation2 + $0x88] sm:$0x3] 0.0
        %424 = vst [vmem:[#allocation2 + $0x90] sm:$0xff] 0.0
        %425 = vst [vmem:[#allocation2 + $0x98] sm:$0xff] 0.0
        %426 = vst [vmem:[#allocation2 + $0xa0] sm:$0x3] 0.0
        %427 = vst [vmem:[#allocation2 + $0xa8] sm:$0xff] 0.0
        %428 = vst [vmem:[#allocation2 + $0xb0] sm:$0xff] 0.0
        %429 = vst [vmem:[#allocation2 + $0xb8] sm:$0x3] 0.0
        %430 = vst [vmem:[#allocation2 + $0xc0] sm:$0xff] 0.0
        %431 = vst [vmem:[#allocation2 + $0xc8] sm:$0xff] 0.0
        %432 = vst [vmem:[#allocation2 + $0xd0] sm:$0x3] 0.0
        %433 = vst [vmem:[#allocation2 + $0xd8] sm:$0xff] 0.0
        %434 = vst [vmem:[#allocation2 + $0xe0] sm:$0xff] 0.0
        %435 = vst [vmem:[#allocation2 + $0xe8] sm:$0x3] 0.0
        %436 = vst [vmem:[#allocation2 + $0xf0] sm:$0xff] 0.0
        %437 = vst [vmem:[#allocation2 + $0xf8] sm:$0xff] 0.0
        %438 = vst [vmem:[#allocation2 + $0x100] sm:$0x3] 0.0
        %439 = vst [vmem:[#allocation2 + $0x108] sm:$0xff] 0.0
        %440 = vst [vmem:[#allocation2 + $0x110] sm:$0xff] 0.0
        %441 = vst [vmem:[#allocation2 + $0x118] sm:$0x3] 0.0
        %442 = vst [vmem:[#allocation2 + $0x120] sm:$0xff] 0.0
        %443 = vst [vmem:[#allocation2 + $0x128] sm:$0xff] 0.0
        %444 = vst [vmem:[#allocation2 + $0x130] sm:$0x3] 0.0
        %445 = vst [vmem:[#allocation2 + $0x138] sm:$0xff] 0.0
        %446 = vst [vmem:[#allocation2 + $0x140] sm:$0xff] 0.0
        %447 = vst [vmem:[#allocation2 + $0x148] sm:$0x3] 0.0
        %448 = vst [vmem:[#allocation2 + $0x150] sm:$0xff] 0.0
        %449 = vst [vmem:[#allocation2 + $0x158] sm:$0xff] 0.0
        %450 = vst [vmem:[#allocation2 + $0x160] sm:$0x3] 0.0
        %451 = vst [vmem:[#allocation2 + $0x168] sm:$0xff] 0.0
        %452 = vst [vmem:[#allocation2 + $0x170] sm:$0xff] 0.0
        %453 = vst [vmem:[#allocation2 + $0x178] sm:$0x3] 0.0
        %454 = vst [vmem:[#allocation2 + $0x180] sm:$0xff] 0.0
        %455 = vst [vmem:[#allocation2 + $0x188] sm:$0xff] 0.0
        %456 = vst [vmem:[#allocation2 + $0x190] sm:$0x3] 0.0
        %457 = vst [vmem:[#allocation2 + $0x198] sm:$0xff] 0.0
        %458 = vst [vmem:[#allocation2 + $0x1a0] sm:$0xff] 0.0
        %459 = vst [vmem:[#allocation2 + $0x1a8] sm:$0x3] 0.0
        %s460 = scalar_lea.vmem [#allocation2], 24
        %461 = vst [vmem:[%s460 + $0x1] sm:$0xff] %v374
        %462 = vst [vmem:[%s460 + $0x9] sm:$0xff] %v375
        %463 = vst [vmem:[%s460 + $0x19] sm:$0xff] %v376
        %464 = vst [vmem:[%s460 + $0x21] sm:$0xff] %v377
        %465 = vst [vmem:[%s460 + $0x31] sm:$0xff] %v378
        %466 = vst [vmem:[%s460 + $0x39] sm:$0xff] %v379
        %467 = vst [vmem:[%s460 + $0x49] sm:$0xff] %v380
        %468 = vst [vmem:[%s460 + $0x51] sm:$0xff] %v381
        %469 = vst [vmem:[%s460 + $0x61] sm:$0xff] %v382
        %470 = vst [vmem:[%s460 + $0x69] sm:$0xff] %v383
        %471 = vst [vmem:[%s460 + $0x79] sm:$0xff] %v384
        %472 = vst [vmem:[%s460 + $0x81] sm:$0xff] %v385
        %473 = vst [vmem:[%s460 + $0x91] sm:$0xff] %v386
        %474 = vst [vmem:[%s460 + $0x99] sm:$0xff] %v387
        %475 = vst [vmem:[%s460 + $0xa9] sm:$0xff] %v388
        %476 = vst [vmem:[%s460 + $0xb1] sm:$0xff] %v389
        %477 = vst [vmem:[%s460 + $0xc1] sm:$0xff] %v390
        %478 = vst [vmem:[%s460 + $0xc9] sm:$0xff] %v391
        %479 = vst [vmem:[%s460 + $0xd9] sm:$0xff] %v392
        %480 = vst [vmem:[%s460 + $0xe1] sm:$0xff] %v393
        %481 = vst [vmem:[%s460 + $0xf1] sm:$0xff] %v394
        %482 = vst [vmem:[%s460 + $0xf9] sm:$0xff] %v395
        %483 = vst [vmem:[%s460 + $0x109] sm:$0xff] %v396
        %484 = vst [vmem:[%s460 + $0x111] sm:$0xff] %v397
        %485 = vst [vmem:[%s460 + $0x121] sm:$0xff] %v398
        %486 = vst [vmem:[%s460 + $0x129] sm:$0xff] %v399
        %487 = vst [vmem:[%s460 + $0x139] sm:$0xff] %v400
        %488 = vst [vmem:[%s460 + $0x141] sm:$0xff] %v401
        %489 = vst [vmem:[%s460 + $0x151] sm:$0xff] %v402
        %490 = vst [vmem:[%s460 + $0x159] sm:$0xff] %v403
        %491 = vst [vmem:[%s460 + $0x169] sm:$0xff] %v404
        %492 = vst [vmem:[%s460 + $0x171] sm:$0xff] %v405
        %v493 = vld [vmem:[#allocation2] sm:$0xff]
        %v494 = vld [vmem:[#allocation2 + $0x8] sm:$0xff]
        %v495 = vld [vmem:[#allocation2 + $0x18] sm:$0xff]
        %v496 = vld [vmem:[#allocation2 + $0x20] sm:$0xff]
        %v497 = vld [vmem:[#allocation2 + $0x30] sm:$0xff]
        %v498 = vld [vmem:[#allocation2 + $0x38] sm:$0xff]
        %v499 = vld [vmem:[#allocation2 + $0x48] sm:$0xff]
        %v500 = vld [vmem:[#allocation2 + $0x50] sm:$0xff]
        %v501 = vld [vmem:[#allocation2 + $0x60] sm:$0xff]
        %v502 = vld [vmem:[#allocation2 + $0x68] sm:$0xff]
        %v503 = vld [vmem:[#allocation2 + $0x78] sm:$0xff]
        %v504 = vld [vmem:[#allocation2 + $0x80] sm:$0xff]
        %v505 = vld [vmem:[#allocation2 + $0x90] sm:$0xff]
        %v506 = vld [vmem:[#allocation2 + $0x98] sm:$0xff]
        %v507 = vld [vmem:[#allocation2 + $0xa8] sm:$0xff]
        %v508 = vld [vmem:[#allocation2 + $0xb0] sm:$0xff]
        %v509 = vld [vmem:[#allocation2 + $0xc0] sm:$0xff]
        %v510 = vld [vmem:[#allocation2 + $0xc8] sm:$0xff]
        %v511 = vld [vmem:[#allocation2 + $0xd8] sm:$0xff]
        %v512 = vld [vmem:[#allocation2 + $0xe0] sm:$0xff]
        %v513 = vld [vmem:[#allocation2 + $0xf0] sm:$0xff]
        %v514 = vld [vmem:[#allocation2 + $0xf8] sm:$0xff]
        %v515 = vld [vmem:[#allocation2 + $0x108] sm:$0xff]
        %v516 = vld [vmem:[#allocation2 + $0x110] sm:$0xff]
        %v517 = vld [vmem:[#allocation2 + $0x120] sm:$0xff]
        %v518 = vld [vmem:[#allocation2 + $0x128] sm:$0xff]
        %v519 = vld [vmem:[#allocation2 + $0x138] sm:$0xff]
        %v520 = vld [vmem:[#allocation2 + $0x140] sm:$0xff]
        %v521 = vld [vmem:[#allocation2 + $0x150] sm:$0xff]
        %v522 = vld [vmem:[#allocation2 + $0x158] sm:$0xff]
        %v523 = vld [vmem:[#allocation2 + $0x168] sm:$0xff]
        %v524 = vld [vmem:[#allocation2 + $0x170] sm:$0xff]
        %v525 = vpack.c.bf16 %v494, %v493
        %v526 = vpack.c.bf16 %v496, %v495
        %v527 = vpack.c.bf16 %v498, %v497
        %v528 = vpack.c.bf16 %v500, %v499
        %v529 = vpack.c.bf16 %v502, %v501
        %v530 = vpack.c.bf16 %v504, %v503
        %v531 = vpack.c.bf16 %v506, %v505
        %v532 = vpack.c.bf16 %v508, %v507
        %v533 = vpack.c.bf16 %v510, %v509
        %v534 = vpack.c.bf16 %v512, %v511
        %v535 = vpack.c.bf16 %v514, %v513
        %v536 = vpack.c.bf16 %v516, %v515
        %v537 = vpack.c.bf16 %v518, %v517
        %v538 = vpack.c.bf16 %v520, %v519
        %v539 = vpack.c.bf16 %v522, %v521
        %v540 = vpack.c.bf16 %v524, %v523
        %v557 = vunpack.c.l.b16 %v525
        %v558 = vunpack.c.h.b16 %v525
        %v559 = vunpack.c.l.b16 %v526
        %v560 = vunpack.c.h.b16 %v526
        %v561 = vunpack.c.l.b16 %v527
        %v562 = vunpack.c.h.b16 %v527
        %v563 = vunpack.c.l.b16 %v528
        %v564 = vunpack.c.h.b16 %v528
        %v565 = vunpack.c.l.b16 %v529
        %v566 = vunpack.c.h.b16 %v529
        %v567 = vunpack.c.l.b16 %v530
        %v568 = vunpack.c.h.b16 %v530
        %v569 = vunpack.c.l.b16 %v531
        %v570 = vunpack.c.h.b16 %v531
        %v571 = vunpack.c.l.b16 %v532
        %v572 = vunpack.c.h.b16 %v532
        %v573 = vunpack.c.l.b16 %v533
        %v574 = vunpack.c.h.b16 %v533
        %v575 = vunpack.c.l.b16 %v534
        %v576 = vunpack.c.h.b16 %v534
        %v577 = vunpack.c.l.b16 %v535
        %v578 = vunpack.c.h.b16 %v535
        %v579 = vunpack.c.l.b16 %v536
        %v580 = vunpack.c.h.b16 %v536
        %v581 = vunpack.c.l.b16 %v537
        %v582 = vunpack.c.h.b16 %v537
        %v583 = vunpack.c.l.b16 %v538
        %v584 = vunpack.c.h.b16 %v538
        %v585 = vunpack.c.l.b16 %v539
        %v586 = vunpack.c.h.b16 %v539
        %v587 = vunpack.c.l.b16 %v540
        %v588 = vunpack.c.h.b16 %v540
        %v589 = vpack.c.b16 %v557, %v557
        %v590 = vpack.c.b16 %v558, %v558
        %v591 = vpack.c.b16 %v559, %v559
        %v592 = vpack.c.b16 %v560, %v560
        %v593 = vpack.c.b16 %v561, %v561
        %v594 = vpack.c.b16 %v562, %v562
        %v595 = vpack.c.b16 %v563, %v563
        %v596 = vpack.c.b16 %v564, %v564
        %v597 = vpack.c.b16 %v565, %v565
        %v598 = vpack.c.b16 %v566, %v566
        %v599 = vpack.c.b16 %v567, %v567
        %v600 = vpack.c.b16 %v568, %v568
        %v601 = vpack.c.b16 %v569, %v569
        %v602 = vpack.c.b16 %v570, %v570
        %v603 = vpack.c.b16 %v571, %v571
        %v604 = vpack.c.b16 %v572, %v572
        %v605 = vpack.c.b16 %v573, %v573
        %v606 = vpack.c.b16 %v574, %v574
        %v607 = vpack.c.b16 %v575, %v575
        %v608 = vpack.c.b16 %v576, %v576
        %v609 = vpack.c.b16 %v577, %v577
        %v610 = vpack.c.b16 %v578, %v578
        %v611 = vpack.c.b16 %v579, %v579
        %v612 = vpack.c.b16 %v580, %v580
        %v613 = vpack.c.b16 %v581, %v581
        %v614 = vpack.c.b16 %v582, %v582
        %v615 = vpack.c.b16 %v583, %v583
        %v616 = vpack.c.b16 %v584, %v584
        %v617 = vpack.c.b16 %v585, %v585
        %v618 = vpack.c.b16 %v586, %v586
        %v619 = vpack.c.b16 %v587, %v587
        %v620 = vpack.c.b16 %v588, %v588
        %653 = vst [vmem:[#allocation3] sm:$0xf] %v589
        %654 = vst [vmem:[#allocation3 + $0x24] sm:$0xf] %v590
        %655 = vst [vmem:[#allocation3 + $0x48] sm:$0xf] %v591
        %656 = vst [vmem:[#allocation3 + $0x6c] sm:$0xf] %v592
        %657 = vst [vmem:[#allocation3 + $0x90] sm:$0xf] %v593
        %658 = vst [vmem:[#allocation3 + $0xb4] sm:$0xf] %v594
        %659 = vst [vmem:[#allocation3 + $0xd8] sm:$0xf] %v595
        %660 = vst [vmem:[#allocation3 + $0xfc] sm:$0xf] %v596
        %661 = vst [vmem:[#allocation3 + $0x120] sm:$0xf] %v597
        %662 = vst [vmem:[#allocation3 + $0x144] sm:$0xf] %v598
        %663 = vst [vmem:[#allocation3 + $0x168] sm:$0xf] %v599
        %664 = vst [vmem:[#allocation3 + $0x18c] sm:$0xf] %v600
        %665 = vst [vmem:[#allocation3 + $0x1b0] sm:$0xf] %v601
        %666 = vst [vmem:[#allocation3 + $0x1d4] sm:$0xf] %v602
        %667 = vst [vmem:[#allocation3 + $0x1f8] sm:$0xf] %v603
        %668 = vst [vmem:[#allocation3 + $0x21c] sm:$0xf] %v604
        %669 = vst [vmem:[#allocation3 + $0x240] sm:$0xf] %v605
        %670 = vst [vmem:[#allocation3 + $0x264] sm:$0xf] %v606
        %671 = vst [vmem:[#allocation3 + $0x288] sm:$0xf] %v607
        %672 = vst [vmem:[#allocation3 + $0x2ac] sm:$0xf] %v608
        %673 = vst [vmem:[#allocation3 + $0x2d0] sm:$0xf] %v609
        %674 = vst [vmem:[#allocation3 + $0x2f4] sm:$0xf] %v610
        %675 = vst [vmem:[#allocation3 + $0x318] sm:$0xf] %v611
        %676 = vst [vmem:[#allocation3 + $0x33c] sm:$0xf] %v612
        %677 = vst [vmem:[#allocation3 + $0x360] sm:$0xf] %v613
        %678 = vst [vmem:[#allocation3 + $0x384] sm:$0xf] %v614
        %679 = vst [vmem:[#allocation3 + $0x3a8] sm:$0xf] %v615
        %680 = vst [vmem:[#allocation3 + $0x3cc] sm:$0xf] %v616
        %681 = vst [vmem:[#allocation3 + $0x3f0] sm:$0xf] %v617
        %682 = vst [vmem:[#allocation3 + $0x414] sm:$0xf] %v618
        %683 = vst [vmem:[#allocation3 + $0x438] sm:$0xf] %v619
        %684 = vst [vmem:[#allocation3 + $0x45c] sm:$0xf] %v620
        %v685 = vld [vmem:[#allocation2 + $0x1] sm:$0xff]
        %v686 = vld [vmem:[#allocation2 + $0x9] sm:$0xff]
        %v687 = vld [vmem:[#allocation2 + $0x19] sm:$0xff]
        %v688 = vld [vmem:[#allocation2 + $0x21] sm:$0xff]
        %v689 = vld [vmem:[#allocation2 + $0x31] sm:$0xff]
        %v690 = vld [vmem:[#allocation2 + $0x39] sm:$0xff]
        %v691 = vld [vmem:[#allocation2 + $0x49] sm:$0xff]
        %v692 = vld [vmem:[#allocation2 + $0x51] sm:$0xff]
        %v693 = vld [vmem:[#allocation2 + $0x61] sm:$0xff]
        %v694 = vld [vmem:[#allocation2 + $0x69] sm:$0xff]
        %v695 = vld [vmem:[#allocation2 + $0x79] sm:$0xff]
        %v696 = vld [vmem:[#allocation2 + $0x81] sm:$0xff]
        %v697 = vld [vmem:[#allocation2 + $0x91] sm:$0xff]
        %v698 = vld [vmem:[#allocation2 + $0x99] sm:$0xff]
        %v699 = vld [vmem:[#allocation2 + $0xa9] sm:$0xff]
        %v700 = vld [vmem:[#allocation2 + $0xb1] sm:$0xff]
        %v701 = vld [vmem:[#allocation2 + $0xc1] sm:$0xff]
        %v702 = vld [vmem:[#allocation2 + $0xc9] sm:$0xff]
        %v703 = vld [vmem:[#allocation2 + $0xd9] sm:$0xff]
        %v704 = vld [vmem:[#allocation2 + $0xe1] sm:$0xff]
        %v705 = vld [vmem:[#allocation2 + $0xf1] sm:$0xff]
        %v706 = vld [vmem:[#allocation2 + $0xf9] sm:$0xff]
        %v707 = vld [vmem:[#allocation2 + $0x109] sm:$0xff]
        %v708 = vld [vmem:[#allocation2 + $0x111] sm:$0xff]
        %v709 = vld [vmem:[#allocation2 + $0x121] sm:$0xff]
        %v710 = vld [vmem:[#allocation2 + $0x129] sm:$0xff]
        %v711 = vld [vmem:[#allocation2 + $0x139] sm:$0xff]
        %v712 = vld [vmem:[#allocation2 + $0x141] sm:$0xff]
        %v713 = vld [vmem:[#allocation2 + $0x151] sm:$0xff]
        %v714 = vld [vmem:[#allocation2 + $0x159] sm:$0xff]
        %v715 = vld [vmem:[#allocation2 + $0x169] sm:$0xff]
        %v716 = vld [vmem:[#allocation2 + $0x171] sm:$0xff]
        %v717 = vpack.c.bf16 %v686, %v685
        %v718 = vpack.c.bf16 %v688, %v687
        %v719 = vpack.c.bf16 %v690, %v689
        %v720 = vpack.c.bf16 %v692, %v691
        %v721 = vpack.c.bf16 %v694, %v693
        %v722 = vpack.c.bf16 %v696, %v695
        %v723 = vpack.c.bf16 %v698, %v697
        %v724 = vpack.c.bf16 %v700, %v699
        %v725 = vpack.c.bf16 %v702, %v701
        %v726 = vpack.c.bf16 %v704, %v703
        %v727 = vpack.c.bf16 %v706, %v705
        %v728 = vpack.c.bf16 %v708, %v707
        %v729 = vpack.c.bf16 %v710, %v709
        %v730 = vpack.c.bf16 %v712, %v711
        %v731 = vpack.c.bf16 %v714, %v713
        %v732 = vpack.c.bf16 %v716, %v715
        %v749 = vunpack.c.l.b16 %v717
        %v750 = vunpack.c.h.b16 %v717
        %v751 = vunpack.c.l.b16 %v718
        %v752 = vunpack.c.h.b16 %v718
        %v753 = vunpack.c.l.b16 %v719
        %v754 = vunpack.c.h.b16 %v719
        %v755 = vunpack.c.l.b16 %v720
        %v756 = vunpack.c.h.b16 %v720
        %v757 = vunpack.c.l.b16 %v721
        %v758 = vunpack.c.h.b16 %v721
        %v759 = vunpack.c.l.b16 %v722
        %v760 = vunpack.c.h.b16 %v722
        %v761 = vunpack.c.l.b16 %v723
        %v762 = vunpack.c.h.b16 %v723
        %v763 = vunpack.c.l.b16 %v724
        %v764 = vunpack.c.h.b16 %v724
        %v765 = vunpack.c.l.b16 %v725
        %v766 = vunpack.c.h.b16 %v725
        %v767 = vunpack.c.l.b16 %v726
        %v768 = vunpack.c.h.b16 %v726
        %v769 = vunpack.c.l.b16 %v727
        %v770 = vunpack.c.h.b16 %v727
        %v771 = vunpack.c.l.b16 %v728
        %v772 = vunpack.c.h.b16 %v728
        %v773 = vunpack.c.l.b16 %v729
        %v774 = vunpack.c.h.b16 %v729
        %v775 = vunpack.c.l.b16 %v730
        %v776 = vunpack.c.h.b16 %v730
        %v777 = vunpack.c.l.b16 %v731
        %v778 = vunpack.c.h.b16 %v731
        %v779 = vunpack.c.l.b16 %v732
        %v780 = vunpack.c.h.b16 %v732
        %v781 = vpack.c.b16 %v749, %v749
        %v782 = vpack.c.b16 %v750, %v750
        %v783 = vpack.c.b16 %v751, %v751
        %v784 = vpack.c.b16 %v752, %v752
        %v785 = vpack.c.b16 %v753, %v753
        %v786 = vpack.c.b16 %v754, %v754
        %v787 = vpack.c.b16 %v755, %v755
        %v788 = vpack.c.b16 %v756, %v756
        %v789 = vpack.c.b16 %v757, %v757
        %v790 = vpack.c.b16 %v758, %v758
        %v791 = vpack.c.b16 %v759, %v759
        %v792 = vpack.c.b16 %v760, %v760
        %v793 = vpack.c.b16 %v761, %v761
        %v794 = vpack.c.b16 %v762, %v762
        %v795 = vpack.c.b16 %v763, %v763
        %v796 = vpack.c.b16 %v764, %v764
        %v797 = vpack.c.b16 %v765, %v765
        %v798 = vpack.c.b16 %v766, %v766
        %v799 = vpack.c.b16 %v767, %v767
        %v800 = vpack.c.b16 %v768, %v768
        %v801 = vpack.c.b16 %v769, %v769
        %v802 = vpack.c.b16 %v770, %v770
        %v803 = vpack.c.b16 %v771, %v771
        %v804 = vpack.c.b16 %v772, %v772
        %v805 = vpack.c.b16 %v773, %v773
        %v806 = vpack.c.b16 %v774, %v774
        %v807 = vpack.c.b16 %v775, %v775
        %v808 = vpack.c.b16 %v776, %v776
        %v809 = vpack.c.b16 %v777, %v777
        %v810 = vpack.c.b16 %v778, %v778
        %v811 = vpack.c.b16 %v779, %v779
        %v812 = vpack.c.b16 %v780, %v780
        %845 = vst [vmem:[#allocation3 + $0x4] sm:$0xf] %v781
        %846 = vst [vmem:[#allocation3 + $0x28] sm:$0xf] %v782
        %847 = vst [vmem:[#allocation3 + $0x4c] sm:$0xf] %v783
        %848 = vst [vmem:[#allocation3 + $0x70] sm:$0xf] %v784
        %849 = vst [vmem:[#allocation3 + $0x94] sm:$0xf] %v785
        %850 = vst [vmem:[#allocation3 + $0xb8] sm:$0xf] %v786
        %851 = vst [vmem:[#allocation3 + $0xdc] sm:$0xf] %v787
        %852 = vst [vmem:[#allocation3 + $0x100] sm:$0xf] %v788
        %853 = vst [vmem:[#allocation3 + $0x124] sm:$0xf] %v789
        %854 = vst [vmem:[#allocation3 + $0x148] sm:$0xf] %v790
        %855 = vst [vmem:[#allocation3 + $0x16c] sm:$0xf] %v791
        %856 = vst [vmem:[#allocation3 + $0x190] sm:$0xf] %v792
        %857 = vst [vmem:[#allocation3 + $0x1b4] sm:$0xf] %v793
        %858 = vst [vmem:[#allocation3 + $0x1d8] sm:$0xf] %v794
        %859 = vst [vmem:[#allocation3 + $0x1fc] sm:$0xf] %v795
        %860 = vst [vmem:[#allocation3 + $0x220] sm:$0xf] %v796
        %861 = vst [vmem:[#allocation3 + $0x244] sm:$0xf] %v797
        %862 = vst [vmem:[#allocation3 + $0x268] sm:$0xf] %v798
        %863 = vst [vmem:[#allocation3 + $0x28c] sm:$0xf] %v799
        %864 = vst [vmem:[#allocation3 + $0x2b0] sm:$0xf] %v800
        %865 = vst [vmem:[#allocation3 + $0x2d4] sm:$0xf] %v801
        %866 = vst [vmem:[#allocation3 + $0x2f8] sm:$0xf] %v802
        %867 = vst [vmem:[#allocation3 + $0x31c] sm:$0xf] %v803
        %868 = vst [vmem:[#allocation3 + $0x340] sm:$0xf] %v804
        %869 = vst [vmem:[#allocation3 + $0x364] sm:$0xf] %v805
        %870 = vst [vmem:[#allocation3 + $0x388] sm:$0xf] %v806
        %871 = vst [vmem:[#allocation3 + $0x3ac] sm:$0xf] %v807
        %872 = vst [vmem:[#allocation3 + $0x3d0] sm:$0xf] %v808
        %873 = vst [vmem:[#allocation3 + $0x3f4] sm:$0xf] %v809
        %874 = vst [vmem:[#allocation3 + $0x418] sm:$0xf] %v810
        %875 = vst [vmem:[#allocation3 + $0x43c] sm:$0xf] %v811
        %876 = vst [vmem:[#allocation3 + $0x460] sm:$0xf] %v812
        %v877 = vld [vmem:[#allocation2 + $0x2] sm:$0xff]
        %v878 = vld [vmem:[#allocation2 + $0xa] sm:$0xff]
        %v879 = vld [vmem:[#allocation2 + $0x1a] sm:$0xff]
        %v880 = vld [vmem:[#allocation2 + $0x22] sm:$0xff]
        %v881 = vld [vmem:[#allocation2 + $0x32] sm:$0xff]
        %v882 = vld [vmem:[#allocation2 + $0x3a] sm:$0xff]
        %v883 = vld [vmem:[#allocation2 + $0x4a] sm:$0xff]
        %v884 = vld [vmem:[#allocation2 + $0x52] sm:$0xff]
        %v885 = vld [vmem:[#allocation2 + $0x62] sm:$0xff]
        %v886 = vld [vmem:[#allocation2 + $0x6a] sm:$0xff]
        %v887 = vld [vmem:[#allocation2 + $0x7a] sm:$0xff]
        %v888 = vld [vmem:[#allocation2 + $0x82] sm:$0xff]
        %v889 = vld [vmem:[#allocation2 + $0x92] sm:$0xff]
        %v890 = vld [vmem:[#allocation2 + $0x9a] sm:$0xff]
        %v891 = vld [vmem:[#allocation2 + $0xaa] sm:$0xff]
        %v892 = vld [vmem:[#allocation2 + $0xb2] sm:$0xff]
        %v893 = vld [vmem:[#allocation2 + $0xc2] sm:$0xff]
        %v894 = vld [vmem:[#allocation2 + $0xca] sm:$0xff]
        %v895 = vld [vmem:[#allocation2 + $0xda] sm:$0xff]
        %v896 = vld [vmem:[#allocation2 + $0xe2] sm:$0xff]
        %v897 = vld [vmem:[#allocation2 + $0xf2] sm:$0xff]
        %v898 = vld [vmem:[#allocation2 + $0xfa] sm:$0xff]
        %v899 = vld [vmem:[#allocation2 + $0x10a] sm:$0xff]
        %v900 = vld [vmem:[#allocation2 + $0x112] sm:$0xff]
        %v901 = vld [vmem:[#allocation2 + $0x122] sm:$0xff]
        %v902 = vld [vmem:[#allocation2 + $0x12a] sm:$0xff]
        %v903 = vld [vmem:[#allocation2 + $0x13a] sm:$0xff]
        %v904 = vld [vmem:[#allocation2 + $0x142] sm:$0xff]
        %v905 = vld [vmem:[#allocation2 + $0x152] sm:$0xff]
        %v906 = vld [vmem:[#allocation2 + $0x15a] sm:$0xff]
        %v907 = vld [vmem:[#allocation2 + $0x16a] sm:$0xff]
        %v908 = vld [vmem:[#allocation2 + $0x172] sm:$0xff]
        %v909 = vpack.c.bf16 %v878, %v877
        %v910 = vpack.c.bf16 %v880, %v879
        %v911 = vpack.c.bf16 %v882, %v881
        %v912 = vpack.c.bf16 %v884, %v883
        %v913 = vpack.c.bf16 %v886, %v885
        %v914 = vpack.c.bf16 %v888, %v887
        %v915 = vpack.c.bf16 %v890, %v889
        %v916 = vpack.c.bf16 %v892, %v891
        %v917 = vpack.c.bf16 %v894, %v893
        %v918 = vpack.c.bf16 %v896, %v895
        %v919 = vpack.c.bf16 %v898, %v897
        %v920 = vpack.c.bf16 %v900, %v899
        %v921 = vpack.c.bf16 %v902, %v901
        %v922 = vpack.c.bf16 %v904, %v903
        %v923 = vpack.c.bf16 %v906, %v905
        %v924 = vpack.c.bf16 %v908, %v907
        %v941 = vunpack.c.l.b16 %v909
        %v942 = vunpack.c.h.b16 %v909
        %v943 = vunpack.c.l.b16 %v910
        %v944 = vunpack.c.h.b16 %v910
        %v945 = vunpack.c.l.b16 %v911
        %v946 = vunpack.c.h.b16 %v911
        %v947 = vunpack.c.l.b16 %v912
        %v948 = vunpack.c.h.b16 %v912
        %v949 = vunpack.c.l.b16 %v913
        %v950 = vunpack.c.h.b16 %v913
        %v951 = vunpack.c.l.b16 %v914
        %v952 = vunpack.c.h.b16 %v914
        %v953 = vunpack.c.l.b16 %v915
        %v954 = vunpack.c.h.b16 %v915
        %v955 = vunpack.c.l.b16 %v916
        %v956 = vunpack.c.h.b16 %v916
        %v957 = vunpack.c.l.b16 %v917
        %v958 = vunpack.c.h.b16 %v917
        %v959 = vunpack.c.l.b16 %v918
        %v960 = vunpack.c.h.b16 %v918
        %v961 = vunpack.c.l.b16 %v919
        %v962 = vunpack.c.h.b16 %v919
        %v963 = vunpack.c.l.b16 %v920
        %v964 = vunpack.c.h.b16 %v920
        %v965 = vunpack.c.l.b16 %v921
        %v966 = vunpack.c.h.b16 %v921
        %v967 = vunpack.c.l.b16 %v922
        %v968 = vunpack.c.h.b16 %v922
        %v969 = vunpack.c.l.b16 %v923
        %v970 = vunpack.c.h.b16 %v923
        %v971 = vunpack.c.l.b16 %v924
        %v972 = vunpack.c.h.b16 %v924
        %v973 = vpack.c.b16 %v941, %v941
        %v974 = vpack.c.b16 %v942, %v942
        %v975 = vpack.c.b16 %v943, %v943
        %v976 = vpack.c.b16 %v944, %v944
        %v977 = vpack.c.b16 %v945, %v945
        %v978 = vpack.c.b16 %v946, %v946
        %v979 = vpack.c.b16 %v947, %v947
        %v980 = vpack.c.b16 %v948, %v948
        %v981 = vpack.c.b16 %v949, %v949
        %v982 = vpack.c.b16 %v950, %v950
        %v983 = vpack.c.b16 %v951, %v951
        %v984 = vpack.c.b16 %v952, %v952
        %v985 = vpack.c.b16 %v953, %v953
        %v986 = vpack.c.b16 %v954, %v954
        %v987 = vpack.c.b16 %v955, %v955
        %v988 = vpack.c.b16 %v956, %v956
        %v989 = vpack.c.b16 %v957, %v957
        %v990 = vpack.c.b16 %v958, %v958
        %v991 = vpack.c.b16 %v959, %v959
        %v992 = vpack.c.b16 %v960, %v960
        %v993 = vpack.c.b16 %v961, %v961
        %v994 = vpack.c.b16 %v962, %v962
        %v995 = vpack.c.b16 %v963, %v963
        %v996 = vpack.c.b16 %v964, %v964
        %v997 = vpack.c.b16 %v965, %v965
        %v998 = vpack.c.b16 %v966, %v966
        %v999 = vpack.c.b16 %v967, %v967
        %v1000 = vpack.c.b16 %v968, %v968
        %v1001 = vpack.c.b16 %v969, %v969
        %v1002 = vpack.c.b16 %v970, %v970
        %v1003 = vpack.c.b16 %v971, %v971
        %v1004 = vpack.c.b16 %v972, %v972
        %1037 = vst [vmem:[#allocation3 + $0x8] sm:$0xf] %v973
        %1038 = vst [vmem:[#allocation3 + $0x2c] sm:$0xf] %v974
        %1039 = vst [vmem:[#allocation3 + $0x50] sm:$0xf] %v975
        %1040 = vst [vmem:[#allocation3 + $0x74] sm:$0xf] %v976
        %1041 = vst [vmem:[#allocation3 + $0x98] sm:$0xf] %v977
        %1042 = vst [vmem:[#allocation3 + $0xbc] sm:$0xf] %v978
        %1043 = vst [vmem:[#allocation3 + $0xe0] sm:$0xf] %v979
        %1044 = vst [vmem:[#allocation3 + $0x104] sm:$0xf] %v980
        %1045 = vst [vmem:[#allocation3 + $0x128] sm:$0xf] %v981
        %1046 = vst [vmem:[#allocation3 + $0x14c] sm:$0xf] %v982
        %1047 = vst [vmem:[#allocation3 + $0x170] sm:$0xf] %v983
        %1048 = vst [vmem:[#allocation3 + $0x194] sm:$0xf] %v984
        %1049 = vst [vmem:[#allocation3 + $0x1b8] sm:$0xf] %v985
        %1050 = vst [vmem:[#allocation3 + $0x1dc] sm:$0xf] %v986
        %1051 = vst [vmem:[#allocation3 + $0x200] sm:$0xf] %v987
        %1052 = vst [vmem:[#allocation3 + $0x224] sm:$0xf] %v988
        %1053 = vst [vmem:[#allocation3 + $0x248] sm:$0xf] %v989
        %1054 = vst [vmem:[#allocation3 + $0x26c] sm:$0xf] %v990
        %1055 = vst [vmem:[#allocation3 + $0x290] sm:$0xf] %v991
        %1056 = vst [vmem:[#allocation3 + $0x2b4] sm:$0xf] %v992
        %1057 = vst [vmem:[#allocation3 + $0x2d8] sm:$0xf] %v993
        %1058 = vst [vmem:[#allocation3 + $0x2fc] sm:$0xf] %v994
        %1059 = vst [vmem:[#allocation3 + $0x320] sm:$0xf] %v995
        %1060 = vst [vmem:[#allocation3 + $0x344] sm:$0xf] %v996
        %1061 = vst [vmem:[#allocation3 + $0x368] sm:$0xf] %v997
        %1062 = vst [vmem:[#allocation3 + $0x38c] sm:$0xf] %v998
        %1063 = vst [vmem:[#allocation3 + $0x3b0] sm:$0xf] %v999
        %1064 = vst [vmem:[#allocation3 + $0x3d4] sm:$0xf] %v1000
        %1065 = vst [vmem:[#allocation3 + $0x3f8] sm:$0xf] %v1001
        %1066 = vst [vmem:[#allocation3 + $0x41c] sm:$0xf] %v1002
        %1067 = vst [vmem:[#allocation3 + $0x440] sm:$0xf] %v1003
        %1068 = vst [vmem:[#allocation3 + $0x464] sm:$0xf] %v1004
        %v1069 = vld [vmem:[%s460] sm:$0xff]
        %v1070 = vld [vmem:[%s460 + $0x8] sm:$0xff]
        %v1071 = vld [vmem:[%s460 + $0x18] sm:$0xff]
        %v1072 = vld [vmem:[%s460 + $0x20] sm:$0xff]
        %v1073 = vld [vmem:[%s460 + $0x30] sm:$0xff]
        %v1074 = vld [vmem:[%s460 + $0x38] sm:$0xff]
        %v1075 = vld [vmem:[%s460 + $0x48] sm:$0xff]
        %v1076 = vld [vmem:[%s460 + $0x50] sm:$0xff]
        %v1077 = vld [vmem:[%s460 + $0x60] sm:$0xff]
        %v1078 = vld [vmem:[%s460 + $0x68] sm:$0xff]
        %v1079 = vld [vmem:[%s460 + $0x78] sm:$0xff]
        %v1080 = vld [vmem:[%s460 + $0x80] sm:$0xff]
        %v1081 = vld [vmem:[%s460 + $0x90] sm:$0xff]
        %v1082 = vld [vmem:[%s460 + $0x98] sm:$0xff]
        %v1083 = vld [vmem:[%s460 + $0xa8] sm:$0xff]
        %v1084 = vld [vmem:[%s460 + $0xb0] sm:$0xff]
        %v1085 = vld [vmem:[%s460 + $0xc0] sm:$0xff]
        %v1086 = vld [vmem:[%s460 + $0xc8] sm:$0xff]
        %v1087 = vld [vmem:[%s460 + $0xd8] sm:$0xff]
        %v1088 = vld [vmem:[%s460 + $0xe0] sm:$0xff]
        %v1089 = vld [vmem:[%s460 + $0xf0] sm:$0xff]
        %v1090 = vld [vmem:[%s460 + $0xf8] sm:$0xff]
        %v1091 = vld [vmem:[%s460 + $0x108] sm:$0xff]
        %v1092 = vld [vmem:[%s460 + $0x110] sm:$0xff]
        %v1093 = vld [vmem:[%s460 + $0x120] sm:$0xff]
        %v1094 = vld [vmem:[%s460 + $0x128] sm:$0xff]
        %v1095 = vld [vmem:[%s460 + $0x138] sm:$0xff]
        %v1096 = vld [vmem:[%s460 + $0x140] sm:$0xff]
        %v1097 = vld [vmem:[%s460 + $0x150] sm:$0xff]
        %v1098 = vld [vmem:[%s460 + $0x158] sm:$0xff]
        %v1099 = vld [vmem:[%s460 + $0x168] sm:$0xff]
        %v1100 = vld [vmem:[%s460 + $0x170] sm:$0xff]
        %v1101 = vpack.c.bf16 %v1070, %v1069
        %v1102 = vpack.c.bf16 %v1072, %v1071
        %v1103 = vpack.c.bf16 %v1074, %v1073
        %v1104 = vpack.c.bf16 %v1076, %v1075
        %v1105 = vpack.c.bf16 %v1078, %v1077
        %v1106 = vpack.c.bf16 %v1080, %v1079
        %v1107 = vpack.c.bf16 %v1082, %v1081
        %v1108 = vpack.c.bf16 %v1084, %v1083
        %v1109 = vpack.c.bf16 %v1086, %v1085
        %v1110 = vpack.c.bf16 %v1088, %v1087
        %v1111 = vpack.c.bf16 %v1090, %v1089
        %v1112 = vpack.c.bf16 %v1092, %v1091
        %v1113 = vpack.c.bf16 %v1094, %v1093
        %v1114 = vpack.c.bf16 %v1096, %v1095
        %v1115 = vpack.c.bf16 %v1098, %v1097
        %v1116 = vpack.c.bf16 %v1100, %v1099
        %v1133 = vunpack.c.l.b16 %v1101
        %v1134 = vunpack.c.h.b16 %v1101
        %v1135 = vunpack.c.l.b16 %v1102
        %v1136 = vunpack.c.h.b16 %v1102
        %v1137 = vunpack.c.l.b16 %v1103
        %v1138 = vunpack.c.h.b16 %v1103
        %v1139 = vunpack.c.l.b16 %v1104
        %v1140 = vunpack.c.h.b16 %v1104
        %v1141 = vunpack.c.l.b16 %v1105
        %v1142 = vunpack.c.h.b16 %v1105
        %v1143 = vunpack.c.l.b16 %v1106
        %v1144 = vunpack.c.h.b16 %v1106
        %v1145 = vunpack.c.l.b16 %v1107
        %v1146 = vunpack.c.h.b16 %v1107
        %v1147 = vunpack.c.l.b16 %v1108
        %v1148 = vunpack.c.h.b16 %v1108
        %v1149 = vunpack.c.l.b16 %v1109
        %v1150 = vunpack.c.h.b16 %v1109
        %v1151 = vunpack.c.l.b16 %v1110
        %v1152 = vunpack.c.h.b16 %v1110
        %v1153 = vunpack.c.l.b16 %v1111
        %v1154 = vunpack.c.h.b16 %v1111
        %v1155 = vunpack.c.l.b16 %v1112
        %v1156 = vunpack.c.h.b16 %v1112
        %v1157 = vunpack.c.l.b16 %v1113
        %v1158 = vunpack.c.h.b16 %v1113
        %v1159 = vunpack.c.l.b16 %v1114
        %v1160 = vunpack.c.h.b16 %v1114
        %v1161 = vunpack.c.l.b16 %v1115
        %v1162 = vunpack.c.h.b16 %v1115
        %v1163 = vunpack.c.l.b16 %v1116
        %v1164 = vunpack.c.h.b16 %v1116
        %v1165 = vpack.c.b16 %v1133, %v1133
        %v1166 = vpack.c.b16 %v1134, %v1134
        %v1167 = vpack.c.b16 %v1135, %v1135
        %v1168 = vpack.c.b16 %v1136, %v1136
        %v1169 = vpack.c.b16 %v1137, %v1137
        %v1170 = vpack.c.b16 %v1138, %v1138
        %v1171 = vpack.c.b16 %v1139, %v1139
        %v1172 = vpack.c.b16 %v1140, %v1140
        %v1173 = vpack.c.b16 %v1141, %v1141
        %v1174 = vpack.c.b16 %v1142, %v1142
        %v1175 = vpack.c.b16 %v1143, %v1143
        %v1176 = vpack.c.b16 %v1144, %v1144
        %v1177 = vpack.c.b16 %v1145, %v1145
        %v1178 = vpack.c.b16 %v1146, %v1146
        %v1179 = vpack.c.b16 %v1147, %v1147
        %v1180 = vpack.c.b16 %v1148, %v1148
        %v1181 = vpack.c.b16 %v1149, %v1149
        %v1182 = vpack.c.b16 %v1150, %v1150
        %v1183 = vpack.c.b16 %v1151, %v1151
        %v1184 = vpack.c.b16 %v1152, %v1152
        %v1185 = vpack.c.b16 %v1153, %v1153
        %v1186 = vpack.c.b16 %v1154, %v1154
        %v1187 = vpack.c.b16 %v1155, %v1155
        %v1188 = vpack.c.b16 %v1156, %v1156
        %v1189 = vpack.c.b16 %v1157, %v1157
        %v1190 = vpack.c.b16 %v1158, %v1158
        %v1191 = vpack.c.b16 %v1159, %v1159
        %v1192 = vpack.c.b16 %v1160, %v1160
        %v1193 = vpack.c.b16 %v1161, %v1161
        %v1194 = vpack.c.b16 %v1162, %v1162
        %v1195 = vpack.c.b16 %v1163, %v1163
        %v1196 = vpack.c.b16 %v1164, %v1164
        %1229 = vst [vmem:[#allocation3 + $0xc] sm:$0xf] %v1165
        %1230 = vst [vmem:[#allocation3 + $0x30] sm:$0xf] %v1166
        %1231 = vst [vmem:[#allocation3 + $0x54] sm:$0xf] %v1167
        %1232 = vst [vmem:[#allocation3 + $0x78] sm:$0xf] %v1168
        %1233 = vst [vmem:[#allocation3 + $0x9c] sm:$0xf] %v1169
        %1234 = vst [vmem:[#allocation3 + $0xc0] sm:$0xf] %v1170
        %1235 = vst [vmem:[#allocation3 + $0xe4] sm:$0xf] %v1171
        %1236 = vst [vmem:[#allocation3 + $0x108] sm:$0xf] %v1172
        %1237 = vst [vmem:[#allocation3 + $0x12c] sm:$0xf] %v1173
        %1238 = vst [vmem:[#allocation3 + $0x150] sm:$0xf] %v1174
        %1239 = vst [vmem:[#allocation3 + $0x174] sm:$0xf] %v1175
        %1240 = vst [vmem:[#allocation3 + $0x198] sm:$0xf] %v1176
        %1241 = vst [vmem:[#allocation3 + $0x1bc] sm:$0xf] %v1177
        %1242 = vst [vmem:[#allocation3 + $0x1e0] sm:$0xf] %v1178
        %1243 = vst [vmem:[#allocation3 + $0x204] sm:$0xf] %v1179
        %1244 = vst [vmem:[#allocation3 + $0x228] sm:$0xf] %v1180
        %1245 = vst [vmem:[#allocation3 + $0x24c] sm:$0xf] %v1181
        %1246 = vst [vmem:[#allocation3 + $0x270] sm:$0xf] %v1182
        %1247 = vst [vmem:[#allocation3 + $0x294] sm:$0xf] %v1183
        %1248 = vst [vmem:[#allocation3 + $0x2b8] sm:$0xf] %v1184
        %1249 = vst [vmem:[#allocation3 + $0x2dc] sm:$0xf] %v1185
        %1250 = vst [vmem:[#allocation3 + $0x300] sm:$0xf] %v1186
        %1251 = vst [vmem:[#allocation3 + $0x324] sm:$0xf] %v1187
        %1252 = vst [vmem:[#allocation3 + $0x348] sm:$0xf] %v1188
        %1253 = vst [vmem:[#allocation3 + $0x36c] sm:$0xf] %v1189
        %1254 = vst [vmem:[#allocation3 + $0x390] sm:$0xf] %v1190
        %1255 = vst [vmem:[#allocation3 + $0x3b4] sm:$0xf] %v1191
        %1256 = vst [vmem:[#allocation3 + $0x3d8] sm:$0xf] %v1192
        %1257 = vst [vmem:[#allocation3 + $0x3fc] sm:$0xf] %v1193
        %1258 = vst [vmem:[#allocation3 + $0x420] sm:$0xf] %v1194
        %1259 = vst [vmem:[#allocation3 + $0x444] sm:$0xf] %v1195
        %1260 = vst [vmem:[#allocation3 + $0x468] sm:$0xf] %v1196
        %v1261 = vld [vmem:[%s460 + $0x1] sm:$0xff]
        %v1262 = vld [vmem:[%s460 + $0x9] sm:$0xff]
        %v1263 = vld [vmem:[%s460 + $0x19] sm:$0xff]
        %v1264 = vld [vmem:[%s460 + $0x21] sm:$0xff]
        %v1265 = vld [vmem:[%s460 + $0x31] sm:$0xff]
        %v1266 = vld [vmem:[%s460 + $0x39] sm:$0xff]
        %v1267 = vld [vmem:[%s460 + $0x49] sm:$0xff]
        %v1268 = vld [vmem:[%s460 + $0x51] sm:$0xff]
        %v1269 = vld [vmem:[%s460 + $0x61] sm:$0xff]
        %v1270 = vld [vmem:[%s460 + $0x69] sm:$0xff]
        %v1271 = vld [vmem:[%s460 + $0x79] sm:$0xff]
        %v1272 = vld [vmem:[%s460 + $0x81] sm:$0xff]
        %v1273 = vld [vmem:[%s460 + $0x91] sm:$0xff]
        %v1274 = vld [vmem:[%s460 + $0x99] sm:$0xff]
        %v1275 = vld [vmem:[%s460 + $0xa9] sm:$0xff]
        %v1276 = vld [vmem:[%s460 + $0xb1] sm:$0xff]
        %v1277 = vld [vmem:[%s460 + $0xc1] sm:$0xff]
        %v1278 = vld [vmem:[%s460 + $0xc9] sm:$0xff]
        %v1279 = vld [vmem:[%s460 + $0xd9] sm:$0xff]
        %v1280 = vld [vmem:[%s460 + $0xe1] sm:$0xff]
        %v1281 = vld [vmem:[%s460 + $0xf1] sm:$0xff]
        %v1282 = vld [vmem:[%s460 + $0xf9] sm:$0xff]
        %v1283 = vld [vmem:[%s460 + $0x109] sm:$0xff]
        %v1284 = vld [vmem:[%s460 + $0x111] sm:$0xff]
        %v1285 = vld [vmem:[%s460 + $0x121] sm:$0xff]
        %v1286 = vld [vmem:[%s460 + $0x129] sm:$0xff]
        %v1287 = vld [vmem:[%s460 + $0x139] sm:$0xff]
        %v1288 = vld [vmem:[%s460 + $0x141] sm:$0xff]
        %v1289 = vld [vmem:[%s460 + $0x151] sm:$0xff]
        %v1290 = vld [vmem:[%s460 + $0x159] sm:$0xff]
        %v1291 = vld [vmem:[%s460 + $0x169] sm:$0xff]
        %v1292 = vld [vmem:[%s460 + $0x171] sm:$0xff]
        %v1293 = vpack.c.bf16 %v1262, %v1261
        %v1294 = vpack.c.bf16 %v1264, %v1263
        %v1295 = vpack.c.bf16 %v1266, %v1265
        %v1296 = vpack.c.bf16 %v1268, %v1267
        %v1297 = vpack.c.bf16 %v1270, %v1269
        %v1298 = vpack.c.bf16 %v1272, %v1271
        %v1299 = vpack.c.bf16 %v1274, %v1273
        %v1300 = vpack.c.bf16 %v1276, %v1275
        %v1301 = vpack.c.bf16 %v1278, %v1277
        %v1302 = vpack.c.bf16 %v1280, %v1279
        %v1303 = vpack.c.bf16 %v1282, %v1281
        %v1304 = vpack.c.bf16 %v1284, %v1283
        %v1305 = vpack.c.bf16 %v1286, %v1285
        %v1306 = vpack.c.bf16 %v1288, %v1287
        %v1307 = vpack.c.bf16 %v1290, %v1289
        %v1308 = vpack.c.bf16 %v1292, %v1291
        %v1325 = vunpack.c.l.b16 %v1293
        %v1326 = vunpack.c.h.b16 %v1293
        %v1327 = vunpack.c.l.b16 %v1294
        %v1328 = vunpack.c.h.b16 %v1294
        %v1329 = vunpack.c.l.b16 %v1295
        %v1330 = vunpack.c.h.b16 %v1295
        %v1331 = vunpack.c.l.b16 %v1296
        %v1332 = vunpack.c.h.b16 %v1296
        %v1333 = vunpack.c.l.b16 %v1297
        %v1334 = vunpack.c.h.b16 %v1297
        %v1335 = vunpack.c.l.b16 %v1298
        %v1336 = vunpack.c.h.b16 %v1298
        %v1337 = vunpack.c.l.b16 %v1299
        %v1338 = vunpack.c.h.b16 %v1299
        %v1339 = vunpack.c.l.b16 %v1300
        %v1340 = vunpack.c.h.b16 %v1300
        %v1341 = vunpack.c.l.b16 %v1301
        %v1342 = vunpack.c.h.b16 %v1301
        %v1343 = vunpack.c.l.b16 %v1302
        %v1344 = vunpack.c.h.b16 %v1302
        %v1345 = vunpack.c.l.b16 %v1303
        %v1346 = vunpack.c.h.b16 %v1303
        %v1347 = vunpack.c.l.b16 %v1304
        %v1348 = vunpack.c.h.b16 %v1304
        %v1349 = vunpack.c.l.b16 %v1305
        %v1350 = vunpack.c.h.b16 %v1305
        %v1351 = vunpack.c.l.b16 %v1306
        %v1352 = vunpack.c.h.b16 %v1306
        %v1353 = vunpack.c.l.b16 %v1307
        %v1354 = vunpack.c.h.b16 %v1307
        %v1355 = vunpack.c.l.b16 %v1308
        %v1356 = vunpack.c.h.b16 %v1308
        %v1357 = vpack.c.b16 %v1325, %v1325
        %v1358 = vpack.c.b16 %v1326, %v1326
        %v1359 = vpack.c.b16 %v1327, %v1327
        %v1360 = vpack.c.b16 %v1328, %v1328
        %v1361 = vpack.c.b16 %v1329, %v1329
        %v1362 = vpack.c.b16 %v1330, %v1330
        %v1363 = vpack.c.b16 %v1331, %v1331
        %v1364 = vpack.c.b16 %v1332, %v1332
        %v1365 = vpack.c.b16 %v1333, %v1333
        %v1366 = vpack.c.b16 %v1334, %v1334
        %v1367 = vpack.c.b16 %v1335, %v1335
        %v1368 = vpack.c.b16 %v1336, %v1336
        %v1369 = vpack.c.b16 %v1337, %v1337
        %v1370 = vpack.c.b16 %v1338, %v1338
        %v1371 = vpack.c.b16 %v1339, %v1339
        %v1372 = vpack.c.b16 %v1340, %v1340
        %v1373 = vpack.c.b16 %v1341, %v1341
        %v1374 = vpack.c.b16 %v1342, %v1342
        %v1375 = vpack.c.b16 %v1343, %v1343
        %v1376 = vpack.c.b16 %v1344, %v1344
        %v1377 = vpack.c.b16 %v1345, %v1345
        %v1378 = vpack.c.b16 %v1346, %v1346
        %v1379 = vpack.c.b16 %v1347, %v1347
        %v1380 = vpack.c.b16 %v1348, %v1348
        %v1381 = vpack.c.b16 %v1349, %v1349
        %v1382 = vpack.c.b16 %v1350, %v1350
        %v1383 = vpack.c.b16 %v1351, %v1351
        %v1384 = vpack.c.b16 %v1352, %v1352
        %v1385 = vpack.c.b16 %v1353, %v1353
        %v1386 = vpack.c.b16 %v1354, %v1354
        %v1387 = vpack.c.b16 %v1355, %v1355
        %v1388 = vpack.c.b16 %v1356, %v1356
        %1421 = vst [vmem:[#allocation3 + $0x10] sm:$0xf] %v1357
        %1422 = vst [vmem:[#allocation3 + $0x34] sm:$0xf] %v1358
        %1423 = vst [vmem:[#allocation3 + $0x58] sm:$0xf] %v1359
        %1424 = vst [vmem:[#allocation3 + $0x7c] sm:$0xf] %v1360
        %1425 = vst [vmem:[#allocation3 + $0xa0] sm:$0xf] %v1361
        %1426 = vst [vmem:[#allocation3 + $0xc4] sm:$0xf] %v1362
        %1427 = vst [vmem:[#allocation3 + $0xe8] sm:$0xf] %v1363
        %1428 = vst [vmem:[#allocation3 + $0x10c] sm:$0xf] %v1364
        %1429 = vst [vmem:[#allocation3 + $0x130] sm:$0xf] %v1365
        %1430 = vst [vmem:[#allocation3 + $0x154] sm:$0xf] %v1366
        %1431 = vst [vmem:[#allocation3 + $0x178] sm:$0xf] %v1367
        %1432 = vst [vmem:[#allocation3 + $0x19c] sm:$0xf] %v1368
        %1433 = vst [vmem:[#allocation3 + $0x1c0] sm:$0xf] %v1369
        %1434 = vst [vmem:[#allocation3 + $0x1e4] sm:$0xf] %v1370
        %1435 = vst [vmem:[#allocation3 + $0x208] sm:$0xf] %v1371
        %1436 = vst [vmem:[#allocation3 + $0x22c] sm:$0xf] %v1372
        %1437 = vst [vmem:[#allocation3 + $0x250] sm:$0xf] %v1373
        %1438 = vst [vmem:[#allocation3 + $0x274] sm:$0xf] %v1374
        %1439 = vst [vmem:[#allocation3 + $0x298] sm:$0xf] %v1375
        %1440 = vst [vmem:[#allocation3 + $0x2bc] sm:$0xf] %v1376
        %1441 = vst [vmem:[#allocation3 + $0x2e0] sm:$0xf] %v1377
        %1442 = vst [vmem:[#allocation3 + $0x304] sm:$0xf] %v1378
        %1443 = vst [vmem:[#allocation3 + $0x328] sm:$0xf] %v1379
        %1444 = vst [vmem:[#allocation3 + $0x34c] sm:$0xf] %v1380
        %1445 = vst [vmem:[#allocation3 + $0x370] sm:$0xf] %v1381
        %1446 = vst [vmem:[#allocation3 + $0x394] sm:$0xf] %v1382
        %1447 = vst [vmem:[#allocation3 + $0x3b8] sm:$0xf] %v1383
        %1448 = vst [vmem:[#allocation3 + $0x3dc] sm:$0xf] %v1384
        %1449 = vst [vmem:[#allocation3 + $0x400] sm:$0xf] %v1385
        %1450 = vst [vmem:[#allocation3 + $0x424] sm:$0xf] %v1386
        %1451 = vst [vmem:[#allocation3 + $0x448] sm:$0xf] %v1387
        %1452 = vst [vmem:[#allocation3 + $0x46c] sm:$0xf] %v1388
        %v1453 = vld [vmem:[%s460 + $0x2] sm:$0xff]
        %v1454 = vld [vmem:[%s460 + $0xa] sm:$0xff]
        %v1455 = vld [vmem:[%s460 + $0x1a] sm:$0xff]
        %v1456 = vld [vmem:[%s460 + $0x22] sm:$0xff]
        %v1457 = vld [vmem:[%s460 + $0x32] sm:$0xff]
        %v1458 = vld [vmem:[%s460 + $0x3a] sm:$0xff]
        %v1459 = vld [vmem:[%s460 + $0x4a] sm:$0xff]
        %v1460 = vld [vmem:[%s460 + $0x52] sm:$0xff]
        %v1461 = vld [vmem:[%s460 + $0x62] sm:$0xff]
        %v1462 = vld [vmem:[%s460 + $0x6a] sm:$0xff]
        %v1463 = vld [vmem:[%s460 + $0x7a] sm:$0xff]
        %v1464 = vld [vmem:[%s460 + $0x82] sm:$0xff]
        %v1465 = vld [vmem:[%s460 + $0x92] sm:$0xff]
        %v1466 = vld [vmem:[%s460 + $0x9a] sm:$0xff]
        %v1467 = vld [vmem:[%s460 + $0xaa] sm:$0xff]
        %v1468 = vld [vmem:[%s460 + $0xb2] sm:$0xff]
        %v1469 = vld [vmem:[%s460 + $0xc2] sm:$0xff]
        %v1470 = vld [vmem:[%s460 + $0xca] sm:$0xff]
        %v1471 = vld [vmem:[%s460 + $0xda] sm:$0xff]
        %v1472 = vld [vmem:[%s460 + $0xe2] sm:$0xff]
        %v1473 = vld [vmem:[%s460 + $0xf2] sm:$0xff]
        %v1474 = vld [vmem:[%s460 + $0xfa] sm:$0xff]
        %v1475 = vld [vmem:[%s460 + $0x10a] sm:$0xff]
        %v1476 = vld [vmem:[%s460 + $0x112] sm:$0xff]
        %v1477 = vld [vmem:[%s460 + $0x122] sm:$0xff]
        %v1478 = vld [vmem:[%s460 + $0x12a] sm:$0xff]
        %v1479 = vld [vmem:[%s460 + $0x13a] sm:$0xff]
        %v1480 = vld [vmem:[%s460 + $0x142] sm:$0xff]
        %v1481 = vld [vmem:[%s460 + $0x152] sm:$0xff]
        %v1482 = vld [vmem:[%s460 + $0x15a] sm:$0xff]
        %v1483 = vld [vmem:[%s460 + $0x16a] sm:$0xff]
        %v1484 = vld [vmem:[%s460 + $0x172] sm:$0xff]
        %v1485 = vpack.c.bf16 %v1454, %v1453
        %v1486 = vpack.c.bf16 %v1456, %v1455
        %v1487 = vpack.c.bf16 %v1458, %v1457
        %v1488 = vpack.c.bf16 %v1460, %v1459
        %v1489 = vpack.c.bf16 %v1462, %v1461
        %v1490 = vpack.c.bf16 %v1464, %v1463
        %v1491 = vpack.c.bf16 %v1466, %v1465
        %v1492 = vpack.c.bf16 %v1468, %v1467
        %v1493 = vpack.c.bf16 %v1470, %v1469
        %v1494 = vpack.c.bf16 %v1472, %v1471
        %v1495 = vpack.c.bf16 %v1474, %v1473
        %v1496 = vpack.c.bf16 %v1476, %v1475
        %v1497 = vpack.c.bf16 %v1478, %v1477
        %v1498 = vpack.c.bf16 %v1480, %v1479
        %v1499 = vpack.c.bf16 %v1482, %v1481
        %v1500 = vpack.c.bf16 %v1484, %v1483
        %v1517 = vunpack.c.l.b16 %v1485
        %v1518 = vunpack.c.h.b16 %v1485
        %v1519 = vunpack.c.l.b16 %v1486
        %v1520 = vunpack.c.h.b16 %v1486
        %v1521 = vunpack.c.l.b16 %v1487
        %v1522 = vunpack.c.h.b16 %v1487
        %v1523 = vunpack.c.l.b16 %v1488
        %v1524 = vunpack.c.h.b16 %v1488
        %v1525 = vunpack.c.l.b16 %v1489
        %v1526 = vunpack.c.h.b16 %v1489
        %v1527 = vunpack.c.l.b16 %v1490
        %v1528 = vunpack.c.h.b16 %v1490
        %v1529 = vunpack.c.l.b16 %v1491
        %v1530 = vunpack.c.h.b16 %v1491
        %v1531 = vunpack.c.l.b16 %v1492
        %v1532 = vunpack.c.h.b16 %v1492
        %v1533 = vunpack.c.l.b16 %v1493
        %v1534 = vunpack.c.h.b16 %v1493
        %v1535 = vunpack.c.l.b16 %v1494
        %v1536 = vunpack.c.h.b16 %v1494
        %v1537 = vunpack.c.l.b16 %v1495
        %v1538 = vunpack.c.h.b16 %v1495
        %v1539 = vunpack.c.l.b16 %v1496
        %v1540 = vunpack.c.h.b16 %v1496
        %v1541 = vunpack.c.l.b16 %v1497
        %v1542 = vunpack.c.h.b16 %v1497
        %v1543 = vunpack.c.l.b16 %v1498
        %v1544 = vunpack.c.h.b16 %v1498
        %v1545 = vunpack.c.l.b16 %v1499
        %v1546 = vunpack.c.h.b16 %v1499
        %v1547 = vunpack.c.l.b16 %v1500
        %v1548 = vunpack.c.h.b16 %v1500
        %v1549 = vpack.c.b16 %v1517, %v1517
        %v1550 = vpack.c.b16 %v1518, %v1518
        %v1551 = vpack.c.b16 %v1519, %v1519
        %v1552 = vpack.c.b16 %v1520, %v1520
        %v1553 = vpack.c.b16 %v1521, %v1521
        %v1554 = vpack.c.b16 %v1522, %v1522
        %v1555 = vpack.c.b16 %v1523, %v1523
        %v1556 = vpack.c.b16 %v1524, %v1524
        %v1557 = vpack.c.b16 %v1525, %v1525
        %v1558 = vpack.c.b16 %v1526, %v1526
        %v1559 = vpack.c.b16 %v1527, %v1527
        %v1560 = vpack.c.b16 %v1528, %v1528
        %v1561 = vpack.c.b16 %v1529, %v1529
        %v1562 = vpack.c.b16 %v1530, %v1530
        %v1563 = vpack.c.b16 %v1531, %v1531
        %v1564 = vpack.c.b16 %v1532, %v1532
        %v1565 = vpack.c.b16 %v1533, %v1533
        %v1566 = vpack.c.b16 %v1534, %v1534
        %v1567 = vpack.c.b16 %v1535, %v1535
        %v1568 = vpack.c.b16 %v1536, %v1536
        %v1569 = vpack.c.b16 %v1537, %v1537
        %v1570 = vpack.c.b16 %v1538, %v1538
        %v1571 = vpack.c.b16 %v1539, %v1539
        %v1572 = vpack.c.b16 %v1540, %v1540
        %v1573 = vpack.c.b16 %v1541, %v1541
        %v1574 = vpack.c.b16 %v1542, %v1542
        %v1575 = vpack.c.b16 %v1543, %v1543
        %v1576 = vpack.c.b16 %v1544, %v1544
        %v1577 = vpack.c.b16 %v1545, %v1545
        %v1578 = vpack.c.b16 %v1546, %v1546
        %v1579 = vpack.c.b16 %v1547, %v1547
        %v1580 = vpack.c.b16 %v1548, %v1548
        %1613 = vst [vmem:[#allocation3 + $0x14] sm:$0xf] %v1549
        %1614 = vst [vmem:[#allocation3 + $0x38] sm:$0xf] %v1550
        %1615 = vst [vmem:[#allocation3 + $0x5c] sm:$0xf] %v1551
        %1616 = vst [vmem:[#allocation3 + $0x80] sm:$0xf] %v1552
        %1617 = vst [vmem:[#allocation3 + $0xa4] sm:$0xf] %v1553
        %1618 = vst [vmem:[#allocation3 + $0xc8] sm:$0xf] %v1554
        %1619 = vst [vmem:[#allocation3 + $0xec] sm:$0xf] %v1555
        %1620 = vst [vmem:[#allocation3 + $0x110] sm:$0xf] %v1556
        %1621 = vst [vmem:[#allocation3 + $0x134] sm:$0xf] %v1557
        %1622 = vst [vmem:[#allocation3 + $0x158] sm:$0xf] %v1558
        %1623 = vst [vmem:[#allocation3 + $0x17c] sm:$0xf] %v1559
        %1624 = vst [vmem:[#allocation3 + $0x1a0] sm:$0xf] %v1560
        %1625 = vst [vmem:[#allocation3 + $0x1c4] sm:$0xf] %v1561
        %1626 = vst [vmem:[#allocation3 + $0x1e8] sm:$0xf] %v1562
        %1627 = vst [vmem:[#allocation3 + $0x20c] sm:$0xf] %v1563
        %1628 = vst [vmem:[#allocation3 + $0x230] sm:$0xf] %v1564
        %1629 = vst [vmem:[#allocation3 + $0x254] sm:$0xf] %v1565
        %1630 = vst [vmem:[#allocation3 + $0x278] sm:$0xf] %v1566
        %1631 = vst [vmem:[#allocation3 + $0x29c] sm:$0xf] %v1567
        %1632 = vst [vmem:[#allocation3 + $0x2c0] sm:$0xf] %v1568
        %1633 = vst [vmem:[#allocation3 + $0x2e4] sm:$0xf] %v1569
        %1634 = vst [vmem:[#allocation3 + $0x308] sm:$0xf] %v1570
        %1635 = vst [vmem:[#allocation3 + $0x32c] sm:$0xf] %v1571
        %1636 = vst [vmem:[#allocation3 + $0x350] sm:$0xf] %v1572
        %1637 = vst [vmem:[#allocation3 + $0x374] sm:$0xf] %v1573
        %1638 = vst [vmem:[#allocation3 + $0x398] sm:$0xf] %v1574
        %1639 = vst [vmem:[#allocation3 + $0x3bc] sm:$0xf] %v1575
        %1640 = vst [vmem:[#allocation3 + $0x3e0] sm:$0xf] %v1576
        %1641 = vst [vmem:[#allocation3 + $0x404] sm:$0xf] %v1577
        %1642 = vst [vmem:[#allocation3 + $0x428] sm:$0xf] %v1578
        %1643 = vst [vmem:[#allocation3 + $0x44c] sm:$0xf] %v1579
        %1644 = vst [vmem:[#allocation3 + $0x470] sm:$0xf] %v1580
        %s1645 = scalar_lea.vmem [#allocation2], 48
        %v1646 = vld [vmem:[%s1645] sm:$0xff]
        %v1647 = vld [vmem:[%s1645 + $0x8] sm:$0xff]
        %v1648 = vld [vmem:[%s1645 + $0x18] sm:$0xff]
        %v1649 = vld [vmem:[%s1645 + $0x20] sm:$0xff]
        %v1650 = vld [vmem:[%s1645 + $0x30] sm:$0xff]
        %v1651 = vld [vmem:[%s1645 + $0x38] sm:$0xff]
        %v1652 = vld [vmem:[%s1645 + $0x48] sm:$0xff]
        %v1653 = vld [vmem:[%s1645 + $0x50] sm:$0xff]
        %v1654 = vld [vmem:[%s1645 + $0x60] sm:$0xff]
        %v1655 = vld [vmem:[%s1645 + $0x68] sm:$0xff]
        %v1656 = vld [vmem:[%s1645 + $0x78] sm:$0xff]
        %v1657 = vld [vmem:[%s1645 + $0x80] sm:$0xff]
        %v1658 = vld [vmem:[%s1645 + $0x90] sm:$0xff]
        %v1659 = vld [vmem:[%s1645 + $0x98] sm:$0xff]
        %v1660 = vld [vmem:[%s1645 + $0xa8] sm:$0xff]
        %v1661 = vld [vmem:[%s1645 + $0xb0] sm:$0xff]
        %v1662 = vld [vmem:[%s1645 + $0xc0] sm:$0xff]
        %v1663 = vld [vmem:[%s1645 + $0xc8] sm:$0xff]
        %v1664 = vld [vmem:[%s1645 + $0xd8] sm:$0xff]
        %v1665 = vld [vmem:[%s1645 + $0xe0] sm:$0xff]
        %v1666 = vld [vmem:[%s1645 + $0xf0] sm:$0xff]
        %v1667 = vld [vmem:[%s1645 + $0xf8] sm:$0xff]
        %v1668 = vld [vmem:[%s1645 + $0x108] sm:$0xff]
        %v1669 = vld [vmem:[%s1645 + $0x110] sm:$0xff]
        %v1670 = vld [vmem:[%s1645 + $0x120] sm:$0xff]
        %v1671 = vld [vmem:[%s1645 + $0x128] sm:$0xff]
        %v1672 = vld [vmem:[%s1645 + $0x138] sm:$0xff]
        %v1673 = vld [vmem:[%s1645 + $0x140] sm:$0xff]
        %v1674 = vld [vmem:[%s1645 + $0x150] sm:$0xff]
        %v1675 = vld [vmem:[%s1645 + $0x158] sm:$0xff]
        %v1676 = vld [vmem:[%s1645 + $0x168] sm:$0xff]
        %v1677 = vld [vmem:[%s1645 + $0x170] sm:$0xff]
        %v1678 = vpack.c.bf16 %v1647, %v1646
        %v1679 = vpack.c.bf16 %v1649, %v1648
        %v1680 = vpack.c.bf16 %v1651, %v1650
        %v1681 = vpack.c.bf16 %v1653, %v1652
        %v1682 = vpack.c.bf16 %v1655, %v1654
        %v1683 = vpack.c.bf16 %v1657, %v1656
        %v1684 = vpack.c.bf16 %v1659, %v1658
        %v1685 = vpack.c.bf16 %v1661, %v1660
        %v1686 = vpack.c.bf16 %v1663, %v1662
        %v1687 = vpack.c.bf16 %v1665, %v1664
        %v1688 = vpack.c.bf16 %v1667, %v1666
        %v1689 = vpack.c.bf16 %v1669, %v1668
        %v1690 = vpack.c.bf16 %v1671, %v1670
        %v1691 = vpack.c.bf16 %v1673, %v1672
        %v1692 = vpack.c.bf16 %v1675, %v1674
        %v1693 = vpack.c.bf16 %v1677, %v1676
        %v1710 = vunpack.c.l.b16 %v1678
        %v1711 = vunpack.c.h.b16 %v1678
        %v1712 = vunpack.c.l.b16 %v1679
        %v1713 = vunpack.c.h.b16 %v1679
        %v1714 = vunpack.c.l.b16 %v1680
        %v1715 = vunpack.c.h.b16 %v1680
        %v1716 = vunpack.c.l.b16 %v1681
        %v1717 = vunpack.c.h.b16 %v1681
        %v1718 = vunpack.c.l.b16 %v1682
        %v1719 = vunpack.c.h.b16 %v1682
        %v1720 = vunpack.c.l.b16 %v1683
        %v1721 = vunpack.c.h.b16 %v1683
        %v1722 = vunpack.c.l.b16 %v1684
        %v1723 = vunpack.c.h.b16 %v1684
        %v1724 = vunpack.c.l.b16 %v1685
        %v1725 = vunpack.c.h.b16 %v1685
        %v1726 = vunpack.c.l.b16 %v1686
        %v1727 = vunpack.c.h.b16 %v1686
        %v1728 = vunpack.c.l.b16 %v1687
        %v1729 = vunpack.c.h.b16 %v1687
        %v1730 = vunpack.c.l.b16 %v1688
        %v1731 = vunpack.c.h.b16 %v1688
        %v1732 = vunpack.c.l.b16 %v1689
        %v1733 = vunpack.c.h.b16 %v1689
        %v1734 = vunpack.c.l.b16 %v1690
        %v1735 = vunpack.c.h.b16 %v1690
        %v1736 = vunpack.c.l.b16 %v1691
        %v1737 = vunpack.c.h.b16 %v1691
        %v1738 = vunpack.c.l.b16 %v1692
        %v1739 = vunpack.c.h.b16 %v1692
        %v1740 = vunpack.c.l.b16 %v1693
        %v1741 = vunpack.c.h.b16 %v1693
        %v1742 = vpack.c.b16 %v1710, %v1710
        %v1743 = vpack.c.b16 %v1711, %v1711
        %v1744 = vpack.c.b16 %v1712, %v1712
        %v1745 = vpack.c.b16 %v1713, %v1713
        %v1746 = vpack.c.b16 %v1714, %v1714
        %v1747 = vpack.c.b16 %v1715, %v1715
        %v1748 = vpack.c.b16 %v1716, %v1716
        %v1749 = vpack.c.b16 %v1717, %v1717
        %v1750 = vpack.c.b16 %v1718, %v1718
        %v1751 = vpack.c.b16 %v1719, %v1719
        %v1752 = vpack.c.b16 %v1720, %v1720
        %v1753 = vpack.c.b16 %v1721, %v1721
        %v1754 = vpack.c.b16 %v1722, %v1722
        %v1755 = vpack.c.b16 %v1723, %v1723
        %v1756 = vpack.c.b16 %v1724, %v1724
        %v1757 = vpack.c.b16 %v1725, %v1725
        %v1758 = vpack.c.b16 %v1726, %v1726
        %v1759 = vpack.c.b16 %v1727, %v1727
        %v1760 = vpack.c.b16 %v1728, %v1728
        %v1761 = vpack.c.b16 %v1729, %v1729
        %v1762 = vpack.c.b16 %v1730, %v1730
        %v1763 = vpack.c.b16 %v1731, %v1731
        %v1764 = vpack.c.b16 %v1732, %v1732
        %v1765 = vpack.c.b16 %v1733, %v1733
        %v1766 = vpack.c.b16 %v1734, %v1734
        %v1767 = vpack.c.b16 %v1735, %v1735
        %v1768 = vpack.c.b16 %v1736, %v1736
        %v1769 = vpack.c.b16 %v1737, %v1737
        %v1770 = vpack.c.b16 %v1738, %v1738
        %v1771 = vpack.c.b16 %v1739, %v1739
        %v1772 = vpack.c.b16 %v1740, %v1740
        %v1773 = vpack.c.b16 %v1741, %v1741
        %1806 = vst [vmem:[#allocation3 + $0x18] sm:$0xf] %v1742
        %1807 = vst [vmem:[#allocation3 + $0x3c] sm:$0xf] %v1743
        %1808 = vst [vmem:[#allocation3 + $0x60] sm:$0xf] %v1744
        %1809 = vst [vmem:[#allocation3 + $0x84] sm:$0xf] %v1745
        %1810 = vst [vmem:[#allocation3 + $0xa8] sm:$0xf] %v1746
        %1811 = vst [vmem:[#allocation3 + $0xcc] sm:$0xf] %v1747
        %1812 = vst [vmem:[#allocation3 + $0xf0] sm:$0xf] %v1748
        %1813 = vst [vmem:[#allocation3 + $0x114] sm:$0xf] %v1749
        %1814 = vst [vmem:[#allocation3 + $0x138] sm:$0xf] %v1750
        %1815 = vst [vmem:[#allocation3 + $0x15c] sm:$0xf] %v1751
        %1816 = vst [vmem:[#allocation3 + $0x180] sm:$0xf] %v1752
        %1817 = vst [vmem:[#allocation3 + $0x1a4] sm:$0xf] %v1753
        %1818 = vst [vmem:[#allocation3 + $0x1c8] sm:$0xf] %v1754
        %1819 = vst [vmem:[#allocation3 + $0x1ec] sm:$0xf] %v1755
        %1820 = vst [vmem:[#allocation3 + $0x210] sm:$0xf] %v1756
        %1821 = vst [vmem:[#allocation3 + $0x234] sm:$0xf] %v1757
        %1822 = vst [vmem:[#allocation3 + $0x258] sm:$0xf] %v1758
        %1823 = vst [vmem:[#allocation3 + $0x27c] sm:$0xf] %v1759
        %1824 = vst [vmem:[#allocation3 + $0x2a0] sm:$0xf] %v1760
        %1825 = vst [vmem:[#allocation3 + $0x2c4] sm:$0xf] %v1761
        %1826 = vst [vmem:[#allocation3 + $0x2e8] sm:$0xf] %v1762
        %1827 = vst [vmem:[#allocation3 + $0x30c] sm:$0xf] %v1763
        %1828 = vst [vmem:[#allocation3 + $0x330] sm:$0xf] %v1764
        %1829 = vst [vmem:[#allocation3 + $0x354] sm:$0xf] %v1765
        %1830 = vst [vmem:[#allocation3 + $0x378] sm:$0xf] %v1766
        %1831 = vst [vmem:[#allocation3 + $0x39c] sm:$0xf] %v1767
        %1832 = vst [vmem:[#allocation3 + $0x3c0] sm:$0xf] %v1768
        %1833 = vst [vmem:[#allocation3 + $0x3e4] sm:$0xf] %v1769
        %1834 = vst [vmem:[#allocation3 + $0x408] sm:$0xf] %v1770
        %1835 = vst [vmem:[#allocation3 + $0x42c] sm:$0xf] %v1771
        %1836 = vst [vmem:[#allocation3 + $0x450] sm:$0xf] %v1772
        %1837 = vst [vmem:[#allocation3 + $0x474] sm:$0xf] %v1773
        %v1838 = vld [vmem:[%s1645 + $0x1] sm:$0xff]
        %v1839 = vld [vmem:[%s1645 + $0x9] sm:$0xff]
        %v1840 = vld [vmem:[%s1645 + $0x19] sm:$0xff]
        %v1841 = vld [vmem:[%s1645 + $0x21] sm:$0xff]
        %v1842 = vld [vmem:[%s1645 + $0x31] sm:$0xff]
        %v1843 = vld [vmem:[%s1645 + $0x39] sm:$0xff]
        %v1844 = vld [vmem:[%s1645 + $0x49] sm:$0xff]
        %v1845 = vld [vmem:[%s1645 + $0x51] sm:$0xff]
        %v1846 = vld [vmem:[%s1645 + $0x61] sm:$0xff]
        %v1847 = vld [vmem:[%s1645 + $0x69] sm:$0xff]
        %v1848 = vld [vmem:[%s1645 + $0x79] sm:$0xff]
        %v1849 = vld [vmem:[%s1645 + $0x81] sm:$0xff]
        %v1850 = vld [vmem:[%s1645 + $0x91] sm:$0xff]
        %v1851 = vld [vmem:[%s1645 + $0x99] sm:$0xff]
        %v1852 = vld [vmem:[%s1645 + $0xa9] sm:$0xff]
        %v1853 = vld [vmem:[%s1645 + $0xb1] sm:$0xff]
        %v1854 = vld [vmem:[%s1645 + $0xc1] sm:$0xff]
        %v1855 = vld [vmem:[%s1645 + $0xc9] sm:$0xff]
        %v1856 = vld [vmem:[%s1645 + $0xd9] sm:$0xff]
        %v1857 = vld [vmem:[%s1645 + $0xe1] sm:$0xff]
        %v1858 = vld [vmem:[%s1645 + $0xf1] sm:$0xff]
        %v1859 = vld [vmem:[%s1645 + $0xf9] sm:$0xff]
        %v1860 = vld [vmem:[%s1645 + $0x109] sm:$0xff]
        %v1861 = vld [vmem:[%s1645 + $0x111] sm:$0xff]
        %v1862 = vld [vmem:[%s1645 + $0x121] sm:$0xff]
        %v1863 = vld [vmem:[%s1645 + $0x129] sm:$0xff]
        %v1864 = vld [vmem:[%s1645 + $0x139] sm:$0xff]
        %v1865 = vld [vmem:[%s1645 + $0x141] sm:$0xff]
        %v1866 = vld [vmem:[%s1645 + $0x151] sm:$0xff]
        %v1867 = vld [vmem:[%s1645 + $0x159] sm:$0xff]
        %v1868 = vld [vmem:[%s1645 + $0x169] sm:$0xff]
        %v1869 = vld [vmem:[%s1645 + $0x171] sm:$0xff]
        %v1870 = vpack.c.bf16 %v1839, %v1838
        %v1871 = vpack.c.bf16 %v1841, %v1840
        %v1872 = vpack.c.bf16 %v1843, %v1842
        %v1873 = vpack.c.bf16 %v1845, %v1844
        %v1874 = vpack.c.bf16 %v1847, %v1846
        %v1875 = vpack.c.bf16 %v1849, %v1848
        %v1876 = vpack.c.bf16 %v1851, %v1850
        %v1877 = vpack.c.bf16 %v1853, %v1852
        %v1878 = vpack.c.bf16 %v1855, %v1854
        %v1879 = vpack.c.bf16 %v1857, %v1856
        %v1880 = vpack.c.bf16 %v1859, %v1858
        %v1881 = vpack.c.bf16 %v1861, %v1860
        %v1882 = vpack.c.bf16 %v1863, %v1862
        %v1883 = vpack.c.bf16 %v1865, %v1864
        %v1884 = vpack.c.bf16 %v1867, %v1866
        %v1885 = vpack.c.bf16 %v1869, %v1868
        %v1902 = vunpack.c.l.b16 %v1870
        %v1903 = vunpack.c.h.b16 %v1870
        %v1904 = vunpack.c.l.b16 %v1871
        %v1905 = vunpack.c.h.b16 %v1871
        %v1906 = vunpack.c.l.b16 %v1872
        %v1907 = vunpack.c.h.b16 %v1872
        %v1908 = vunpack.c.l.b16 %v1873
        %v1909 = vunpack.c.h.b16 %v1873
        %v1910 = vunpack.c.l.b16 %v1874
        %v1911 = vunpack.c.h.b16 %v1874
        %v1912 = vunpack.c.l.b16 %v1875
        %v1913 = vunpack.c.h.b16 %v1875
        %v1914 = vunpack.c.l.b16 %v1876
        %v1915 = vunpack.c.h.b16 %v1876
        %v1916 = vunpack.c.l.b16 %v1877
        %v1917 = vunpack.c.h.b16 %v1877
        %v1918 = vunpack.c.l.b16 %v1878
        %v1919 = vunpack.c.h.b16 %v1878
        %v1920 = vunpack.c.l.b16 %v1879
        %v1921 = vunpack.c.h.b16 %v1879
        %v1922 = vunpack.c.l.b16 %v1880
        %v1923 = vunpack.c.h.b16 %v1880
        %v1924 = vunpack.c.l.b16 %v1881
        %v1925 = vunpack.c.h.b16 %v1881
        %v1926 = vunpack.c.l.b16 %v1882
        %v1927 = vunpack.c.h.b16 %v1882
        %v1928 = vunpack.c.l.b16 %v1883
        %v1929 = vunpack.c.h.b16 %v1883
        %v1930 = vunpack.c.l.b16 %v1884
        %v1931 = vunpack.c.h.b16 %v1884
        %v1932 = vunpack.c.l.b16 %v1885
        %v1933 = vunpack.c.h.b16 %v1885
        %v1934 = vpack.c.b16 %v1902, %v1902
        %v1935 = vpack.c.b16 %v1903, %v1903
        %v1936 = vpack.c.b16 %v1904, %v1904
        %v1937 = vpack.c.b16 %v1905, %v1905
        %v1938 = vpack.c.b16 %v1906, %v1906
        %v1939 = vpack.c.b16 %v1907, %v1907
        %v1940 = vpack.c.b16 %v1908, %v1908
        %v1941 = vpack.c.b16 %v1909, %v1909
        %v1942 = vpack.c.b16 %v1910, %v1910
        %v1943 = vpack.c.b16 %v1911, %v1911
        %v1944 = vpack.c.b16 %v1912, %v1912
        %v1945 = vpack.c.b16 %v1913, %v1913
        %v1946 = vpack.c.b16 %v1914, %v1914
        %v1947 = vpack.c.b16 %v1915, %v1915
        %v1948 = vpack.c.b16 %v1916, %v1916
        %v1949 = vpack.c.b16 %v1917, %v1917
        %v1950 = vpack.c.b16 %v1918, %v1918
        %v1951 = vpack.c.b16 %v1919, %v1919
        %v1952 = vpack.c.b16 %v1920, %v1920
        %v1953 = vpack.c.b16 %v1921, %v1921
        %v1954 = vpack.c.b16 %v1922, %v1922
        %v1955 = vpack.c.b16 %v1923, %v1923
        %v1956 = vpack.c.b16 %v1924, %v1924
        %v1957 = vpack.c.b16 %v1925, %v1925
        %v1958 = vpack.c.b16 %v1926, %v1926
        %v1959 = vpack.c.b16 %v1927, %v1927
        %v1960 = vpack.c.b16 %v1928, %v1928
        %v1961 = vpack.c.b16 %v1929, %v1929
        %v1962 = vpack.c.b16 %v1930, %v1930
        %v1963 = vpack.c.b16 %v1931, %v1931
        %v1964 = vpack.c.b16 %v1932, %v1932
        %v1965 = vpack.c.b16 %v1933, %v1933
        %1998 = vst [vmem:[#allocation3 + $0x1c] sm:$0xf] %v1934
        %1999 = vst [vmem:[#allocation3 + $0x40] sm:$0xf] %v1935
        %2000 = vst [vmem:[#allocation3 + $0x64] sm:$0xf] %v1936
        %2001 = vst [vmem:[#allocation3 + $0x88] sm:$0xf] %v1937
        %2002 = vst [vmem:[#allocation3 + $0xac] sm:$0xf] %v1938
        %2003 = vst [vmem:[#allocation3 + $0xd0] sm:$0xf] %v1939
        %2004 = vst [vmem:[#allocation3 + $0xf4] sm:$0xf] %v1940
        %2005 = vst [vmem:[#allocation3 + $0x118] sm:$0xf] %v1941
        %2006 = vst [vmem:[#allocation3 + $0x13c] sm:$0xf] %v1942
        %2007 = vst [vmem:[#allocation3 + $0x160] sm:$0xf] %v1943
        %2008 = vst [vmem:[#allocation3 + $0x184] sm:$0xf] %v1944
        %2009 = vst [vmem:[#allocation3 + $0x1a8] sm:$0xf] %v1945
        %2010 = vst [vmem:[#allocation3 + $0x1cc] sm:$0xf] %v1946
        %2011 = vst [vmem:[#allocation3 + $0x1f0] sm:$0xf] %v1947
        %2012 = vst [vmem:[#allocation3 + $0x214] sm:$0xf] %v1948
        %2013 = vst [vmem:[#allocation3 + $0x238] sm:$0xf] %v1949
        %2014 = vst [vmem:[#allocation3 + $0x25c] sm:$0xf] %v1950
        %2015 = vst [vmem:[#allocation3 + $0x280] sm:$0xf] %v1951
        %2016 = vst [vmem:[#allocation3 + $0x2a4] sm:$0xf] %v1952
        %2017 = vst [vmem:[#allocation3 + $0x2c8] sm:$0xf] %v1953
        %2018 = vst [vmem:[#allocation3 + $0x2ec] sm:$0xf] %v1954
        %2019 = vst [vmem:[#allocation3 + $0x310] sm:$0xf] %v1955
        %2020 = vst [vmem:[#allocation3 + $0x334] sm:$0xf] %v1956
        %2021 = vst [vmem:[#allocation3 + $0x358] sm:$0xf] %v1957
        %2022 = vst [vmem:[#allocation3 + $0x37c] sm:$0xf] %v1958
        %2023 = vst [vmem:[#allocation3 + $0x3a0] sm:$0xf] %v1959
        %2024 = vst [vmem:[#allocation3 + $0x3c4] sm:$0xf] %v1960
        %2025 = vst [vmem:[#allocation3 + $0x3e8] sm:$0xf] %v1961
        %2026 = vst [vmem:[#allocation3 + $0x40c] sm:$0xf] %v1962
        %2027 = vst [vmem:[#allocation3 + $0x430] sm:$0xf] %v1963
        %2028 = vst [vmem:[#allocation3 + $0x454] sm:$0xf] %v1964
        %2029 = vst [vmem:[#allocation3 + $0x478] sm:$0xf] %v1965
        %v2030 = vld [vmem:[%s1645 + $0x2] sm:$0xff]
        %v2031 = vld [vmem:[%s1645 + $0xa] sm:$0xff]
        %v2032 = vld [vmem:[%s1645 + $0x1a] sm:$0xff]
        %v2033 = vld [vmem:[%s1645 + $0x22] sm:$0xff]
        %v2034 = vld [vmem:[%s1645 + $0x32] sm:$0xff]
        %v2035 = vld [vmem:[%s1645 + $0x3a] sm:$0xff]
        %v2036 = vld [vmem:[%s1645 + $0x4a] sm:$0xff]
        %v2037 = vld [vmem:[%s1645 + $0x52] sm:$0xff]
        %v2038 = vld [vmem:[%s1645 + $0x62] sm:$0xff]
        %v2039 = vld [vmem:[%s1645 + $0x6a] sm:$0xff]
        %v2040 = vld [vmem:[%s1645 + $0x7a] sm:$0xff]
        %v2041 = vld [vmem:[%s1645 + $0x82] sm:$0xff]
        %v2042 = vld [vmem:[%s1645 + $0x92] sm:$0xff]
        %v2043 = vld [vmem:[%s1645 + $0x9a] sm:$0xff]
        %v2044 = vld [vmem:[%s1645 + $0xaa] sm:$0xff]
        %v2045 = vld [vmem:[%s1645 + $0xb2] sm:$0xff]
        %v2046 = vld [vmem:[%s1645 + $0xc2] sm:$0xff]
        %v2047 = vld [vmem:[%s1645 + $0xca] sm:$0xff]
        %v2048 = vld [vmem:[%s1645 + $0xda] sm:$0xff]
        %v2049 = vld [vmem:[%s1645 + $0xe2] sm:$0xff]
        %v2050 = vld [vmem:[%s1645 + $0xf2] sm:$0xff]
        %v2051 = vld [vmem:[%s1645 + $0xfa] sm:$0xff]
        %v2052 = vld [vmem:[%s1645 + $0x10a] sm:$0xff]
        %v2053 = vld [vmem:[%s1645 + $0x112] sm:$0xff]
        %v2054 = vld [vmem:[%s1645 + $0x122] sm:$0xff]
        %v2055 = vld [vmem:[%s1645 + $0x12a] sm:$0xff]
        %v2056 = vld [vmem:[%s1645 + $0x13a] sm:$0xff]
        %v2057 = vld [vmem:[%s1645 + $0x142] sm:$0xff]
        %v2058 = vld [vmem:[%s1645 + $0x152] sm:$0xff]
        %v2059 = vld [vmem:[%s1645 + $0x15a] sm:$0xff]
        %v2060 = vld [vmem:[%s1645 + $0x16a] sm:$0xff]
        %v2061 = vld [vmem:[%s1645 + $0x172] sm:$0xff]
        %v2062 = vpack.c.bf16 %v2031, %v2030
        %v2063 = vpack.c.bf16 %v2033, %v2032
        %v2064 = vpack.c.bf16 %v2035, %v2034
        %v2065 = vpack.c.bf16 %v2037, %v2036
        %v2066 = vpack.c.bf16 %v2039, %v2038
        %v2067 = vpack.c.bf16 %v2041, %v2040
        %v2068 = vpack.c.bf16 %v2043, %v2042
        %v2069 = vpack.c.bf16 %v2045, %v2044
        %v2070 = vpack.c.bf16 %v2047, %v2046
        %v2071 = vpack.c.bf16 %v2049, %v2048
        %v2072 = vpack.c.bf16 %v2051, %v2050
        %v2073 = vpack.c.bf16 %v2053, %v2052
        %v2074 = vpack.c.bf16 %v2055, %v2054
        %v2075 = vpack.c.bf16 %v2057, %v2056
        %v2076 = vpack.c.bf16 %v2059, %v2058
        %v2077 = vpack.c.bf16 %v2061, %v2060
        %v2094 = vunpack.c.l.b16 %v2062
        %v2095 = vunpack.c.h.b16 %v2062
        %v2096 = vunpack.c.l.b16 %v2063
        %v2097 = vunpack.c.h.b16 %v2063
        %v2098 = vunpack.c.l.b16 %v2064
        %v2099 = vunpack.c.h.b16 %v2064
        %v2100 = vunpack.c.l.b16 %v2065
        %v2101 = vunpack.c.h.b16 %v2065
        %v2102 = vunpack.c.l.b16 %v2066
        %v2103 = vunpack.c.h.b16 %v2066
        %v2104 = vunpack.c.l.b16 %v2067
        %v2105 = vunpack.c.h.b16 %v2067
        %v2106 = vunpack.c.l.b16 %v2068
        %v2107 = vunpack.c.h.b16 %v2068
        %v2108 = vunpack.c.l.b16 %v2069
        %v2109 = vunpack.c.h.b16 %v2069
        %v2110 = vunpack.c.l.b16 %v2070
        %v2111 = vunpack.c.h.b16 %v2070
        %v2112 = vunpack.c.l.b16 %v2071
        %v2113 = vunpack.c.h.b16 %v2071
        %v2114 = vunpack.c.l.b16 %v2072
        %v2115 = vunpack.c.h.b16 %v2072
        %v2116 = vunpack.c.l.b16 %v2073
        %v2117 = vunpack.c.h.b16 %v2073
        %v2118 = vunpack.c.l.b16 %v2074
        %v2119 = vunpack.c.h.b16 %v2074
        %v2120 = vunpack.c.l.b16 %v2075
        %v2121 = vunpack.c.h.b16 %v2075
        %v2122 = vunpack.c.l.b16 %v2076
        %v2123 = vunpack.c.h.b16 %v2076
        %v2124 = vunpack.c.l.b16 %v2077
        %v2125 = vunpack.c.h.b16 %v2077
        %v2126 = vpack.c.b16 %v2094, %v2094
        %v2127 = vpack.c.b16 %v2095, %v2095
        %v2128 = vpack.c.b16 %v2096, %v2096
        %v2129 = vpack.c.b16 %v2097, %v2097
        %v2130 = vpack.c.b16 %v2098, %v2098
        %v2131 = vpack.c.b16 %v2099, %v2099
        %v2132 = vpack.c.b16 %v2100, %v2100
        %v2133 = vpack.c.b16 %v2101, %v2101
        %v2134 = vpack.c.b16 %v2102, %v2102
        %v2135 = vpack.c.b16 %v2103, %v2103
        %v2136 = vpack.c.b16 %v2104, %v2104
        %v2137 = vpack.c.b16 %v2105, %v2105
        %v2138 = vpack.c.b16 %v2106, %v2106
        %v2139 = vpack.c.b16 %v2107, %v2107
        %v2140 = vpack.c.b16 %v2108, %v2108
        %v2141 = vpack.c.b16 %v2109, %v2109
        %v2142 = vpack.c.b16 %v2110, %v2110
        %v2143 = vpack.c.b16 %v2111, %v2111
        %v2144 = vpack.c.b16 %v2112, %v2112
        %v2145 = vpack.c.b16 %v2113, %v2113
        %v2146 = vpack.c.b16 %v2114, %v2114
        %v2147 = vpack.c.b16 %v2115, %v2115
        %v2148 = vpack.c.b16 %v2116, %v2116
        %v2149 = vpack.c.b16 %v2117, %v2117
        %v2150 = vpack.c.b16 %v2118, %v2118
        %v2151 = vpack.c.b16 %v2119, %v2119
        %v2152 = vpack.c.b16 %v2120, %v2120
        %v2153 = vpack.c.b16 %v2121, %v2121
        %v2154 = vpack.c.b16 %v2122, %v2122
        %v2155 = vpack.c.b16 %v2123, %v2123
        %v2156 = vpack.c.b16 %v2124, %v2124
        %v2157 = vpack.c.b16 %v2125, %v2125
        %2190 = vst [vmem:[#allocation3 + $0x20] sm:$0xf] %v2126
        %2191 = vst [vmem:[#allocation3 + $0x44] sm:$0xf] %v2127
        %2192 = vst [vmem:[#allocation3 + $0x68] sm:$0xf] %v2128
        %2193 = vst [vmem:[#allocation3 + $0x8c] sm:$0xf] %v2129
        %2194 = vst [vmem:[#allocation3 + $0xb0] sm:$0xf] %v2130
        %2195 = vst [vmem:[#allocation3 + $0xd4] sm:$0xf] %v2131
        %2196 = vst [vmem:[#allocation3 + $0xf8] sm:$0xf] %v2132
        %2197 = vst [vmem:[#allocation3 + $0x11c] sm:$0xf] %v2133
        %2198 = vst [vmem:[#allocation3 + $0x140] sm:$0xf] %v2134
        %2199 = vst [vmem:[#allocation3 + $0x164] sm:$0xf] %v2135
        %2200 = vst [vmem:[#allocation3 + $0x188] sm:$0xf] %v2136
        %2201 = vst [vmem:[#allocation3 + $0x1ac] sm:$0xf] %v2137
        %2202 = vst [vmem:[#allocation3 + $0x1d0] sm:$0xf] %v2138
        %2203 = vst [vmem:[#allocation3 + $0x1f4] sm:$0xf] %v2139
        %2204 = vst [vmem:[#allocation3 + $0x218] sm:$0xf] %v2140
        %2205 = vst [vmem:[#allocation3 + $0x23c] sm:$0xf] %v2141
        %2206 = vst [vmem:[#allocation3 + $0x260] sm:$0xf] %v2142
        %2207 = vst [vmem:[#allocation3 + $0x284] sm:$0xf] %v2143
        %2208 = vst [vmem:[#allocation3 + $0x2a8] sm:$0xf] %v2144
        %2209 = vst [vmem:[#allocation3 + $0x2cc] sm:$0xf] %v2145
        %2210 = vst [vmem:[#allocation3 + $0x2f0] sm:$0xf] %v2146
        %2211 = vst [vmem:[#allocation3 + $0x314] sm:$0xf] %v2147
        %2212 = vst [vmem:[#allocation3 + $0x338] sm:$0xf] %v2148
        %2213 = vst [vmem:[#allocation3 + $0x35c] sm:$0xf] %v2149
        %2214 = vst [vmem:[#allocation3 + $0x380] sm:$0xf] %v2150
        %2215 = vst [vmem:[#allocation3 + $0x3a4] sm:$0xf] %v2151
        %2216 = vst [vmem:[#allocation3 + $0x3c8] sm:$0xf] %v2152
        %2217 = vst [vmem:[#allocation3 + $0x3ec] sm:$0xf] %v2153
        %2218 = vst [vmem:[#allocation3 + $0x410] sm:$0xf] %v2154
        %2219 = vst [vmem:[#allocation3 + $0x434] sm:$0xf] %v2155
        %2220 = vst [vmem:[#allocation3 + $0x458] sm:$0xf] %v2156
        %2221 = vst [vmem:[#allocation3 + $0x47c] sm:$0xf] %v2157
        %v2222 = vld [vmem:[#allocation3] sm:$0xff]
        %v2223 = vld [vmem:[#allocation3 + $0x8] sm:$0xff]
        %v2224 = vld [vmem:[#allocation3 + $0x10] sm:$0xff]
        %v2225 = vld [vmem:[#allocation3 + $0x18] sm:$0xff]
        %v2226 = vld [vmem:[#allocation3 + $0x20] sm:$0xf]
        %v2227 = vld [vmem:[#allocation3 + $0x24] sm:$0xff]
        %v2228 = vld [vmem:[#allocation3 + $0x2c] sm:$0xff]
        %v2229 = vld [vmem:[#allocation3 + $0x34] sm:$0xff]
        %v2230 = vld [vmem:[#allocation3 + $0x3c] sm:$0xff]
        %v2231 = vld [vmem:[#allocation3 + $0x44] sm:$0xf]
        %v2232 = vld [vmem:[#allocation3 + $0x48] sm:$0xff]
        %v2233 = vld [vmem:[#allocation3 + $0x50] sm:$0xff]
        %v2234 = vld [vmem:[#allocation3 + $0x58] sm:$0xff]
        %v2235 = vld [vmem:[#allocation3 + $0x60] sm:$0xff]
        %v2236 = vld [vmem:[#allocation3 + $0x68] sm:$0xf]
        %v2237 = vld [vmem:[#allocation3 + $0x6c] sm:$0xff]
        %v2238 = vld [vmem:[#allocation3 + $0x74] sm:$0xff]
        %v2239 = vld [vmem:[#allocation3 + $0x7c] sm:$0xff]
        %v2240 = vld [vmem:[#allocation3 + $0x84] sm:$0xff]
        %v2241 = vld [vmem:[#allocation3 + $0x8c] sm:$0xf]
        %v2242 = vld [vmem:[#allocation3 + $0x90] sm:$0xff]
        %v2243 = vld [vmem:[#allocation3 + $0x98] sm:$0xff]
        %v2244 = vld [vmem:[#allocation3 + $0xa0] sm:$0xff]
        %v2245 = vld [vmem:[#allocation3 + $0xa8] sm:$0xff]
        %v2246 = vld [vmem:[#allocation3 + $0xb0] sm:$0xf]
        %v2247 = vld [vmem:[#allocation3 + $0xb4] sm:$0xff]
        %v2248 = vld [vmem:[#allocation3 + $0xbc] sm:$0xff]
        %v2249 = vld [vmem:[#allocation3 + $0xc4] sm:$0xff]
        %v2250 = vld [vmem:[#allocation3 + $0xcc] sm:$0xff]
        %v2251 = vld [vmem:[#allocation3 + $0xd4] sm:$0xf]
        %v2252 = vld [vmem:[#allocation3 + $0xd8] sm:$0xff]
        %v2253 = vld [vmem:[#allocation3 + $0xe0] sm:$0xff]
        %v2254 = vld [vmem:[#allocation3 + $0xe8] sm:$0xff]
        %v2255 = vld [vmem:[#allocation3 + $0xf0] sm:$0xff]
        %v2256 = vld [vmem:[#allocation3 + $0xf8] sm:$0xf]
        %v2257 = vld [vmem:[#allocation3 + $0xfc] sm:$0xff]
        %v2258 = vld [vmem:[#allocation3 + $0x104] sm:$0xff]
        %v2259 = vld [vmem:[#allocation3 + $0x10c] sm:$0xff]
        %v2260 = vld [vmem:[#allocation3 + $0x114] sm:$0xff]
        %v2261 = vld [vmem:[#allocation3 + $0x11c] sm:$0xf]
        %v2262 = vld [vmem:[#allocation3 + $0x120] sm:$0xff]
        %v2263 = vld [vmem:[#allocation3 + $0x128] sm:$0xff]
        %v2264 = vld [vmem:[#allocation3 + $0x130] sm:$0xff]
        %v2265 = vld [vmem:[#allocation3 + $0x138] sm:$0xff]
        %v2266 = vld [vmem:[#allocation3 + $0x140] sm:$0xf]
        %v2267 = vld [vmem:[#allocation3 + $0x144] sm:$0xff]
        %v2268 = vld [vmem:[#allocation3 + $0x14c] sm:$0xff]
        %v2269 = vld [vmem:[#allocation3 + $0x154] sm:$0xff]
        %v2270 = vld [vmem:[#allocation3 + $0x15c] sm:$0xff]
        %v2271 = vld [vmem:[#allocation3 + $0x164] sm:$0xf]
        %v2272 = vld [vmem:[#allocation3 + $0x168] sm:$0xff]
        %v2273 = vld [vmem:[#allocation3 + $0x170] sm:$0xff]
        %v2274 = vld [vmem:[#allocation3 + $0x178] sm:$0xff]
        %v2275 = vld [vmem:[#allocation3 + $0x180] sm:$0xff]
        %v2276 = vld [vmem:[#allocation3 + $0x188] sm:$0xf]
        %v2277 = vld [vmem:[#allocation3 + $0x18c] sm:$0xff]
        %v2278 = vld [vmem:[#allocation3 + $0x194] sm:$0xff]
        %v2279 = vld [vmem:[#allocation3 + $0x19c] sm:$0xff]
        %v2280 = vld [vmem:[#allocation3 + $0x1a4] sm:$0xff]
        %v2281 = vld [vmem:[#allocation3 + $0x1ac] sm:$0xf]
        %v2282 = vld [vmem:[#allocation3 + $0x1b0] sm:$0xff]
        %v2283 = vld [vmem:[#allocation3 + $0x1b8] sm:$0xff]
        %v2284 = vld [vmem:[#allocation3 + $0x1c0] sm:$0xff]
        %v2285 = vld [vmem:[#allocation3 + $0x1c8] sm:$0xff]
        %v2286 = vld [vmem:[#allocation3 + $0x1d0] sm:$0xf]
        %v2287 = vld [vmem:[#allocation3 + $0x1d4] sm:$0xff]
        %v2288 = vld [vmem:[#allocation3 + $0x1dc] sm:$0xff]
        %v2289 = vld [vmem:[#allocation3 + $0x1e4] sm:$0xff]
        %v2290 = vld [vmem:[#allocation3 + $0x1ec] sm:$0xff]
        %v2291 = vld [vmem:[#allocation3 + $0x1f4] sm:$0xf]
        %v2292 = vld [vmem:[#allocation3 + $0x1f8] sm:$0xff]
        %v2293 = vld [vmem:[#allocation3 + $0x200] sm:$0xff]
        %v2294 = vld [vmem:[#allocation3 + $0x208] sm:$0xff]
        %v2295 = vld [vmem:[#allocation3 + $0x210] sm:$0xff]
        %v2296 = vld [vmem:[#allocation3 + $0x218] sm:$0xf]
        %v2297 = vld [vmem:[#allocation3 + $0x21c] sm:$0xff]
        %v2298 = vld [vmem:[#allocation3 + $0x224] sm:$0xff]
        %v2299 = vld [vmem:[#allocation3 + $0x22c] sm:$0xff]
        %v2300 = vld [vmem:[#allocation3 + $0x234] sm:$0xff]
        %v2301 = vld [vmem:[#allocation3 + $0x23c] sm:$0xf]
        %v2302 = vld [vmem:[#allocation3 + $0x240] sm:$0xff]
        %v2303 = vld [vmem:[#allocation3 + $0x248] sm:$0xff]
        %v2304 = vld [vmem:[#allocation3 + $0x250] sm:$0xff]
        %v2305 = vld [vmem:[#allocation3 + $0x258] sm:$0xff]
        %v2306 = vld [vmem:[#allocation3 + $0x260] sm:$0xf]
        %v2307 = vld [vmem:[#allocation3 + $0x264] sm:$0xff]
        %v2308 = vld [vmem:[#allocation3 + $0x26c] sm:$0xff]
        %v2309 = vld [vmem:[#allocation3 + $0x274] sm:$0xff]
        %v2310 = vld [vmem:[#allocation3 + $0x27c] sm:$0xff]
        %v2311 = vld [vmem:[#allocation3 + $0x284] sm:$0xf]
        %v2312 = vld [vmem:[#allocation3 + $0x288] sm:$0xff]
        %v2313 = vld [vmem:[#allocation3 + $0x290] sm:$0xff]
        %v2314 = vld [vmem:[#allocation3 + $0x298] sm:$0xff]
        %v2315 = vld [vmem:[#allocation3 + $0x2a0] sm:$0xff]
        %v2316 = vld [vmem:[#allocation3 + $0x2a8] sm:$0xf]
        %v2317 = vld [vmem:[#allocation3 + $0x2ac] sm:$0xff]
        %v2318 = vld [vmem:[#allocation3 + $0x2b4] sm:$0xff]
        %v2319 = vld [vmem:[#allocation3 + $0x2bc] sm:$0xff]
        %v2320 = vld [vmem:[#allocation3 + $0x2c4] sm:$0xff]
        %v2321 = vld [vmem:[#allocation3 + $0x2cc] sm:$0xf]
        %v2322 = vld [vmem:[#allocation3 + $0x2d0] sm:$0xff]
        %v2323 = vld [vmem:[#allocation3 + $0x2d8] sm:$0xff]
        %v2324 = vld [vmem:[#allocation3 + $0x2e0] sm:$0xff]
        %v2325 = vld [vmem:[#allocation3 + $0x2e8] sm:$0xff]
        %v2326 = vld [vmem:[#allocation3 + $0x2f0] sm:$0xf]
        %v2327 = vld [vmem:[#allocation3 + $0x2f4] sm:$0xff]
        %v2328 = vld [vmem:[#allocation3 + $0x2fc] sm:$0xff]
        %v2329 = vld [vmem:[#allocation3 + $0x304] sm:$0xff]
        %v2330 = vld [vmem:[#allocation3 + $0x30c] sm:$0xff]
        %v2331 = vld [vmem:[#allocation3 + $0x314] sm:$0xf]
        %v2332 = vld [vmem:[#allocation3 + $0x318] sm:$0xff]
        %v2333 = vld [vmem:[#allocation3 + $0x320] sm:$0xff]
        %v2334 = vld [vmem:[#allocation3 + $0x328] sm:$0xff]
        %v2335 = vld [vmem:[#allocation3 + $0x330] sm:$0xff]
        %v2336 = vld [vmem:[#allocation3 + $0x338] sm:$0xf]
        %v2337 = vld [vmem:[#allocation3 + $0x33c] sm:$0xff]
        %v2338 = vld [vmem:[#allocation3 + $0x344] sm:$0xff]
        %v2339 = vld [vmem:[#allocation3 + $0x34c] sm:$0xff]
        %v2340 = vld [vmem:[#allocation3 + $0x354] sm:$0xff]
        %v2341 = vld [vmem:[#allocation3 + $0x35c] sm:$0xf]
        %v2342 = vld [vmem:[#allocation3 + $0x360] sm:$0xff]
        %v2343 = vld [vmem:[#allocation3 + $0x368] sm:$0xff]
        %v2344 = vld [vmem:[#allocation3 + $0x370] sm:$0xff]
        %v2345 = vld [vmem:[#allocation3 + $0x378] sm:$0xff]
        %v2346 = vld [vmem:[#allocation3 + $0x380] sm:$0xf]
        %v2347 = vld [vmem:[#allocation3 + $0x384] sm:$0xff]
        %v2348 = vld [vmem:[#allocation3 + $0x38c] sm:$0xff]
        %v2349 = vld [vmem:[#allocation3 + $0x394] sm:$0xff]
        %v2350 = vld [vmem:[#allocation3 + $0x39c] sm:$0xff]
        %v2351 = vld [vmem:[#allocation3 + $0x3a4] sm:$0xf]
        %v2352 = vld [vmem:[#allocation3 + $0x3a8] sm:$0xff]
        %v2353 = vld [vmem:[#allocation3 + $0x3b0] sm:$0xff]
        %v2354 = vld [vmem:[#allocation3 + $0x3b8] sm:$0xff]
        %v2355 = vld [vmem:[#allocation3 + $0x3c0] sm:$0xff]
        %v2356 = vld [vmem:[#allocation3 + $0x3c8] sm:$0xf]
        %v2357 = vld [vmem:[#allocation3 + $0x3cc] sm:$0xff]
        %v2358 = vld [vmem:[#allocation3 + $0x3d4] sm:$0xff]
        %v2359 = vld [vmem:[#allocation3 + $0x3dc] sm:$0xff]
        %v2360 = vld [vmem:[#allocation3 + $0x3e4] sm:$0xff]
        %v2361 = vld [vmem:[#allocation3 + $0x3ec] sm:$0xf]
        %v2362 = vld [vmem:[#allocation3 + $0x3f0] sm:$0xff]
        %v2363 = vld [vmem:[#allocation3 + $0x3f8] sm:$0xff]
        %v2364 = vld [vmem:[#allocation3 + $0x400] sm:$0xff]
        %v2365 = vld [vmem:[#allocation3 + $0x408] sm:$0xff]
        %v2366 = vld [vmem:[#allocation3 + $0x410] sm:$0xf]
        %v2367 = vld [vmem:[#allocation3 + $0x414] sm:$0xff]
        %v2368 = vld [vmem:[#allocation3 + $0x41c] sm:$0xff]
        %v2369 = vld [vmem:[#allocation3 + $0x424] sm:$0xff]
        %v2370 = vld [vmem:[#allocation3 + $0x42c] sm:$0xff]
        %v2371 = vld [vmem:[#allocation3 + $0x434] sm:$0xf]
        %v2372 = vld [vmem:[#allocation3 + $0x438] sm:$0xff]
        %v2373 = vld [vmem:[#allocation3 + $0x440] sm:$0xff]
        %v2374 = vld [vmem:[#allocation3 + $0x448] sm:$0xff]
        %v2375 = vld [vmem:[#allocation3 + $0x450] sm:$0xff]
        %v2376 = vld [vmem:[#allocation3 + $0x458] sm:$0xf]
        %v2377 = vld [vmem:[#allocation3 + $0x45c] sm:$0xff]
        %v2378 = vld [vmem:[#allocation3 + $0x464] sm:$0xff]
        %v2379 = vld [vmem:[#allocation3 + $0x46c] sm:$0xff]
        %v2380 = vld [vmem:[#allocation3 + $0x474] sm:$0xff]
        %v2381 = vld [vmem:[#allocation3 + $0x47c] sm:$0xf]
        %v2382 = vld [vmem:[#allocation7] sm:$0xf]
        %v2383 = vld [vmem:[#allocation7 + $0x4] sm:$0xf]
        %v2384 = vld [vmem:[#allocation7 + $0x8] sm:$0xf]
        %v2385 = vld [vmem:[#allocation7 + $0xc] sm:$0xf]
        %v2386 = vld [vmem:[#allocation7 + $0x10] sm:$0xf]
        %v2387 = vld [vmem:[#allocation7 + $0x14] sm:$0xf]
        %v2388 = vld [vmem:[#allocation7 + $0x18] sm:$0xf]
        %v2389 = vld [vmem:[#allocation7 + $0x1c] sm:$0xf]
        %v2390 = vld [vmem:[#allocation7 + $0x20] sm:$0xf]
        %v2391 = vld [vmem:[#allocation7 + $0x24] sm:$0xf]
        %v2392 = vld [vmem:[#allocation7 + $0x28] sm:$0xf]
        %v2393 = vld [vmem:[#allocation7 + $0x2c] sm:$0xf]
        %v2394 = vld [vmem:[#allocation7 + $0x30] sm:$0xf]
        %v2395 = vld [vmem:[#allocation7 + $0x34] sm:$0xf]
        %v2396 = vld [vmem:[#allocation7 + $0x38] sm:$0xf]
        %v2397 = vld [vmem:[#allocation7 + $0x3c] sm:$0xf]
        %v2398 = vld [vmem:[#allocation7 + $0x40] sm:$0xf]
        %v2399 = vld [vmem:[#allocation7 + $0x44] sm:$0xf]
        %v2400 = vld [vmem:[#allocation7 + $0x48] sm:$0xf]
        %v2401 = vld [vmem:[#allocation7 + $0x4c] sm:$0xf]
        %v2402 = vld [vmem:[#allocation7 + $0x50] sm:$0xf]
        %v2403 = vld [vmem:[#allocation7 + $0x54] sm:$0xf]
        %v2404 = vld [vmem:[#allocation7 + $0x58] sm:$0xf]
        %v2405 = vld [vmem:[#allocation7 + $0x5c] sm:$0xf]
        %v2406 = vld [vmem:[#allocation7 + $0x60] sm:$0xf]
        %v2407 = vld [vmem:[#allocation7 + $0x64] sm:$0xf]
        %v2408 = vld [vmem:[#allocation7 + $0x68] sm:$0xf]
        %v2409 = vld [vmem:[#allocation7 + $0x6c] sm:$0xf]
        %v2410 = vld [vmem:[#allocation7 + $0x70] sm:$0xf]
        %v2411 = vld [vmem:[#allocation7 + $0x74] sm:$0xf]
        %v2412 = vld [vmem:[#allocation7 + $0x78] sm:$0xf]
        %v2413 = vld [vmem:[#allocation7 + $0x7c] sm:$0xf]
        %v2414 = vld [vmem:[#allocation7 + $0x80] sm:$0xf]
        %v2415 = vld [vmem:[#allocation7 + $0x84] sm:$0xf]
        %v2416 = vld [vmem:[#allocation7 + $0x88] sm:$0xf]
        %v2417 = vld [vmem:[#allocation7 + $0x8c] sm:$0xf]
        %v2418 = vld [vmem:[#allocation7 + $0x90] sm:$0xf]
        %v2419 = vld [vmem:[#allocation7 + $0x94] sm:$0xf]
        %v2420 = vld [vmem:[#allocation7 + $0x98] sm:$0xf]
        %v2421 = vld [vmem:[#allocation7 + $0x9c] sm:$0xf]
        %v2422 = vld [vmem:[#allocation7 + $0xa0] sm:$0xf]
        %v2423 = vld [vmem:[#allocation7 + $0xa4] sm:$0xf]
        %v2424 = vld [vmem:[#allocation7 + $0xa8] sm:$0xf]
        %v2425 = vld [vmem:[#allocation7 + $0xac] sm:$0xf]
        %v2426 = vld [vmem:[#allocation7 + $0xb0] sm:$0xf]
        %v2427 = vld [vmem:[#allocation7 + $0xb4] sm:$0xf]
        %v2428 = vld [vmem:[#allocation7 + $0xb8] sm:$0xf]
        %v2429 = vld [vmem:[#allocation7 + $0xbc] sm:$0xf]
        %v2430 = vld [vmem:[#allocation7 + $0xc0] sm:$0xf]
        %v2431 = vld [vmem:[#allocation7 + $0xc4] sm:$0xf]
        %v2432 = vld [vmem:[#allocation7 + $0xc8] sm:$0xf]
        %v2433 = vld [vmem:[#allocation7 + $0xcc] sm:$0xf]
        %v2434 = vld [vmem:[#allocation7 + $0xd0] sm:$0xf]
        %v2435 = vld [vmem:[#allocation7 + $0xd4] sm:$0xf]
        %v2436 = vld [vmem:[#allocation7 + $0xd8] sm:$0xf]
        %v2437 = vld [vmem:[#allocation7 + $0xdc] sm:$0xf]
        %v2438 = vld [vmem:[#allocation7 + $0xe0] sm:$0xf]
        %v2439 = vld [vmem:[#allocation7 + $0xe4] sm:$0xf]
        %v2440 = vld [vmem:[#allocation7 + $0xe8] sm:$0xf]
        %v2441 = vld [vmem:[#allocation7 + $0xec] sm:$0xf]
        %v2442 = vld [vmem:[#allocation7 + $0xf0] sm:$0xf]
        %v2443 = vld [vmem:[#allocation7 + $0xf4] sm:$0xf]
        %v2444 = vld [vmem:[#allocation7 + $0xf8] sm:$0xf]
        %v2445 = vld [vmem:[#allocation7 + $0xfc] sm:$0xf]
        %v2446 = vld [vmem:[#allocation7 + $0x100] sm:$0xf]
        %v2447 = vld [vmem:[#allocation7 + $0x104] sm:$0xf]
        %v2448 = vld [vmem:[#allocation7 + $0x108] sm:$0xf]
        %v2449 = vld [vmem:[#allocation7 + $0x10c] sm:$0xf]
        %v2450 = vld [vmem:[#allocation7 + $0x110] sm:$0xf]
        %v2451 = vld [vmem:[#allocation7 + $0x114] sm:$0xf]
        %v2452 = vld [vmem:[#allocation7 + $0x118] sm:$0xf]
        %v2453 = vld [vmem:[#allocation7 + $0x11c] sm:$0xf]
        %v2454 = vld [vmem:[#allocation7 + $0x120] sm:$0xf]
        %v2455 = vld [vmem:[#allocation7 + $0x124] sm:$0xf]
        %v2456 = vld [vmem:[#allocation7 + $0x128] sm:$0xf]
        %v2457 = vld [vmem:[#allocation7 + $0x12c] sm:$0xf]
        %v2458 = vld [vmem:[#allocation7 + $0x130] sm:$0xf]
        %v2459 = vld [vmem:[#allocation7 + $0x134] sm:$0xf]
        %v2460 = vld [vmem:[#allocation7 + $0x138] sm:$0xf]
        %v2461 = vld [vmem:[#allocation7 + $0x13c] sm:$0xf]
        %v2462 = vld [vmem:[#allocation7 + $0x140] sm:$0xf]
        %v2463 = vld [vmem:[#allocation7 + $0x144] sm:$0xf]
        %v2464 = vld [vmem:[#allocation7 + $0x148] sm:$0xf]
        %v2465 = vld [vmem:[#allocation7 + $0x14c] sm:$0xf]
        %v2466 = vld [vmem:[#allocation7 + $0x150] sm:$0xf]
        %v2467 = vld [vmem:[#allocation7 + $0x154] sm:$0xf]
        %v2468 = vld [vmem:[#allocation7 + $0x158] sm:$0xf]
        %v2469 = vld [vmem:[#allocation7 + $0x15c] sm:$0xf]
        %v2470 = vld [vmem:[#allocation7 + $0x160] sm:$0xf]
        %v2471 = vld [vmem:[#allocation7 + $0x164] sm:$0xf]
        %v2472 = vld [vmem:[#allocation7 + $0x168] sm:$0xf]
        %v2473 = vld [vmem:[#allocation7 + $0x16c] sm:$0xf]
        %v2474 = vld [vmem:[#allocation7 + $0x170] sm:$0xf]
        %v2475 = vld [vmem:[#allocation7 + $0x174] sm:$0xf]
        %v2476 = vld [vmem:[#allocation7 + $0x178] sm:$0xf]
        %v2477 = vld [vmem:[#allocation7 + $0x17c] sm:$0xf]
        %v2478 = vld [vmem:[#allocation7 + $0x180] sm:$0xf]
        %v2479 = vld [vmem:[#allocation7 + $0x184] sm:$0xf]
        %v2480 = vld [vmem:[#allocation7 + $0x188] sm:$0xf]
        %v2481 = vld [vmem:[#allocation7 + $0x18c] sm:$0xf]
        %v2482 = vld [vmem:[#allocation7 + $0x190] sm:$0xf]
        %v2483 = vld [vmem:[#allocation7 + $0x194] sm:$0xf]
        %v2484 = vld [vmem:[#allocation7 + $0x198] sm:$0xf]
        %v2485 = vld [vmem:[#allocation7 + $0x19c] sm:$0xf]
        %v2486 = vld [vmem:[#allocation7 + $0x1a0] sm:$0xf]
        %v2487 = vld [vmem:[#allocation7 + $0x1a4] sm:$0xf]
        %v2488 = vld [vmem:[#allocation7 + $0x1a8] sm:$0xf]
        %v2489 = vld [vmem:[#allocation7 + $0x1ac] sm:$0xf]
        %v2490 = vld [vmem:[#allocation7 + $0x1b0] sm:$0xf]
        %v2491 = vld [vmem:[#allocation7 + $0x1b4] sm:$0xf]
        %v2492 = vld [vmem:[#allocation7 + $0x1b8] sm:$0xf]
        %v2493 = vld [vmem:[#allocation7 + $0x1bc] sm:$0xf]
        %v2494 = vld [vmem:[#allocation7 + $0x1c0] sm:$0xf]
        %v2495 = vld [vmem:[#allocation7 + $0x1c4] sm:$0xf]
        %v2496 = vld [vmem:[#allocation7 + $0x1c8] sm:$0xf]
        %v2497 = vld [vmem:[#allocation7 + $0x1cc] sm:$0xf]
        %v2498 = vld [vmem:[#allocation7 + $0x1d0] sm:$0xf]
        %v2499 = vld [vmem:[#allocation7 + $0x1d4] sm:$0xf]
        %v2500 = vld [vmem:[#allocation7 + $0x1d8] sm:$0xf]
        %v2501 = vld [vmem:[#allocation7 + $0x1dc] sm:$0xf]
        %v2502 = vld [vmem:[#allocation7 + $0x1e0] sm:$0xf]
        %v2503 = vld [vmem:[#allocation7 + $0x1e4] sm:$0xf]
        %v2504 = vld [vmem:[#allocation7 + $0x1e8] sm:$0xf]
        %v2505 = vld [vmem:[#allocation7 + $0x1ec] sm:$0xf]
        %v2506 = vld [vmem:[#allocation7 + $0x1f0] sm:$0xf]
        %v2507 = vld [vmem:[#allocation7 + $0x1f4] sm:$0xf]
        %v2508 = vld [vmem:[#allocation7 + $0x1f8] sm:$0xf]
        %v2509 = vld [vmem:[#allocation7 + $0x1fc] sm:$0xf]
        %v2510 = vld [vmem:[#allocation7 + $0x200] sm:$0xf]
        %v2511 = vld [vmem:[#allocation7 + $0x204] sm:$0xf]
        %v2512 = vld [vmem:[#allocation7 + $0x208] sm:$0xf]
        %v2513 = vld [vmem:[#allocation7 + $0x20c] sm:$0xf]
        %v2514 = vld [vmem:[#allocation7 + $0x210] sm:$0xf]
        %v2515 = vld [vmem:[#allocation7 + $0x214] sm:$0xf]
        %v2516 = vld [vmem:[#allocation7 + $0x218] sm:$0xf]
        %v2517 = vld [vmem:[#allocation7 + $0x21c] sm:$0xf]
        %v2518 = vld [vmem:[#allocation7 + $0x220] sm:$0xf]
        %v2519 = vld [vmem:[#allocation7 + $0x224] sm:$0xf]
        %v2520 = vld [vmem:[#allocation7 + $0x228] sm:$0xf]
        %v2521 = vld [vmem:[#allocation7 + $0x22c] sm:$0xf]
        %v2522 = vld [vmem:[#allocation7 + $0x230] sm:$0xf]
        %v2523 = vld [vmem:[#allocation7 + $0x234] sm:$0xf]
        %v2524 = vld [vmem:[#allocation7 + $0x238] sm:$0xf]
        %v2525 = vld [vmem:[#allocation7 + $0x23c] sm:$0xf]
        %v2686 = vunpack.c.l.b16 %v2222
        %v2687 = vunpack.c.h.b16 %v2222
        %v2688 = vunpack.c.l.b16 %v2223
        %v2689 = vunpack.c.h.b16 %v2223
        %v2690 = vunpack.c.l.b16 %v2224
        %v2691 = vunpack.c.h.b16 %v2224
        %v2692 = vunpack.c.l.b16 %v2225
        %v2693 = vunpack.c.h.b16 %v2225
        %v2694 = vunpack.c.l.b16 %v2226
        %v2695 = vunpack.c.l.b16 %v2227
        %v2696 = vunpack.c.h.b16 %v2227
        %v2697 = vunpack.c.l.b16 %v2228
        %v2698 = vunpack.c.h.b16 %v2228
        %v2699 = vunpack.c.l.b16 %v2229
        %v2700 = vunpack.c.h.b16 %v2229
        %v2701 = vunpack.c.l.b16 %v2230
        %v2702 = vunpack.c.h.b16 %v2230
        %v2703 = vunpack.c.l.b16 %v2231
        %v2704 = vunpack.c.l.b16 %v2232
        %v2705 = vunpack.c.h.b16 %v2232
        %v2706 = vunpack.c.l.b16 %v2233
        %v2707 = vunpack.c.h.b16 %v2233
        %v2708 = vunpack.c.l.b16 %v2234
        %v2709 = vunpack.c.h.b16 %v2234
        %v2710 = vunpack.c.l.b16 %v2235
        %v2711 = vunpack.c.h.b16 %v2235
        %v2712 = vunpack.c.l.b16 %v2236
        %v2713 = vunpack.c.l.b16 %v2237
        %v2714 = vunpack.c.h.b16 %v2237
        %v2715 = vunpack.c.l.b16 %v2238
        %v2716 = vunpack.c.h.b16 %v2238
        %v2717 = vunpack.c.l.b16 %v2239
        %v2718 = vunpack.c.h.b16 %v2239
        %v2719 = vunpack.c.l.b16 %v2240
        %v2720 = vunpack.c.h.b16 %v2240
        %v2721 = vunpack.c.l.b16 %v2241
        %v2722 = vunpack.c.l.b16 %v2242
        %v2723 = vunpack.c.h.b16 %v2242
        %v2724 = vunpack.c.l.b16 %v2243
        %v2725 = vunpack.c.h.b16 %v2243
        %v2726 = vunpack.c.l.b16 %v2244
        %v2727 = vunpack.c.h.b16 %v2244
        %v2728 = vunpack.c.l.b16 %v2245
        %v2729 = vunpack.c.h.b16 %v2245
        %v2730 = vunpack.c.l.b16 %v2246
        %v2731 = vunpack.c.l.b16 %v2247
        %v2732 = vunpack.c.h.b16 %v2247
        %v2733 = vunpack.c.l.b16 %v2248
        %v2734 = vunpack.c.h.b16 %v2248
        %v2735 = vunpack.c.l.b16 %v2249
        %v2736 = vunpack.c.h.b16 %v2249
        %v2737 = vunpack.c.l.b16 %v2250
        %v2738 = vunpack.c.h.b16 %v2250
        %v2739 = vunpack.c.l.b16 %v2251
        %v2740 = vunpack.c.l.b16 %v2252
        %v2741 = vunpack.c.h.b16 %v2252
        %v2742 = vunpack.c.l.b16 %v2253
        %v2743 = vunpack.c.h.b16 %v2253
        %v2744 = vunpack.c.l.b16 %v2254
        %v2745 = vunpack.c.h.b16 %v2254
        %v2746 = vunpack.c.l.b16 %v2255
        %v2747 = vunpack.c.h.b16 %v2255
        %v2748 = vunpack.c.l.b16 %v2256
        %v2749 = vunpack.c.l.b16 %v2257
        %v2750 = vunpack.c.h.b16 %v2257
        %v2751 = vunpack.c.l.b16 %v2258
        %v2752 = vunpack.c.h.b16 %v2258
        %v2753 = vunpack.c.l.b16 %v2259
        %v2754 = vunpack.c.h.b16 %v2259
        %v2755 = vunpack.c.l.b16 %v2260
        %v2756 = vunpack.c.h.b16 %v2260
        %v2757 = vunpack.c.l.b16 %v2261
        %v2758 = vunpack.c.l.b16 %v2262
        %v2759 = vunpack.c.h.b16 %v2262
        %v2760 = vunpack.c.l.b16 %v2263
        %v2761 = vunpack.c.h.b16 %v2263
        %v2762 = vunpack.c.l.b16 %v2264
        %v2763 = vunpack.c.h.b16 %v2264
        %v2764 = vunpack.c.l.b16 %v2265
        %v2765 = vunpack.c.h.b16 %v2265
        %v2766 = vunpack.c.l.b16 %v2266
        %v2767 = vunpack.c.l.b16 %v2267
        %v2768 = vunpack.c.h.b16 %v2267
        %v2769 = vunpack.c.l.b16 %v2268
        %v2770 = vunpack.c.h.b16 %v2268
        %v2771 = vunpack.c.l.b16 %v2269
        %v2772 = vunpack.c.h.b16 %v2269
        %v2773 = vunpack.c.l.b16 %v2270
        %v2774 = vunpack.c.h.b16 %v2270
        %v2775 = vunpack.c.l.b16 %v2271
        %v2776 = vunpack.c.l.b16 %v2272
        %v2777 = vunpack.c.h.b16 %v2272
        %v2778 = vunpack.c.l.b16 %v2273
        %v2779 = vunpack.c.h.b16 %v2273
        %v2780 = vunpack.c.l.b16 %v2274
        %v2781 = vunpack.c.h.b16 %v2274
        %v2782 = vunpack.c.l.b16 %v2275
        %v2783 = vunpack.c.h.b16 %v2275
        %v2784 = vunpack.c.l.b16 %v2276
        %v2785 = vunpack.c.l.b16 %v2277
        %v2786 = vunpack.c.h.b16 %v2277
        %v2787 = vunpack.c.l.b16 %v2278
        %v2788 = vunpack.c.h.b16 %v2278
        %v2789 = vunpack.c.l.b16 %v2279
        %v2790 = vunpack.c.h.b16 %v2279
        %v2791 = vunpack.c.l.b16 %v2280
        %v2792 = vunpack.c.h.b16 %v2280
        %v2793 = vunpack.c.l.b16 %v2281
        %v2794 = vunpack.c.l.b16 %v2282
        %v2795 = vunpack.c.h.b16 %v2282
        %v2796 = vunpack.c.l.b16 %v2283
        %v2797 = vunpack.c.h.b16 %v2283
        %v2798 = vunpack.c.l.b16 %v2284
        %v2799 = vunpack.c.h.b16 %v2284
        %v2800 = vunpack.c.l.b16 %v2285
        %v2801 = vunpack.c.h.b16 %v2285
        %v2802 = vunpack.c.l.b16 %v2286
        %v2803 = vunpack.c.l.b16 %v2287
        %v2804 = vunpack.c.h.b16 %v2287
        %v2805 = vunpack.c.l.b16 %v2288
        %v2806 = vunpack.c.h.b16 %v2288
        %v2807 = vunpack.c.l.b16 %v2289
        %v2808 = vunpack.c.h.b16 %v2289
        %v2809 = vunpack.c.l.b16 %v2290
        %v2810 = vunpack.c.h.b16 %v2290
        %v2811 = vunpack.c.l.b16 %v2291
        %v2812 = vunpack.c.l.b16 %v2292
        %v2813 = vunpack.c.h.b16 %v2292
        %v2814 = vunpack.c.l.b16 %v2293
        %v2815 = vunpack.c.h.b16 %v2293
        %v2816 = vunpack.c.l.b16 %v2294
        %v2817 = vunpack.c.h.b16 %v2294
        %v2818 = vunpack.c.l.b16 %v2295
        %v2819 = vunpack.c.h.b16 %v2295
        %v2820 = vunpack.c.l.b16 %v2296
        %v2821 = vunpack.c.l.b16 %v2297
        %v2822 = vunpack.c.h.b16 %v2297
        %v2823 = vunpack.c.l.b16 %v2298
        %v2824 = vunpack.c.h.b16 %v2298
        %v2825 = vunpack.c.l.b16 %v2299
        %v2826 = vunpack.c.h.b16 %v2299
        %v2827 = vunpack.c.l.b16 %v2300
        %v2828 = vunpack.c.h.b16 %v2300
        %v2829 = vunpack.c.l.b16 %v2301
        %v2830 = vunpack.c.l.b16 %v2302
        %v2831 = vunpack.c.h.b16 %v2302
        %v2832 = vunpack.c.l.b16 %v2303
        %v2833 = vunpack.c.h.b16 %v2303
        %v2834 = vunpack.c.l.b16 %v2304
        %v2835 = vunpack.c.h.b16 %v2304
        %v2836 = vunpack.c.l.b16 %v2305
        %v2837 = vunpack.c.h.b16 %v2305
        %v2838 = vunpack.c.l.b16 %v2306
        %v2839 = vunpack.c.l.b16 %v2307
        %v2840 = vunpack.c.h.b16 %v2307
        %v2841 = vunpack.c.l.b16 %v2308
        %v2842 = vunpack.c.h.b16 %v2308
        %v2843 = vunpack.c.l.b16 %v2309
        %v2844 = vunpack.c.h.b16 %v2309
        %v2845 = vunpack.c.l.b16 %v2310
        %v2846 = vunpack.c.h.b16 %v2310
        %v2847 = vunpack.c.l.b16 %v2311
        %v2848 = vunpack.c.l.b16 %v2312
        %v2849 = vunpack.c.h.b16 %v2312
        %v2850 = vunpack.c.l.b16 %v2313
        %v2851 = vunpack.c.h.b16 %v2313
        %v2852 = vunpack.c.l.b16 %v2314
        %v2853 = vunpack.c.h.b16 %v2314
        %v2854 = vunpack.c.l.b16 %v2315
        %v2855 = vunpack.c.h.b16 %v2315
        %v2856 = vunpack.c.l.b16 %v2316
        %v2857 = vunpack.c.l.b16 %v2317
        %v2858 = vunpack.c.h.b16 %v2317
        %v2859 = vunpack.c.l.b16 %v2318
        %v2860 = vunpack.c.h.b16 %v2318
        %v2861 = vunpack.c.l.b16 %v2319
        %v2862 = vunpack.c.h.b16 %v2319
        %v2863 = vunpack.c.l.b16 %v2320
        %v2864 = vunpack.c.h.b16 %v2320
        %v2865 = vunpack.c.l.b16 %v2321
        %v2866 = vunpack.c.l.b16 %v2322
        %v2867 = vunpack.c.h.b16 %v2322
        %v2868 = vunpack.c.l.b16 %v2323
        %v2869 = vunpack.c.h.b16 %v2323
        %v2870 = vunpack.c.l.b16 %v2324
        %v2871 = vunpack.c.h.b16 %v2324
        %v2872 = vunpack.c.l.b16 %v2325
        %v2873 = vunpack.c.h.b16 %v2325
        %v2874 = vunpack.c.l.b16 %v2326
        %v2875 = vunpack.c.l.b16 %v2327
        %v2876 = vunpack.c.h.b16 %v2327
        %v2877 = vunpack.c.l.b16 %v2328
        %v2878 = vunpack.c.h.b16 %v2328
        %v2879 = vunpack.c.l.b16 %v2329
        %v2880 = vunpack.c.h.b16 %v2329
        %v2881 = vunpack.c.l.b16 %v2330
        %v2882 = vunpack.c.h.b16 %v2330
        %v2883 = vunpack.c.l.b16 %v2331
        %v2884 = vunpack.c.l.b16 %v2332
        %v2885 = vunpack.c.h.b16 %v2332
        %v2886 = vunpack.c.l.b16 %v2333
        %v2887 = vunpack.c.h.b16 %v2333
        %v2888 = vunpack.c.l.b16 %v2334
        %v2889 = vunpack.c.h.b16 %v2334
        %v2890 = vunpack.c.l.b16 %v2335
        %v2891 = vunpack.c.h.b16 %v2335
        %v2892 = vunpack.c.l.b16 %v2336
        %v2893 = vunpack.c.l.b16 %v2337
        %v2894 = vunpack.c.h.b16 %v2337
        %v2895 = vunpack.c.l.b16 %v2338
        %v2896 = vunpack.c.h.b16 %v2338
        %v2897 = vunpack.c.l.b16 %v2339
        %v2898 = vunpack.c.h.b16 %v2339
        %v2899 = vunpack.c.l.b16 %v2340
        %v2900 = vunpack.c.h.b16 %v2340
        %v2901 = vunpack.c.l.b16 %v2341
        %v2902 = vunpack.c.l.b16 %v2342
        %v2903 = vunpack.c.h.b16 %v2342
        %v2904 = vunpack.c.l.b16 %v2343
        %v2905 = vunpack.c.h.b16 %v2343
        %v2906 = vunpack.c.l.b16 %v2344
        %v2907 = vunpack.c.h.b16 %v2344
        %v2908 = vunpack.c.l.b16 %v2345
        %v2909 = vunpack.c.h.b16 %v2345
        %v2910 = vunpack.c.l.b16 %v2346
        %v2911 = vunpack.c.l.b16 %v2347
        %v2912 = vunpack.c.h.b16 %v2347
        %v2913 = vunpack.c.l.b16 %v2348
        %v2914 = vunpack.c.h.b16 %v2348
        %v2915 = vunpack.c.l.b16 %v2349
        %v2916 = vunpack.c.h.b16 %v2349
        %v2917 = vunpack.c.l.b16 %v2350
        %v2918 = vunpack.c.h.b16 %v2350
        %v2919 = vunpack.c.l.b16 %v2351
        %v2920 = vunpack.c.l.b16 %v2352
        %v2921 = vunpack.c.h.b16 %v2352
        %v2922 = vunpack.c.l.b16 %v2353
        %v2923 = vunpack.c.h.b16 %v2353
        %v2924 = vunpack.c.l.b16 %v2354
        %v2925 = vunpack.c.h.b16 %v2354
        %v2926 = vunpack.c.l.b16 %v2355
        %v2927 = vunpack.c.h.b16 %v2355
        %v2928 = vunpack.c.l.b16 %v2356
        %v2929 = vunpack.c.l.b16 %v2357
        %v2930 = vunpack.c.h.b16 %v2357
        %v2931 = vunpack.c.l.b16 %v2358
        %v2932 = vunpack.c.h.b16 %v2358
        %v2933 = vunpack.c.l.b16 %v2359
        %v2934 = vunpack.c.h.b16 %v2359
        %v2935 = vunpack.c.l.b16 %v2360
        %v2936 = vunpack.c.h.b16 %v2360
        %v2937 = vunpack.c.l.b16 %v2361
        %v2938 = vunpack.c.l.b16 %v2362
        %v2939 = vunpack.c.h.b16 %v2362
        %v2940 = vunpack.c.l.b16 %v2363
        %v2941 = vunpack.c.h.b16 %v2363
        %v2942 = vunpack.c.l.b16 %v2364
        %v2943 = vunpack.c.h.b16 %v2364
        %v2944 = vunpack.c.l.b16 %v2365
        %v2945 = vunpack.c.h.b16 %v2365
        %v2946 = vunpack.c.l.b16 %v2366
        %v2947 = vunpack.c.l.b16 %v2367
        %v2948 = vunpack.c.h.b16 %v2367
        %v2949 = vunpack.c.l.b16 %v2368
        %v2950 = vunpack.c.h.b16 %v2368
        %v2951 = vunpack.c.l.b16 %v2369
        %v2952 = vunpack.c.h.b16 %v2369
        %v2953 = vunpack.c.l.b16 %v2370
        %v2954 = vunpack.c.h.b16 %v2370
        %v2955 = vunpack.c.l.b16 %v2371
        %v2956 = vunpack.c.l.b16 %v2372
        %v2957 = vunpack.c.h.b16 %v2372
        %v2958 = vunpack.c.l.b16 %v2373
        %v2959 = vunpack.c.h.b16 %v2373
        %v2960 = vunpack.c.l.b16 %v2374
        %v2961 = vunpack.c.h.b16 %v2374
        %v2962 = vunpack.c.l.b16 %v2375
        %v2963 = vunpack.c.h.b16 %v2375
        %v2964 = vunpack.c.l.b16 %v2376
        %v2965 = vunpack.c.l.b16 %v2377
        %v2966 = vunpack.c.h.b16 %v2377
        %v2967 = vunpack.c.l.b16 %v2378
        %v2968 = vunpack.c.h.b16 %v2378
        %v2969 = vunpack.c.l.b16 %v2379
        %v2970 = vunpack.c.h.b16 %v2379
        %v2971 = vunpack.c.l.b16 %v2380
        %v2972 = vunpack.c.h.b16 %v2380
        %v2973 = vunpack.c.l.b16 %v2381
        %v2974 = vpack.c.b16 %v2695, %v2686
        %v2975 = vpack.c.b16 %v2696, %v2687
        %v2976 = vpack.c.b16 %v2697, %v2688
        %v2977 = vpack.c.b16 %v2698, %v2689
        %v2978 = vpack.c.b16 %v2699, %v2690
        %v2979 = vpack.c.b16 %v2700, %v2691
        %v2980 = vpack.c.b16 %v2701, %v2692
        %v2981 = vpack.c.b16 %v2702, %v2693
        %v2982 = vpack.c.b16 %v2703, %v2694
        %v2983 = vpack.c.b16 %v2713, %v2704
        %v2984 = vpack.c.b16 %v2714, %v2705
        %v2985 = vpack.c.b16 %v2715, %v2706
        %v2986 = vpack.c.b16 %v2716, %v2707
        %v2987 = vpack.c.b16 %v2717, %v2708
        %v2988 = vpack.c.b16 %v2718, %v2709
        %v2989 = vpack.c.b16 %v2719, %v2710
        %v2990 = vpack.c.b16 %v2720, %v2711
        %v2991 = vpack.c.b16 %v2721, %v2712
        %v2992 = vpack.c.b16 %v2731, %v2722
        %v2993 = vpack.c.b16 %v2732, %v2723
        %v2994 = vpack.c.b16 %v2733, %v2724
        %v2995 = vpack.c.b16 %v2734, %v2725
        %v2996 = vpack.c.b16 %v2735, %v2726
        %v2997 = vpack.c.b16 %v2736, %v2727
        %v2998 = vpack.c.b16 %v2737, %v2728
        %v2999 = vpack.c.b16 %v2738, %v2729
        %v3000 = vpack.c.b16 %v2739, %v2730
        %v3001 = vpack.c.b16 %v2749, %v2740
        %v3002 = vpack.c.b16 %v2750, %v2741
        %v3003 = vpack.c.b16 %v2751, %v2742
        %v3004 = vpack.c.b16 %v2752, %v2743
        %v3005 = vpack.c.b16 %v2753, %v2744
        %v3006 = vpack.c.b16 %v2754, %v2745
        %v3007 = vpack.c.b16 %v2755, %v2746
        %v3008 = vpack.c.b16 %v2756, %v2747
        %v3009 = vpack.c.b16 %v2757, %v2748
        %v3010 = vpack.c.b16 %v2767, %v2758
        %v3011 = vpack.c.b16 %v2768, %v2759
        %v3012 = vpack.c.b16 %v2769, %v2760
        %v3013 = vpack.c.b16 %v2770, %v2761
        %v3014 = vpack.c.b16 %v2771, %v2762
        %v3015 = vpack.c.b16 %v2772, %v2763
        %v3016 = vpack.c.b16 %v2773, %v2764
        %v3017 = vpack.c.b16 %v2774, %v2765
        %v3018 = vpack.c.b16 %v2775, %v2766
        %v3019 = vpack.c.b16 %v2785, %v2776
        %v3020 = vpack.c.b16 %v2786, %v2777
        %v3021 = vpack.c.b16 %v2787, %v2778
        %v3022 = vpack.c.b16 %v2788, %v2779
        %v3023 = vpack.c.b16 %v2789, %v2780
        %v3024 = vpack.c.b16 %v2790, %v2781
        %v3025 = vpack.c.b16 %v2791, %v2782
        %v3026 = vpack.c.b16 %v2792, %v2783
        %v3027 = vpack.c.b16 %v2793, %v2784
        %v3028 = vpack.c.b16 %v2803, %v2794
        %v3029 = vpack.c.b16 %v2804, %v2795
        %v3030 = vpack.c.b16 %v2805, %v2796
        %v3031 = vpack.c.b16 %v2806, %v2797
        %v3032 = vpack.c.b16 %v2807, %v2798
        %v3033 = vpack.c.b16 %v2808, %v2799
        %v3034 = vpack.c.b16 %v2809, %v2800
        %v3035 = vpack.c.b16 %v2810, %v2801
        %v3036 = vpack.c.b16 %v2811, %v2802
        %v3037 = vpack.c.b16 %v2821, %v2812
        %v3038 = vpack.c.b16 %v2822, %v2813
        %v3039 = vpack.c.b16 %v2823, %v2814
        %v3040 = vpack.c.b16 %v2824, %v2815
        %v3041 = vpack.c.b16 %v2825, %v2816
        %v3042 = vpack.c.b16 %v2826, %v2817
        %v3043 = vpack.c.b16 %v2827, %v2818
        %v3044 = vpack.c.b16 %v2828, %v2819
        %v3045 = vpack.c.b16 %v2829, %v2820
        %v3046 = vpack.c.b16 %v2839, %v2830
        %v3047 = vpack.c.b16 %v2840, %v2831
        %v3048 = vpack.c.b16 %v2841, %v2832
        %v3049 = vpack.c.b16 %v2842, %v2833
        %v3050 = vpack.c.b16 %v2843, %v2834
        %v3051 = vpack.c.b16 %v2844, %v2835
        %v3052 = vpack.c.b16 %v2845, %v2836
        %v3053 = vpack.c.b16 %v2846, %v2837
        %v3054 = vpack.c.b16 %v2847, %v2838
        %v3055 = vpack.c.b16 %v2857, %v2848
        %v3056 = vpack.c.b16 %v2858, %v2849
        %v3057 = vpack.c.b16 %v2859, %v2850
        %v3058 = vpack.c.b16 %v2860, %v2851
        %v3059 = vpack.c.b16 %v2861, %v2852
        %v3060 = vpack.c.b16 %v2862, %v2853
        %v3061 = vpack.c.b16 %v2863, %v2854
        %v3062 = vpack.c.b16 %v2864, %v2855
        %v3063 = vpack.c.b16 %v2865, %v2856
        %v3064 = vpack.c.b16 %v2875, %v2866
        %v3065 = vpack.c.b16 %v2876, %v2867
        %v3066 = vpack.c.b16 %v2877, %v2868
        %v3067 = vpack.c.b16 %v2878, %v2869
        %v3068 = vpack.c.b16 %v2879, %v2870
        %v3069 = vpack.c.b16 %v2880, %v2871
        %v3070 = vpack.c.b16 %v2881, %v2872
        %v3071 = vpack.c.b16 %v2882, %v2873
        %v3072 = vpack.c.b16 %v2883, %v2874
        %v3073 = vpack.c.b16 %v2893, %v2884
        %v3074 = vpack.c.b16 %v2894, %v2885
        %v3075 = vpack.c.b16 %v2895, %v2886
        %v3076 = vpack.c.b16 %v2896, %v2887
        %v3077 = vpack.c.b16 %v2897, %v2888
        %v3078 = vpack.c.b16 %v2898, %v2889
        %v3079 = vpack.c.b16 %v2899, %v2890
        %v3080 = vpack.c.b16 %v2900, %v2891
        %v3081 = vpack.c.b16 %v2901, %v2892
        %v3082 = vpack.c.b16 %v2911, %v2902
        %v3083 = vpack.c.b16 %v2912, %v2903
        %v3084 = vpack.c.b16 %v2913, %v2904
        %v3085 = vpack.c.b16 %v2914, %v2905
        %v3086 = vpack.c.b16 %v2915, %v2906
        %v3087 = vpack.c.b16 %v2916, %v2907
        %v3088 = vpack.c.b16 %v2917, %v2908
        %v3089 = vpack.c.b16 %v2918, %v2909
        %v3090 = vpack.c.b16 %v2919, %v2910
        %v3091 = vpack.c.b16 %v2929, %v2920
        %v3092 = vpack.c.b16 %v2930, %v2921
        %v3093 = vpack.c.b16 %v2931, %v2922
        %v3094 = vpack.c.b16 %v2932, %v2923
        %v3095 = vpack.c.b16 %v2933, %v2924
        %v3096 = vpack.c.b16 %v2934, %v2925
        %v3097 = vpack.c.b16 %v2935, %v2926
        %v3098 = vpack.c.b16 %v2936, %v2927
        %v3099 = vpack.c.b16 %v2937, %v2928
        %v3100 = vpack.c.b16 %v2947, %v2938
        %v3101 = vpack.c.b16 %v2948, %v2939
        %v3102 = vpack.c.b16 %v2949, %v2940
        %v3103 = vpack.c.b16 %v2950, %v2941
        %v3104 = vpack.c.b16 %v2951, %v2942
        %v3105 = vpack.c.b16 %v2952, %v2943
        %v3106 = vpack.c.b16 %v2953, %v2944
        %v3107 = vpack.c.b16 %v2954, %v2945
        %v3108 = vpack.c.b16 %v2955, %v2946
        %v3109 = vpack.c.b16 %v2965, %v2956
        %v3110 = vpack.c.b16 %v2966, %v2957
        %v3111 = vpack.c.b16 %v2967, %v2958
        %v3112 = vpack.c.b16 %v2968, %v2959
        %v3113 = vpack.c.b16 %v2969, %v2960
        %v3114 = vpack.c.b16 %v2970, %v2961
        %v3115 = vpack.c.b16 %v2971, %v2962
        %v3116 = vpack.c.b16 %v2972, %v2963
        %v3117 = vpack.c.b16 %v2973, %v2964
        %v3406 = vunpack.c.l.b16 %v2382
        %v3407 = vunpack.c.l.b16 %v2383
        %v3408 = vunpack.c.l.b16 %v2384
        %v3409 = vunpack.c.l.b16 %v2385
        %v3410 = vunpack.c.l.b16 %v2386
        %v3411 = vunpack.c.l.b16 %v2387
        %v3412 = vunpack.c.l.b16 %v2388
        %v3413 = vunpack.c.l.b16 %v2389
        %v3414 = vunpack.c.l.b16 %v2390
        %v3415 = vunpack.c.l.b16 %v2391
        %v3416 = vunpack.c.l.b16 %v2392
        %v3417 = vunpack.c.l.b16 %v2393
        %v3418 = vunpack.c.l.b16 %v2394
        %v3419 = vunpack.c.l.b16 %v2395
        %v3420 = vunpack.c.l.b16 %v2396
        %v3421 = vunpack.c.l.b16 %v2397
        %v3422 = vunpack.c.l.b16 %v2398
        %v3423 = vunpack.c.l.b16 %v2399
        %v3424 = vunpack.c.l.b16 %v2400
        %v3425 = vunpack.c.l.b16 %v2401
        %v3426 = vunpack.c.l.b16 %v2402
        %v3427 = vunpack.c.l.b16 %v2403
        %v3428 = vunpack.c.l.b16 %v2404
        %v3429 = vunpack.c.l.b16 %v2405
        %v3430 = vunpack.c.l.b16 %v2406
        %v3431 = vunpack.c.l.b16 %v2407
        %v3432 = vunpack.c.l.b16 %v2408
        %v3433 = vunpack.c.l.b16 %v2409
        %v3434 = vunpack.c.l.b16 %v2410
        %v3435 = vunpack.c.l.b16 %v2411
        %v3436 = vunpack.c.l.b16 %v2412
        %v3437 = vunpack.c.l.b16 %v2413
        %v3438 = vunpack.c.l.b16 %v2414
        %v3439 = vunpack.c.l.b16 %v2415
        %v3440 = vunpack.c.l.b16 %v2416
        %v3441 = vunpack.c.l.b16 %v2417
        %v3442 = vunpack.c.l.b16 %v2418
        %v3443 = vunpack.c.l.b16 %v2419
        %v3444 = vunpack.c.l.b16 %v2420
        %v3445 = vunpack.c.l.b16 %v2421
        %v3446 = vunpack.c.l.b16 %v2422
        %v3447 = vunpack.c.l.b16 %v2423
        %v3448 = vunpack.c.l.b16 %v2424
        %v3449 = vunpack.c.l.b16 %v2425
        %v3450 = vunpack.c.l.b16 %v2426
        %v3451 = vunpack.c.l.b16 %v2427
        %v3452 = vunpack.c.l.b16 %v2428
        %v3453 = vunpack.c.l.b16 %v2429
        %v3454 = vunpack.c.l.b16 %v2430
        %v3455 = vunpack.c.l.b16 %v2431
        %v3456 = vunpack.c.l.b16 %v2432
        %v3457 = vunpack.c.l.b16 %v2433
        %v3458 = vunpack.c.l.b16 %v2434
        %v3459 = vunpack.c.l.b16 %v2435
        %v3460 = vunpack.c.l.b16 %v2436
        %v3461 = vunpack.c.l.b16 %v2437
        %v3462 = vunpack.c.l.b16 %v2438
        %v3463 = vunpack.c.l.b16 %v2439
        %v3464 = vunpack.c.l.b16 %v2440
        %v3465 = vunpack.c.l.b16 %v2441
        %v3466 = vunpack.c.l.b16 %v2442
        %v3467 = vunpack.c.l.b16 %v2443
        %v3468 = vunpack.c.l.b16 %v2444
        %v3469 = vunpack.c.l.b16 %v2445
        %v3470 = vunpack.c.l.b16 %v2446
        %v3471 = vunpack.c.l.b16 %v2447
        %v3472 = vunpack.c.l.b16 %v2448
        %v3473 = vunpack.c.l.b16 %v2449
        %v3474 = vunpack.c.l.b16 %v2450
        %v3475 = vunpack.c.l.b16 %v2451
        %v3476 = vunpack.c.l.b16 %v2452
        %v3477 = vunpack.c.l.b16 %v2453
        %v3478 = vunpack.c.l.b16 %v2454
        %v3479 = vunpack.c.l.b16 %v2455
        %v3480 = vunpack.c.l.b16 %v2456
        %v3481 = vunpack.c.l.b16 %v2457
        %v3482 = vunpack.c.l.b16 %v2458
        %v3483 = vunpack.c.l.b16 %v2459
        %v3484 = vunpack.c.l.b16 %v2460
        %v3485 = vunpack.c.l.b16 %v2461
        %v3486 = vunpack.c.l.b16 %v2462
        %v3487 = vunpack.c.l.b16 %v2463
        %v3488 = vunpack.c.l.b16 %v2464
        %v3489 = vunpack.c.l.b16 %v2465
        %v3490 = vunpack.c.l.b16 %v2466
        %v3491 = vunpack.c.l.b16 %v2467
        %v3492 = vunpack.c.l.b16 %v2468
        %v3493 = vunpack.c.l.b16 %v2469
        %v3494 = vunpack.c.l.b16 %v2470
        %v3495 = vunpack.c.l.b16 %v2471
        %v3496 = vunpack.c.l.b16 %v2472
        %v3497 = vunpack.c.l.b16 %v2473
        %v3498 = vunpack.c.l.b16 %v2474
        %v3499 = vunpack.c.l.b16 %v2475
        %v3500 = vunpack.c.l.b16 %v2476
        %v3501 = vunpack.c.l.b16 %v2477
        %v3502 = vunpack.c.l.b16 %v2478
        %v3503 = vunpack.c.l.b16 %v2479
        %v3504 = vunpack.c.l.b16 %v2480
        %v3505 = vunpack.c.l.b16 %v2481
        %v3506 = vunpack.c.l.b16 %v2482
        %v3507 = vunpack.c.l.b16 %v2483
        %v3508 = vunpack.c.l.b16 %v2484
        %v3509 = vunpack.c.l.b16 %v2485
        %v3510 = vunpack.c.l.b16 %v2486
        %v3511 = vunpack.c.l.b16 %v2487
        %v3512 = vunpack.c.l.b16 %v2488
        %v3513 = vunpack.c.l.b16 %v2489
        %v3514 = vunpack.c.l.b16 %v2490
        %v3515 = vunpack.c.l.b16 %v2491
        %v3516 = vunpack.c.l.b16 %v2492
        %v3517 = vunpack.c.l.b16 %v2493
        %v3518 = vunpack.c.l.b16 %v2494
        %v3519 = vunpack.c.l.b16 %v2495
        %v3520 = vunpack.c.l.b16 %v2496
        %v3521 = vunpack.c.l.b16 %v2497
        %v3522 = vunpack.c.l.b16 %v2498
        %v3523 = vunpack.c.l.b16 %v2499
        %v3524 = vunpack.c.l.b16 %v2500
        %v3525 = vunpack.c.l.b16 %v2501
        %v3526 = vunpack.c.l.b16 %v2502
        %v3527 = vunpack.c.l.b16 %v2503
        %v3528 = vunpack.c.l.b16 %v2504
        %v3529 = vunpack.c.l.b16 %v2505
        %v3530 = vunpack.c.l.b16 %v2506
        %v3531 = vunpack.c.l.b16 %v2507
        %v3532 = vunpack.c.l.b16 %v2508
        %v3533 = vunpack.c.l.b16 %v2509
        %v3534 = vunpack.c.l.b16 %v2510
        %v3535 = vunpack.c.l.b16 %v2511
        %v3536 = vunpack.c.l.b16 %v2512
        %v3537 = vunpack.c.l.b16 %v2513
        %v3538 = vunpack.c.l.b16 %v2514
        %v3539 = vunpack.c.l.b16 %v2515
        %v3540 = vunpack.c.l.b16 %v2516
        %v3541 = vunpack.c.l.b16 %v2517
        %v3542 = vunpack.c.l.b16 %v2518
        %v3543 = vunpack.c.l.b16 %v2519
        %v3544 = vunpack.c.l.b16 %v2520
        %v3545 = vunpack.c.l.b16 %v2521
        %v3546 = vunpack.c.l.b16 %v2522
        %v3547 = vunpack.c.l.b16 %v2523
        %v3548 = vunpack.c.l.b16 %v2524
        %v3549 = vunpack.c.l.b16 %v2525
        %v3550 = vpack.c.b16 %v3407, %v3406
        %v3551 = vpack.c.b16 %v3409, %v3408
        %v3552 = vpack.c.b16 %v3411, %v3410
        %v3553 = vpack.c.b16 %v3413, %v3412
        %v3554 = vpack.c.b16 %v3415, %v3414
        %v3555 = vpack.c.b16 %v3417, %v3416
        %v3556 = vpack.c.b16 %v3419, %v3418
        %v3557 = vpack.c.b16 %v3421, %v3420
        %v3558 = vpack.c.b16 %v3423, %v3422
        %v3559 = vpack.c.b16 %v3425, %v3424
        %v3560 = vpack.c.b16 %v3427, %v3426
        %v3561 = vpack.c.b16 %v3429, %v3428
        %v3562 = vpack.c.b16 %v3431, %v3430
        %v3563 = vpack.c.b16 %v3433, %v3432
        %v3564 = vpack.c.b16 %v3435, %v3434
        %v3565 = vpack.c.b16 %v3437, %v3436
        %v3566 = vpack.c.b16 %v3439, %v3438
        %v3567 = vpack.c.b16 %v3441, %v3440
        %v3568 = vpack.c.b16 %v3443, %v3442
        %v3569 = vpack.c.b16 %v3445, %v3444
        %v3570 = vpack.c.b16 %v3447, %v3446
        %v3571 = vpack.c.b16 %v3449, %v3448
        %v3572 = vpack.c.b16 %v3451, %v3450
        %v3573 = vpack.c.b16 %v3453, %v3452
        %v3574 = vpack.c.b16 %v3455, %v3454
        %v3575 = vpack.c.b16 %v3457, %v3456
        %v3576 = vpack.c.b16 %v3459, %v3458
        %v3577 = vpack.c.b16 %v3461, %v3460
        %v3578 = vpack.c.b16 %v3463, %v3462
        %v3579 = vpack.c.b16 %v3465, %v3464
        %v3580 = vpack.c.b16 %v3467, %v3466
        %v3581 = vpack.c.b16 %v3469, %v3468
        %v3582 = vpack.c.b16 %v3471, %v3470
        %v3583 = vpack.c.b16 %v3473, %v3472
        %v3584 = vpack.c.b16 %v3475, %v3474
        %v3585 = vpack.c.b16 %v3477, %v3476
        %v3586 = vpack.c.b16 %v3479, %v3478
        %v3587 = vpack.c.b16 %v3481, %v3480
        %v3588 = vpack.c.b16 %v3483, %v3482
        %v3589 = vpack.c.b16 %v3485, %v3484
        %v3590 = vpack.c.b16 %v3487, %v3486
        %v3591 = vpack.c.b16 %v3489, %v3488
        %v3592 = vpack.c.b16 %v3491, %v3490
        %v3593 = vpack.c.b16 %v3493, %v3492
        %v3594 = vpack.c.b16 %v3495, %v3494
        %v3595 = vpack.c.b16 %v3497, %v3496
        %v3596 = vpack.c.b16 %v3499, %v3498
        %v3597 = vpack.c.b16 %v3501, %v3500
        %v3598 = vpack.c.b16 %v3503, %v3502
        %v3599 = vpack.c.b16 %v3505, %v3504
        %v3600 = vpack.c.b16 %v3507, %v3506
        %v3601 = vpack.c.b16 %v3509, %v3508
        %v3602 = vpack.c.b16 %v3511, %v3510
        %v3603 = vpack.c.b16 %v3513, %v3512
        %v3604 = vpack.c.b16 %v3515, %v3514
        %v3605 = vpack.c.b16 %v3517, %v3516
        %v3606 = vpack.c.b16 %v3519, %v3518
        %v3607 = vpack.c.b16 %v3521, %v3520
        %v3608 = vpack.c.b16 %v3523, %v3522
        %v3609 = vpack.c.b16 %v3525, %v3524
        %v3610 = vpack.c.b16 %v3527, %v3526
        %v3611 = vpack.c.b16 %v3529, %v3528
        %v3612 = vpack.c.b16 %v3531, %v3530
        %v3613 = vpack.c.b16 %v3533, %v3532
        %v3614 = vpack.c.b16 %v3535, %v3534
        %v3615 = vpack.c.b16 %v3537, %v3536
        %v3616 = vpack.c.b16 %v3539, %v3538
        %v3617 = vpack.c.b16 %v3541, %v3540
        %v3618 = vpack.c.b16 %v3543, %v3542
        %v3619 = vpack.c.b16 %v3545, %v3544
        %v3620 = vpack.c.b16 %v3547, %v3546
        %v3621 = vpack.c.b16 %v3549, %v3548
        %3694 = vmatprep.subr.bf16.mxu0 0
        %3695 = vmatpush1.bf16.msra.mxu0 %v3557
        %3696 = vmatprep.subr.bf16.mxu0 0
        %3697 = vmatpush1.bf16.msra.mxu0 %v3556
        %3698 = vmatprep.subr.bf16.mxu0 0
        %3699 = vmatpush1.bf16.msra.mxu0 %v3555
        %3700 = vmatprep.subr.bf16.mxu0 0
        %3701 = vmatpush1.bf16.msra.mxu0 %v3554
        %3702 = vmatprep.subr.bf16.mxu0 0
        %3703 = vmatpush1.bf16.msra.mxu0 %v3553
        %3704 = vmatprep.subr.bf16.mxu0 0
        %3705 = vmatpush1.bf16.msra.mxu0 %v3552
        %3706 = vmatprep.subr.bf16.mxu0 0
        %3707 = vmatpush1.bf16.msra.mxu0 %v3551
        %3708 = vmatprep.subr.bf16.mxu0 0
        %3709 = vmatpush1.bf16.msra.mxu0 %v3550
        %3710 = vmatprep.subr.bf16.mxu0 0
        %3711 = vmatpush2.bf16.msra.mxu0 %v3565
        %3712 = vmatprep.subr.bf16.mxu0 0
        %3713 = vmatpush2.bf16.msra.mxu0 %v3564
        %3714 = vmatprep.subr.bf16.mxu0 0
        %3715 = vmatpush2.bf16.msra.mxu0 %v3563
        %3716 = vmatprep.subr.bf16.mxu0 0
        %3717 = vmatpush2.bf16.msra.mxu0 %v3562
        %3718 = vmatprep.subr.bf16.mxu0 0
        %3719 = vmatpush2.bf16.msra.mxu0 %v3561
        %3720 = vmatprep.subr.bf16.mxu0 0
        %3721 = vmatpush2.bf16.msra.mxu0 %v3560
        %3722 = vmatprep.subr.bf16.mxu0 0
        %3723 = vmatpush2.bf16.msra.mxu0 %v3559
        %3724 = vmatprep.subr.bf16.mxu0 0
        %3725 = vmatpush2.bf16.msra.mxu0 %v3558
        %3726 = vmatprep.mubr.bf16.mxu0 %v2975
        %3727 = vmatmul.mubr.bf16.gmra.mxu0 %v2974
        %v3728 = vpop.f32.mrf.mxu0
        %v3729 = vadd.f32 0.0, %v3728
        %v3730 = vpop.f32.mrf.mxu0
        %v3731 = vpop.f32.mrf.mxu0
        %v3732 = vadd.f32 0.0, %v3731
        %v3733 = vpop.f32.mrf.mxu0
        %3734 = vmatprep.mubr.bf16.mxu0 %v2984
        %3735 = vmatmul.mubr.bf16.gmra.mxu0 %v2983
        %v3736 = vpop.f32.mrf.mxu0
        %v3737 = vadd.f32 0.0, %v3736
        %v3738 = vpop.f32.mrf.mxu0
        %v3739 = vpop.f32.mrf.mxu0
        %v3740 = vadd.f32 0.0, %v3739
        %v3741 = vpop.f32.mrf.mxu0
        %3742 = vmatprep.mubr.bf16.mxu0 %v2993
        %3743 = vmatmul.mubr.bf16.gmra.mxu0 %v2992
        %v3744 = vpop.f32.mrf.mxu0
        %v3745 = vadd.f32 0.0, %v3744
        %v3746 = vpop.f32.mrf.mxu0
        %v3747 = vpop.f32.mrf.mxu0
        %v3748 = vadd.f32 0.0, %v3747
        %v3749 = vpop.f32.mrf.mxu0
        %3750 = vmatprep.mubr.bf16.mxu0 %v3002
        %3751 = vmatmul.mubr.bf16.gmra.mxu0 %v3001
        %v3752 = vpop.f32.mrf.mxu0
        %v3753 = vadd.f32 0.0, %v3752
        %v3754 = vpop.f32.mrf.mxu0
        %v3755 = vpop.f32.mrf.mxu0
        %v3756 = vadd.f32 0.0, %v3755
        %v3757 = vpop.f32.mrf.mxu0
        %3758 = vmatprep.mubr.bf16.mxu0 %v3011
        %3759 = vmatmul.mubr.bf16.gmra.mxu0 %v3010
        %v3760 = vpop.f32.mrf.mxu0
        %v3761 = vadd.f32 0.0, %v3760
        %v3762 = vpop.f32.mrf.mxu0
        %v3763 = vpop.f32.mrf.mxu0
        %v3764 = vadd.f32 0.0, %v3763
        %v3765 = vpop.f32.mrf.mxu0
        %3766 = vmatprep.mubr.bf16.mxu0 %v3020
        %3767 = vmatmul.mubr.bf16.gmra.mxu0 %v3019
        %v3768 = vpop.f32.mrf.mxu0
        %v3769 = vadd.f32 0.0, %v3768
        %v3770 = vpop.f32.mrf.mxu0
        %v3771 = vpop.f32.mrf.mxu0
        %v3772 = vadd.f32 0.0, %v3771
        %v3773 = vpop.f32.mrf.mxu0
        %3774 = vmatprep.mubr.bf16.mxu0 %v3029
        %3775 = vmatmul.mubr.bf16.gmra.mxu0 %v3028
        %v3776 = vpop.f32.mrf.mxu0
        %v3777 = vadd.f32 0.0, %v3776
        %v3778 = vpop.f32.mrf.mxu0
        %v3779 = vpop.f32.mrf.mxu0
        %v3780 = vadd.f32 0.0, %v3779
        %v3781 = vpop.f32.mrf.mxu0
        %3782 = vmatprep.mubr.bf16.mxu0 %v3038
        %3783 = vmatmul.mubr.bf16.gmra.mxu0 %v3037
        %v3784 = vpop.f32.mrf.mxu0
        %v3785 = vadd.f32 0.0, %v3784
        %v3786 = vpop.f32.mrf.mxu0
        %v3787 = vpop.f32.mrf.mxu0
        %v3788 = vadd.f32 0.0, %v3787
        %v3789 = vpop.f32.mrf.mxu0
        %3790 = vmatprep.mubr.bf16.mxu0 %v3047
        %3791 = vmatmul.mubr.bf16.gmra.mxu0 %v3046
        %v3792 = vpop.f32.mrf.mxu0
        %v3793 = vadd.f32 0.0, %v3792
        %v3794 = vpop.f32.mrf.mxu0
        %v3795 = vpop.f32.mrf.mxu0
        %v3796 = vadd.f32 0.0, %v3795
        %v3797 = vpop.f32.mrf.mxu0
        %3798 = vmatprep.mubr.bf16.mxu0 %v3056
        %3799 = vmatmul.mubr.bf16.gmra.mxu0 %v3055
        %v3800 = vpop.f32.mrf.mxu0
        %v3801 = vadd.f32 0.0, %v3800
        %v3802 = vpop.f32.mrf.mxu0
        %v3803 = vpop.f32.mrf.mxu0
        %v3804 = vadd.f32 0.0, %v3803
        %v3805 = vpop.f32.mrf.mxu0
        %3806 = vmatprep.mubr.bf16.mxu0 %v3065
        %3807 = vmatmul.mubr.bf16.gmra.mxu0 %v3064
        %v3808 = vpop.f32.mrf.mxu0
        %v3809 = vadd.f32 0.0, %v3808
        %v3810 = vpop.f32.mrf.mxu0
        %v3811 = vpop.f32.mrf.mxu0
        %v3812 = vadd.f32 0.0, %v3811
        %v3813 = vpop.f32.mrf.mxu0
        %3814 = vmatprep.mubr.bf16.mxu0 %v3074
        %3815 = vmatmul.mubr.bf16.gmra.mxu0 %v3073
        %v3816 = vpop.f32.mrf.mxu0
        %v3817 = vadd.f32 0.0, %v3816
        %v3818 = vpop.f32.mrf.mxu0
        %v3819 = vpop.f32.mrf.mxu0
        %v3820 = vadd.f32 0.0, %v3819
        %v3821 = vpop.f32.mrf.mxu0
        %3822 = vmatprep.mubr.bf16.mxu0 %v3083
        %3823 = vmatmul.mubr.bf16.gmra.mxu0 %v3082
        %v3824 = vpop.f32.mrf.mxu0
        %v3825 = vadd.f32 0.0, %v3824
        %v3826 = vpop.f32.mrf.mxu0
        %v3827 = vpop.f32.mrf.mxu0
        %v3828 = vadd.f32 0.0, %v3827
        %v3829 = vpop.f32.mrf.mxu0
        %3830 = vmatprep.mubr.bf16.mxu0 %v3092
        %3831 = vmatmul.mubr.bf16.gmra.mxu0 %v3091
        %v3832 = vpop.f32.mrf.mxu0
        %v3833 = vadd.f32 0.0, %v3832
        %v3834 = vpop.f32.mrf.mxu0
        %v3835 = vpop.f32.mrf.mxu0
        %v3836 = vadd.f32 0.0, %v3835
        %v3837 = vpop.f32.mrf.mxu0
        %3838 = vmatprep.mubr.bf16.mxu0 %v3101
        %3839 = vmatmul.mubr.bf16.gmra.mxu0 %v3100
        %v3840 = vpop.f32.mrf.mxu0
        %v3841 = vadd.f32 0.0, %v3840
        %v3842 = vpop.f32.mrf.mxu0
        %v3843 = vpop.f32.mrf.mxu0
        %v3844 = vadd.f32 0.0, %v3843
        %v3845 = vpop.f32.mrf.mxu0
        %3846 = vmatprep.mubr.bf16.mxu0 %v3110
        %3847 = vmatmul.mubr.bf16.gmra.mxu0 %v3109
        %v3848 = vpop.f32.mrf.mxu0
        %v3849 = vadd.f32 0.0, %v3848
        %v3850 = vpop.f32.mrf.mxu0
        %v3851 = vpop.f32.mrf.mxu0
        %v3852 = vadd.f32 0.0, %v3851
        %v3853 = vpop.f32.mrf.mxu0
        %3854 = vdwg.mxu0
        %3855 = vmatprep.subr.bf16.mxu0 0
        %3856 = vmatpush1.bf16.msra.mxu0 %v3573
        %3857 = vmatprep.subr.bf16.mxu0 0
        %3858 = vmatpush1.bf16.msra.mxu0 %v3572
        %3859 = vmatprep.subr.bf16.mxu0 0
        %3860 = vmatpush1.bf16.msra.mxu0 %v3571
        %3861 = vmatprep.subr.bf16.mxu0 0
        %3862 = vmatpush1.bf16.msra.mxu0 %v3570
        %3863 = vmatprep.subr.bf16.mxu0 0
        %3864 = vmatpush1.bf16.msra.mxu0 %v3569
        %3865 = vmatprep.subr.bf16.mxu0 0
        %3866 = vmatpush1.bf16.msra.mxu0 %v3568
        %3867 = vmatprep.subr.bf16.mxu0 0
        %3868 = vmatpush1.bf16.msra.mxu0 %v3567
        %3869 = vmatprep.subr.bf16.mxu0 0
        %3870 = vmatpush1.bf16.msra.mxu0 %v3566
        %3871 = vmatprep.subr.bf16.mxu0 0
        %3872 = vmatpush2.bf16.msra.mxu0 %v3581
        %3873 = vmatprep.subr.bf16.mxu0 0
        %3874 = vmatpush2.bf16.msra.mxu0 %v3580
        %3875 = vmatprep.subr.bf16.mxu0 0
        %3876 = vmatpush2.bf16.msra.mxu0 %v3579
        %3877 = vmatprep.subr.bf16.mxu0 0
        %3878 = vmatpush2.bf16.msra.mxu0 %v3578
        %3879 = vmatprep.subr.bf16.mxu0 0
        %3880 = vmatpush2.bf16.msra.mxu0 %v3577
        %3881 = vmatprep.subr.bf16.mxu0 0
        %3882 = vmatpush2.bf16.msra.mxu0 %v3576
        %3883 = vmatprep.subr.bf16.mxu0 0
        %3884 = vmatpush2.bf16.msra.mxu0 %v3575
        %3885 = vmatprep.subr.bf16.mxu0 0
        %3886 = vmatpush2.bf16.msra.mxu0 %v3574
        %3887 = vmatprep.mubr.bf16.mxu0 %v2977
        %3888 = vmatmul.mubr.bf16.gmra.mxu0 %v2976
        %v3889 = vpop.f32.mrf.mxu0
        %v3890 = vadd.f32 %v3729, %v3889
        %v3891 = vpop.f32.mrf.mxu0
        %v3892 = vpop.f32.mrf.mxu0
        %v3893 = vadd.f32 %v3732, %v3892
        %v3894 = vpop.f32.mrf.mxu0
        %3895 = vmatprep.mubr.bf16.mxu0 %v2986
        %3896 = vmatmul.mubr.bf16.gmra.mxu0 %v2985
        %v3897 = vpop.f32.mrf.mxu0
        %v3898 = vadd.f32 %v3737, %v3897
        %v3899 = vpop.f32.mrf.mxu0
        %v3900 = vpop.f32.mrf.mxu0
        %v3901 = vadd.f32 %v3740, %v3900
        %v3902 = vpop.f32.mrf.mxu0
        %3903 = vmatprep.mubr.bf16.mxu0 %v2995
        %3904 = vmatmul.mubr.bf16.gmra.mxu0 %v2994
        %v3905 = vpop.f32.mrf.mxu0
        %v3906 = vadd.f32 %v3745, %v3905
        %v3907 = vpop.f32.mrf.mxu0
        %v3908 = vpop.f32.mrf.mxu0
        %v3909 = vadd.f32 %v3748, %v3908
        %v3910 = vpop.f32.mrf.mxu0
        %3911 = vmatprep.mubr.bf16.mxu0 %v3004
        %3912 = vmatmul.mubr.bf16.gmra.mxu0 %v3003
        %v3913 = vpop.f32.mrf.mxu0
        %v3914 = vadd.f32 %v3753, %v3913
        %v3915 = vpop.f32.mrf.mxu0
        %v3916 = vpop.f32.mrf.mxu0
        %v3917 = vadd.f32 %v3756, %v3916
        %v3918 = vpop.f32.mrf.mxu0
        %3919 = vmatprep.mubr.bf16.mxu0 %v3013
        %3920 = vmatmul.mubr.bf16.gmra.mxu0 %v3012
        %v3921 = vpop.f32.mrf.mxu0
        %v3922 = vadd.f32 %v3761, %v3921
        %v3923 = vpop.f32.mrf.mxu0
        %v3924 = vpop.f32.mrf.mxu0
        %v3925 = vadd.f32 %v3764, %v3924
        %v3926 = vpop.f32.mrf.mxu0
        %3927 = vmatprep.mubr.bf16.mxu0 %v3022
        %3928 = vmatmul.mubr.bf16.gmra.mxu0 %v3021
        %v3929 = vpop.f32.mrf.mxu0
        %v3930 = vadd.f32 %v3769, %v3929
        %v3931 = vpop.f32.mrf.mxu0
        %v3932 = vpop.f32.mrf.mxu0
        %v3933 = vadd.f32 %v3772, %v3932
        %v3934 = vpop.f32.mrf.mxu0
        %3935 = vmatprep.mubr.bf16.mxu0 %v3031
        %3936 = vmatmul.mubr.bf16.gmra.mxu0 %v3030
        %v3937 = vpop.f32.mrf.mxu0
        %v3938 = vadd.f32 %v3777, %v3937
        %v3939 = vpop.f32.mrf.mxu0
        %v3940 = vpop.f32.mrf.mxu0
        %v3941 = vadd.f32 %v3780, %v3940
        %v3942 = vpop.f32.mrf.mxu0
        %3943 = vmatprep.mubr.bf16.mxu0 %v3040
        %3944 = vmatmul.mubr.bf16.gmra.mxu0 %v3039
        %v3945 = vpop.f32.mrf.mxu0
        %v3946 = vadd.f32 %v3785, %v3945
        %v3947 = vpop.f32.mrf.mxu0
        %v3948 = vpop.f32.mrf.mxu0
        %v3949 = vadd.f32 %v3788, %v3948
        %v3950 = vpop.f32.mrf.mxu0
        %3951 = vmatprep.mubr.bf16.mxu0 %v3049
        %3952 = vmatmul.mubr.bf16.gmra.mxu0 %v3048
        %v3953 = vpop.f32.mrf.mxu0
        %v3954 = vadd.f32 %v3793, %v3953
        %v3955 = vpop.f32.mrf.mxu0
        %v3956 = vpop.f32.mrf.mxu0
        %v3957 = vadd.f32 %v3796, %v3956
        %v3958 = vpop.f32.mrf.mxu0
        %3959 = vmatprep.mubr.bf16.mxu0 %v3058
        %3960 = vmatmul.mubr.bf16.gmra.mxu0 %v3057
        %v3961 = vpop.f32.mrf.mxu0
        %v3962 = vadd.f32 %v3801, %v3961
        %v3963 = vpop.f32.mrf.mxu0
        %v3964 = vpop.f32.mrf.mxu0
        %v3965 = vadd.f32 %v3804, %v3964
        %v3966 = vpop.f32.mrf.mxu0
        %3967 = vmatprep.mubr.bf16.mxu0 %v3067
        %3968 = vmatmul.mubr.bf16.gmra.mxu0 %v3066
        %v3969 = vpop.f32.mrf.mxu0
        %v3970 = vadd.f32 %v3809, %v3969
        %v3971 = vpop.f32.mrf.mxu0
        %v3972 = vpop.f32.mrf.mxu0
        %v3973 = vadd.f32 %v3812, %v3972
        %v3974 = vpop.f32.mrf.mxu0
        %3975 = vmatprep.mubr.bf16.mxu0 %v3076
        %3976 = vmatmul.mubr.bf16.gmra.mxu0 %v3075
        %v3977 = vpop.f32.mrf.mxu0
        %v3978 = vadd.f32 %v3817, %v3977
        %v3979 = vpop.f32.mrf.mxu0
        %v3980 = vpop.f32.mrf.mxu0
        %v3981 = vadd.f32 %v3820, %v3980
        %v3982 = vpop.f32.mrf.mxu0
        %3983 = vmatprep.mubr.bf16.mxu0 %v3085
        %3984 = vmatmul.mubr.bf16.gmra.mxu0 %v3084
        %v3985 = vpop.f32.mrf.mxu0
        %v3986 = vadd.f32 %v3825, %v3985
        %v3987 = vpop.f32.mrf.mxu0
        %v3988 = vpop.f32.mrf.mxu0
        %v3989 = vadd.f32 %v3828, %v3988
        %v3990 = vpop.f32.mrf.mxu0
        %3991 = vmatprep.mubr.bf16.mxu0 %v3094
        %3992 = vmatmul.mubr.bf16.gmra.mxu0 %v3093
        %v3993 = vpop.f32.mrf.mxu0
        %v3994 = vadd.f32 %v3833, %v3993
        %v3995 = vpop.f32.mrf.mxu0
        %v3996 = vpop.f32.mrf.mxu0
        %v3997 = vadd.f32 %v3836, %v3996
        %v3998 = vpop.f32.mrf.mxu0
        %3999 = vmatprep.mubr.bf16.mxu0 %v3103
        %4000 = vmatmul.mubr.bf16.gmra.mxu0 %v3102
        %v4001 = vpop.f32.mrf.mxu0
        %v4002 = vadd.f32 %v3841, %v4001
        %v4003 = vpop.f32.mrf.mxu0
        %v4004 = vpop.f32.mrf.mxu0
        %v4005 = vadd.f32 %v3844, %v4004
        %v4006 = vpop.f32.mrf.mxu0
        %4007 = vmatprep.mubr.bf16.mxu0 %v3112
        %4008 = vmatmul.mubr.bf16.gmra.mxu0 %v3111
        %v4009 = vpop.f32.mrf.mxu0
        %v4010 = vadd.f32 %v3849, %v4009
        %v4011 = vpop.f32.mrf.mxu0
        %v4012 = vpop.f32.mrf.mxu0
        %v4013 = vadd.f32 %v3852, %v4012
        %v4014 = vpop.f32.mrf.mxu0
        %4015 = vdwg.mxu0
        %4016 = vmatprep.subr.bf16.mxu0 0
        %4017 = vmatpush1.bf16.msra.mxu0 %v3589
        %4018 = vmatprep.subr.bf16.mxu0 0
        %4019 = vmatpush1.bf16.msra.mxu0 %v3588
        %4020 = vmatprep.subr.bf16.mxu0 0
        %4021 = vmatpush1.bf16.msra.mxu0 %v3587
        %4022 = vmatprep.subr.bf16.mxu0 0
        %4023 = vmatpush1.bf16.msra.mxu0 %v3586
        %4024 = vmatprep.subr.bf16.mxu0 0
        %4025 = vmatpush1.bf16.msra.mxu0 %v3585
        %4026 = vmatprep.subr.bf16.mxu0 0
        %4027 = vmatpush1.bf16.msra.mxu0 %v3584
        %4028 = vmatprep.subr.bf16.mxu0 0
        %4029 = vmatpush1.bf16.msra.mxu0 %v3583
        %4030 = vmatprep.subr.bf16.mxu0 0
        %4031 = vmatpush1.bf16.msra.mxu0 %v3582
        %4032 = vmatprep.subr.bf16.mxu0 0
        %4033 = vmatpush2.bf16.msra.mxu0 %v3597
        %4034 = vmatprep.subr.bf16.mxu0 0
        %4035 = vmatpush2.bf16.msra.mxu0 %v3596
        %4036 = vmatprep.subr.bf16.mxu0 0
        %4037 = vmatpush2.bf16.msra.mxu0 %v3595
        %4038 = vmatprep.subr.bf16.mxu0 0
        %4039 = vmatpush2.bf16.msra.mxu0 %v3594
        %4040 = vmatprep.subr.bf16.mxu0 0
        %4041 = vmatpush2.bf16.msra.mxu0 %v3593
        %4042 = vmatprep.subr.bf16.mxu0 0
        %4043 = vmatpush2.bf16.msra.mxu0 %v3592
        %4044 = vmatprep.subr.bf16.mxu0 0
        %4045 = vmatpush2.bf16.msra.mxu0 %v3591
        %4046 = vmatprep.subr.bf16.mxu0 0
        %4047 = vmatpush2.bf16.msra.mxu0 %v3590
        %4048 = vmatprep.mubr.bf16.mxu0 %v2979
        %4049 = vmatmul.mubr.bf16.gmra.mxu0 %v2978
        %v4050 = vpop.f32.mrf.mxu0
        %v4051 = vadd.f32 %v3890, %v4050
        %v4052 = vpop.f32.mrf.mxu0
        %v4053 = vpop.f32.mrf.mxu0
        %v4054 = vadd.f32 %v3893, %v4053
        %v4055 = vpop.f32.mrf.mxu0
        %4056 = vmatprep.mubr.bf16.mxu0 %v2988
        %4057 = vmatmul.mubr.bf16.gmra.mxu0 %v2987
        %v4058 = vpop.f32.mrf.mxu0
        %v4059 = vadd.f32 %v3898, %v4058
        %v4060 = vpop.f32.mrf.mxu0
        %v4061 = vpop.f32.mrf.mxu0
        %v4062 = vadd.f32 %v3901, %v4061
        %v4063 = vpop.f32.mrf.mxu0
        %4064 = vmatprep.mubr.bf16.mxu0 %v2997
        %4065 = vmatmul.mubr.bf16.gmra.mxu0 %v2996
        %v4066 = vpop.f32.mrf.mxu0
        %v4067 = vadd.f32 %v3906, %v4066
        %v4068 = vpop.f32.mrf.mxu0
        %v4069 = vpop.f32.mrf.mxu0
        %v4070 = vadd.f32 %v3909, %v4069
        %v4071 = vpop.f32.mrf.mxu0
        %4072 = vmatprep.mubr.bf16.mxu0 %v3006
        %4073 = vmatmul.mubr.bf16.gmra.mxu0 %v3005
        %v4074 = vpop.f32.mrf.mxu0
        %v4075 = vadd.f32 %v3914, %v4074
        %v4076 = vpop.f32.mrf.mxu0
        %v4077 = vpop.f32.mrf.mxu0
        %v4078 = vadd.f32 %v3917, %v4077
        %v4079 = vpop.f32.mrf.mxu0
        %4080 = vmatprep.mubr.bf16.mxu0 %v3015
        %4081 = vmatmul.mubr.bf16.gmra.mxu0 %v3014
        %v4082 = vpop.f32.mrf.mxu0
        %v4083 = vadd.f32 %v3922, %v4082
        %v4084 = vpop.f32.mrf.mxu0
        %v4085 = vpop.f32.mrf.mxu0
        %v4086 = vadd.f32 %v3925, %v4085
        %v4087 = vpop.f32.mrf.mxu0
        %4088 = vmatprep.mubr.bf16.mxu0 %v3024
        %4089 = vmatmul.mubr.bf16.gmra.mxu0 %v3023
        %v4090 = vpop.f32.mrf.mxu0
        %v4091 = vadd.f32 %v3930, %v4090
        %v4092 = vpop.f32.mrf.mxu0
        %v4093 = vpop.f32.mrf.mxu0
        %v4094 = vadd.f32 %v3933, %v4093
        %v4095 = vpop.f32.mrf.mxu0
        %4096 = vmatprep.mubr.bf16.mxu0 %v3033
        %4097 = vmatmul.mubr.bf16.gmra.mxu0 %v3032
        %v4098 = vpop.f32.mrf.mxu0
        %v4099 = vadd.f32 %v3938, %v4098
        %v4100 = vpop.f32.mrf.mxu0
        %v4101 = vpop.f32.mrf.mxu0
        %v4102 = vadd.f32 %v3941, %v4101
        %v4103 = vpop.f32.mrf.mxu0
        %4104 = vmatprep.mubr.bf16.mxu0 %v3042
        %4105 = vmatmul.mubr.bf16.gmra.mxu0 %v3041
        %v4106 = vpop.f32.mrf.mxu0
        %v4107 = vadd.f32 %v3946, %v4106
        %v4108 = vpop.f32.mrf.mxu0
        %v4109 = vpop.f32.mrf.mxu0
        %v4110 = vadd.f32 %v3949, %v4109
        %v4111 = vpop.f32.mrf.mxu0
        %4112 = vmatprep.mubr.bf16.mxu0 %v3051
        %4113 = vmatmul.mubr.bf16.gmra.mxu0 %v3050
        %v4114 = vpop.f32.mrf.mxu0
        %v4115 = vadd.f32 %v3954, %v4114
        %v4116 = vpop.f32.mrf.mxu0
        %v4117 = vpop.f32.mrf.mxu0
        %v4118 = vadd.f32 %v3957, %v4117
        %v4119 = vpop.f32.mrf.mxu0
        %4120 = vmatprep.mubr.bf16.mxu0 %v3060
        %4121 = vmatmul.mubr.bf16.gmra.mxu0 %v3059
        %v4122 = vpop.f32.mrf.mxu0
        %v4123 = vadd.f32 %v3962, %v4122
        %v4124 = vpop.f32.mrf.mxu0
        %v4125 = vpop.f32.mrf.mxu0
        %v4126 = vadd.f32 %v3965, %v4125
        %v4127 = vpop.f32.mrf.mxu0
        %4128 = vmatprep.mubr.bf16.mxu0 %v3069
        %4129 = vmatmul.mubr.bf16.gmra.mxu0 %v3068
        %v4130 = vpop.f32.mrf.mxu0
        %v4131 = vadd.f32 %v3970, %v4130
        %v4132 = vpop.f32.mrf.mxu0
        %v4133 = vpop.f32.mrf.mxu0
        %v4134 = vadd.f32 %v3973, %v4133
        %v4135 = vpop.f32.mrf.mxu0
        %4136 = vmatprep.mubr.bf16.mxu0 %v3078
        %4137 = vmatmul.mubr.bf16.gmra.mxu0 %v3077
        %v4138 = vpop.f32.mrf.mxu0
        %v4139 = vadd.f32 %v3978, %v4138
        %v4140 = vpop.f32.mrf.mxu0
        %v4141 = vpop.f32.mrf.mxu0
        %v4142 = vadd.f32 %v3981, %v4141
        %v4143 = vpop.f32.mrf.mxu0
        %4144 = vmatprep.mubr.bf16.mxu0 %v3087
        %4145 = vmatmul.mubr.bf16.gmra.mxu0 %v3086
        %v4146 = vpop.f32.mrf.mxu0
        %v4147 = vadd.f32 %v3986, %v4146
        %v4148 = vpop.f32.mrf.mxu0
        %v4149 = vpop.f32.mrf.mxu0
        %v4150 = vadd.f32 %v3989, %v4149
        %v4151 = vpop.f32.mrf.mxu0
        %4152 = vmatprep.mubr.bf16.mxu0 %v3096
        %4153 = vmatmul.mubr.bf16.gmra.mxu0 %v3095
        %v4154 = vpop.f32.mrf.mxu0
        %v4155 = vadd.f32 %v3994, %v4154
        %v4156 = vpop.f32.mrf.mxu0
        %v4157 = vpop.f32.mrf.mxu0
        %v4158 = vadd.f32 %v3997, %v4157
        %v4159 = vpop.f32.mrf.mxu0
        %4160 = vmatprep.mubr.bf16.mxu0 %v3105
        %4161 = vmatmul.mubr.bf16.gmra.mxu0 %v3104
        %v4162 = vpop.f32.mrf.mxu0
        %v4163 = vadd.f32 %v4002, %v4162
        %v4164 = vpop.f32.mrf.mxu0
        %v4165 = vpop.f32.mrf.mxu0
        %v4166 = vadd.f32 %v4005, %v4165
        %v4167 = vpop.f32.mrf.mxu0
        %4168 = vmatprep.mubr.bf16.mxu0 %v3114
        %4169 = vmatmul.mubr.bf16.gmra.mxu0 %v3113
        %v4170 = vpop.f32.mrf.mxu0
        %v4171 = vadd.f32 %v4010, %v4170
        %v4172 = vpop.f32.mrf.mxu0
        %v4173 = vpop.f32.mrf.mxu0
        %v4174 = vadd.f32 %v4013, %v4173
        %v4175 = vpop.f32.mrf.mxu0
        %4176 = vdwg.mxu0
        %4177 = vmatprep.subr.bf16.mxu0 0
        %4178 = vmatpush1.bf16.msra.mxu0 %v3605
        %4179 = vmatprep.subr.bf16.mxu0 0
        %4180 = vmatpush1.bf16.msra.mxu0 %v3604
        %4181 = vmatprep.subr.bf16.mxu0 0
        %4182 = vmatpush1.bf16.msra.mxu0 %v3603
        %4183 = vmatprep.subr.bf16.mxu0 0
        %4184 = vmatpush1.bf16.msra.mxu0 %v3602
        %4185 = vmatprep.subr.bf16.mxu0 0
        %4186 = vmatpush1.bf16.msra.mxu0 %v3601
        %4187 = vmatprep.subr.bf16.mxu0 0
        %4188 = vmatpush1.bf16.msra.mxu0 %v3600
        %4189 = vmatprep.subr.bf16.mxu0 0
        %4190 = vmatpush1.bf16.msra.mxu0 %v3599
        %4191 = vmatprep.subr.bf16.mxu0 0
        %4192 = vmatpush1.bf16.msra.mxu0 %v3598
        %4193 = vmatprep.subr.bf16.mxu0 0
        %4194 = vmatpush2.bf16.msra.mxu0 %v3613
        %4195 = vmatprep.subr.bf16.mxu0 0
        %4196 = vmatpush2.bf16.msra.mxu0 %v3612
        %4197 = vmatprep.subr.bf16.mxu0 0
        %4198 = vmatpush2.bf16.msra.mxu0 %v3611
        %4199 = vmatprep.subr.bf16.mxu0 0
        %4200 = vmatpush2.bf16.msra.mxu0 %v3610
        %4201 = vmatprep.subr.bf16.mxu0 0
        %4202 = vmatpush2.bf16.msra.mxu0 %v3609
        %4203 = vmatprep.subr.bf16.mxu0 0
        %4204 = vmatpush2.bf16.msra.mxu0 %v3608
        %4205 = vmatprep.subr.bf16.mxu0 0
        %4206 = vmatpush2.bf16.msra.mxu0 %v3607
        %4207 = vmatprep.subr.bf16.mxu0 0
        %4208 = vmatpush2.bf16.msra.mxu0 %v3606
        %4209 = vmatprep.mubr.bf16.mxu0 %v2981
        %4210 = vmatmul.mubr.bf16.gmra.mxu0 %v2980
        %v4211 = vpop.f32.mrf.mxu0
        %v4212 = vadd.f32 %v4051, %v4211
        %v4213 = vpop.f32.mrf.mxu0
        %v4214 = vpop.f32.mrf.mxu0
        %v4215 = vadd.f32 %v4054, %v4214
        %v4216 = vpop.f32.mrf.mxu0
        %4217 = vmatprep.mubr.bf16.mxu0 %v2990
        %4218 = vmatmul.mubr.bf16.gmra.mxu0 %v2989
        %v4219 = vpop.f32.mrf.mxu0
        %v4220 = vadd.f32 %v4059, %v4219
        %v4221 = vpop.f32.mrf.mxu0
        %v4222 = vpop.f32.mrf.mxu0
        %v4223 = vadd.f32 %v4062, %v4222
        %v4224 = vpop.f32.mrf.mxu0
        %4225 = vmatprep.mubr.bf16.mxu0 %v2999
        %4226 = vmatmul.mubr.bf16.gmra.mxu0 %v2998
        %v4227 = vpop.f32.mrf.mxu0
        %v4228 = vadd.f32 %v4067, %v4227
        %v4229 = vpop.f32.mrf.mxu0
        %v4230 = vpop.f32.mrf.mxu0
        %v4231 = vadd.f32 %v4070, %v4230
        %v4232 = vpop.f32.mrf.mxu0
        %4233 = vmatprep.mubr.bf16.mxu0 %v3008
        %4234 = vmatmul.mubr.bf16.gmra.mxu0 %v3007
        %v4235 = vpop.f32.mrf.mxu0
        %v4236 = vadd.f32 %v4075, %v4235
        %v4237 = vpop.f32.mrf.mxu0
        %v4238 = vpop.f32.mrf.mxu0
        %v4239 = vadd.f32 %v4078, %v4238
        %v4240 = vpop.f32.mrf.mxu0
        %4241 = vmatprep.mubr.bf16.mxu0 %v3017
        %4242 = vmatmul.mubr.bf16.gmra.mxu0 %v3016
        %v4243 = vpop.f32.mrf.mxu0
        %v4244 = vadd.f32 %v4083, %v4243
        %v4245 = vpop.f32.mrf.mxu0
        %v4246 = vpop.f32.mrf.mxu0
        %v4247 = vadd.f32 %v4086, %v4246
        %v4248 = vpop.f32.mrf.mxu0
        %4249 = vmatprep.mubr.bf16.mxu0 %v3026
        %4250 = vmatmul.mubr.bf16.gmra.mxu0 %v3025
        %v4251 = vpop.f32.mrf.mxu0
        %v4252 = vadd.f32 %v4091, %v4251
        %v4253 = vpop.f32.mrf.mxu0
        %v4254 = vpop.f32.mrf.mxu0
        %v4255 = vadd.f32 %v4094, %v4254
        %v4256 = vpop.f32.mrf.mxu0
        %4257 = vmatprep.mubr.bf16.mxu0 %v3035
        %4258 = vmatmul.mubr.bf16.gmra.mxu0 %v3034
        %v4259 = vpop.f32.mrf.mxu0
        %v4260 = vadd.f32 %v4099, %v4259
        %v4261 = vpop.f32.mrf.mxu0
        %v4262 = vpop.f32.mrf.mxu0
        %v4263 = vadd.f32 %v4102, %v4262
        %v4264 = vpop.f32.mrf.mxu0
        %4265 = vmatprep.mubr.bf16.mxu0 %v3044
        %4266 = vmatmul.mubr.bf16.gmra.mxu0 %v3043
        %v4267 = vpop.f32.mrf.mxu0
        %v4268 = vadd.f32 %v4107, %v4267
        %v4269 = vpop.f32.mrf.mxu0
        %v4270 = vpop.f32.mrf.mxu0
        %v4271 = vadd.f32 %v4110, %v4270
        %v4272 = vpop.f32.mrf.mxu0
        %4273 = vmatprep.mubr.bf16.mxu0 %v3053
        %4274 = vmatmul.mubr.bf16.gmra.mxu0 %v3052
        %v4275 = vpop.f32.mrf.mxu0
        %v4276 = vadd.f32 %v4115, %v4275
        %v4277 = vpop.f32.mrf.mxu0
        %v4278 = vpop.f32.mrf.mxu0
        %v4279 = vadd.f32 %v4118, %v4278
        %v4280 = vpop.f32.mrf.mxu0
        %4281 = vmatprep.mubr.bf16.mxu0 %v3062
        %4282 = vmatmul.mubr.bf16.gmra.mxu0 %v3061
        %v4283 = vpop.f32.mrf.mxu0
        %v4284 = vadd.f32 %v4123, %v4283
        %v4285 = vpop.f32.mrf.mxu0
        %v4286 = vpop.f32.mrf.mxu0
        %v4287 = vadd.f32 %v4126, %v4286
        %v4288 = vpop.f32.mrf.mxu0
        %4289 = vmatprep.mubr.bf16.mxu0 %v3071
        %4290 = vmatmul.mubr.bf16.gmra.mxu0 %v3070
        %v4291 = vpop.f32.mrf.mxu0
        %v4292 = vadd.f32 %v4131, %v4291
        %v4293 = vpop.f32.mrf.mxu0
        %v4294 = vpop.f32.mrf.mxu0
        %v4295 = vadd.f32 %v4134, %v4294
        %v4296 = vpop.f32.mrf.mxu0
        %4297 = vmatprep.mubr.bf16.mxu0 %v3080
        %4298 = vmatmul.mubr.bf16.gmra.mxu0 %v3079
        %v4299 = vpop.f32.mrf.mxu0
        %v4300 = vadd.f32 %v4139, %v4299
        %v4301 = vpop.f32.mrf.mxu0
        %v4302 = vpop.f32.mrf.mxu0
        %v4303 = vadd.f32 %v4142, %v4302
        %v4304 = vpop.f32.mrf.mxu0
        %4305 = vmatprep.mubr.bf16.mxu0 %v3089
        %4306 = vmatmul.mubr.bf16.gmra.mxu0 %v3088
        %v4307 = vpop.f32.mrf.mxu0
        %v4308 = vadd.f32 %v4147, %v4307
        %v4309 = vpop.f32.mrf.mxu0
        %v4310 = vpop.f32.mrf.mxu0
        %v4311 = vadd.f32 %v4150, %v4310
        %v4312 = vpop.f32.mrf.mxu0
        %4313 = vmatprep.mubr.bf16.mxu0 %v3098
        %4314 = vmatmul.mubr.bf16.gmra.mxu0 %v3097
        %v4315 = vpop.f32.mrf.mxu0
        %v4316 = vadd.f32 %v4155, %v4315
        %v4317 = vpop.f32.mrf.mxu0
        %v4318 = vpop.f32.mrf.mxu0
        %v4319 = vadd.f32 %v4158, %v4318
        %v4320 = vpop.f32.mrf.mxu0
        %4321 = vmatprep.mubr.bf16.mxu0 %v3107
        %4322 = vmatmul.mubr.bf16.gmra.mxu0 %v3106
        %v4323 = vpop.f32.mrf.mxu0
        %v4324 = vadd.f32 %v4163, %v4323
        %v4325 = vpop.f32.mrf.mxu0
        %v4326 = vpop.f32.mrf.mxu0
        %v4327 = vadd.f32 %v4166, %v4326
        %v4328 = vpop.f32.mrf.mxu0
        %4329 = vmatprep.mubr.bf16.mxu0 %v3116
        %4330 = vmatmul.mubr.bf16.gmra.mxu0 %v3115
        %v4331 = vpop.f32.mrf.mxu0
        %v4332 = vadd.f32 %v4171, %v4331
        %v4333 = vpop.f32.mrf.mxu0
        %v4334 = vpop.f32.mrf.mxu0
        %v4335 = vadd.f32 %v4174, %v4334
        %v4336 = vpop.f32.mrf.mxu0
        %4337 = vdwg.mxu0
        %4338 = vmatprep.subr.bf16.mxu0 0
        %4339 = vmatpush1.bf16.msra.mxu0 %v3621
        %4340 = vmatprep.subr.bf16.mxu0 0
        %4341 = vmatpush1.bf16.msra.mxu0 %v3620
        %4342 = vmatprep.subr.bf16.mxu0 0
        %4343 = vmatpush1.bf16.msra.mxu0 %v3619
        %4344 = vmatprep.subr.bf16.mxu0 0
        %4345 = vmatpush1.bf16.msra.mxu0 %v3618
        %4346 = vmatprep.subr.bf16.mxu0 0
        %4347 = vmatpush1.bf16.msra.mxu0 %v3617
        %4348 = vmatprep.subr.bf16.mxu0 0
        %4349 = vmatpush1.bf16.msra.mxu0 %v3616
        %4350 = vmatprep.subr.bf16.mxu0 0
        %4351 = vmatpush1.bf16.msra.mxu0 %v3615
        %4352 = vmatprep.subr.bf16.mxu0 0
        %4353 = vmatpush1.bf16.msra.mxu0 %v3614
        %4354 = vmatprep.subr.bf16.mxu0 0
        %4355 = vmatpush2.bf16.msra.mxu0 0
        %4356 = vmatprep.subr.bf16.mxu0 0
        %4357 = vmatpush2.bf16.msra.mxu0 0
        %4358 = vmatprep.subr.bf16.mxu0 0
        %4359 = vmatpush2.bf16.msra.mxu0 0
        %4360 = vmatprep.subr.bf16.mxu0 0
        %4361 = vmatpush2.bf16.msra.mxu0 0
        %4362 = vmatprep.subr.bf16.mxu0 0
        %4363 = vmatpush2.bf16.msra.mxu0 0
        %4364 = vmatprep.subr.bf16.mxu0 0
        %4365 = vmatpush2.bf16.msra.mxu0 0
        %4366 = vmatprep.subr.bf16.mxu0 0
        %4367 = vmatpush2.bf16.msra.mxu0 0
        %4368 = vmatprep.subr.bf16.mxu0 0
        %4369 = vmatpush2.bf16.msra.mxu0 0
        %4370 = vmatprep.mubr.bf16.mxu0 0
        %4371 = vmatmul.mubr.bf16.gmra.mxu0 %v2982
        %v4372 = vpop.f32.mrf.mxu0
        %v4373 = vadd.f32 %v4212, %v4372
        %v4374 = vpop.f32.mrf.mxu0
        %v4375 = vpop.f32.mrf.mxu0
        %v4376 = vadd.f32 %v4215, %v4375
        %v4377 = vpop.f32.mrf.mxu0
        %4378 = vmatprep.mubr.bf16.mxu0 0
        %4379 = vmatmul.mubr.bf16.gmra.mxu0 %v2991
        %v4380 = vpop.f32.mrf.mxu0
        %v4381 = vadd.f32 %v4220, %v4380
        %v4382 = vpop.f32.mrf.mxu0
        %v4383 = vpop.f32.mrf.mxu0
        %v4384 = vadd.f32 %v4223, %v4383
        %v4385 = vpop.f32.mrf.mxu0
        %4386 = vmatprep.mubr.bf16.mxu0 0
        %4387 = vmatmul.mubr.bf16.gmra.mxu0 %v3000
        %v4388 = vpop.f32.mrf.mxu0
        %v4389 = vadd.f32 %v4228, %v4388
        %v4390 = vpop.f32.mrf.mxu0
        %v4391 = vpop.f32.mrf.mxu0
        %v4392 = vadd.f32 %v4231, %v4391
        %v4393 = vpop.f32.mrf.mxu0
        %4394 = vmatprep.mubr.bf16.mxu0 0
        %4395 = vmatmul.mubr.bf16.gmra.mxu0 %v3009
        %v4396 = vpop.f32.mrf.mxu0
        %v4397 = vadd.f32 %v4236, %v4396
        %v4398 = vpop.f32.mrf.mxu0
        %v4399 = vpop.f32.mrf.mxu0
        %v4400 = vadd.f32 %v4239, %v4399
        %v4401 = vpop.f32.mrf.mxu0
        %4402 = vmatprep.mubr.bf16.mxu0 0
        %4403 = vmatmul.mubr.bf16.gmra.mxu0 %v3018
        %v4404 = vpop.f32.mrf.mxu0
        %v4405 = vadd.f32 %v4244, %v4404
        %v4406 = vpop.f32.mrf.mxu0
        %v4407 = vpop.f32.mrf.mxu0
        %v4408 = vadd.f32 %v4247, %v4407
        %v4409 = vpop.f32.mrf.mxu0
        %4410 = vmatprep.mubr.bf16.mxu0 0
        %4411 = vmatmul.mubr.bf16.gmra.mxu0 %v3027
        %v4412 = vpop.f32.mrf.mxu0
        %v4413 = vadd.f32 %v4252, %v4412
        %v4414 = vpop.f32.mrf.mxu0
        %v4415 = vpop.f32.mrf.mxu0
        %v4416 = vadd.f32 %v4255, %v4415
        %v4417 = vpop.f32.mrf.mxu0
        %4418 = vmatprep.mubr.bf16.mxu0 0
        %4419 = vmatmul.mubr.bf16.gmra.mxu0 %v3036
        %v4420 = vpop.f32.mrf.mxu0
        %v4421 = vadd.f32 %v4260, %v4420
        %v4422 = vpop.f32.mrf.mxu0
        %v4423 = vpop.f32.mrf.mxu0
        %v4424 = vadd.f32 %v4263, %v4423
        %v4425 = vpop.f32.mrf.mxu0
        %4426 = vmatprep.mubr.bf16.mxu0 0
        %4427 = vmatmul.mubr.bf16.gmra.mxu0 %v3045
        %v4428 = vpop.f32.mrf.mxu0
        %v4429 = vadd.f32 %v4268, %v4428
        %v4430 = vpop.f32.mrf.mxu0
        %v4431 = vpop.f32.mrf.mxu0
        %v4432 = vadd.f32 %v4271, %v4431
        %v4433 = vpop.f32.mrf.mxu0
        %4434 = vmatprep.mubr.bf16.mxu0 0
        %4435 = vmatmul.mubr.bf16.gmra.mxu0 %v3054
        %v4436 = vpop.f32.mrf.mxu0
        %v4437 = vadd.f32 %v4276, %v4436
        %v4438 = vpop.f32.mrf.mxu0
        %v4439 = vpop.f32.mrf.mxu0
        %v4440 = vadd.f32 %v4279, %v4439
        %v4441 = vpop.f32.mrf.mxu0
        %4442 = vmatprep.mubr.bf16.mxu0 0
        %4443 = vmatmul.mubr.bf16.gmra.mxu0 %v3063
        %v4444 = vpop.f32.mrf.mxu0
        %v4445 = vadd.f32 %v4284, %v4444
        %v4446 = vpop.f32.mrf.mxu0
        %v4447 = vpop.f32.mrf.mxu0
        %v4448 = vadd.f32 %v4287, %v4447
        %v4449 = vpop.f32.mrf.mxu0
        %4450 = vmatprep.mubr.bf16.mxu0 0
        %4451 = vmatmul.mubr.bf16.gmra.mxu0 %v3072
        %v4452 = vpop.f32.mrf.mxu0
        %v4453 = vadd.f32 %v4292, %v4452
        %v4454 = vpop.f32.mrf.mxu0
        %v4455 = vpop.f32.mrf.mxu0
        %v4456 = vadd.f32 %v4295, %v4455
        %v4457 = vpop.f32.mrf.mxu0
        %4458 = vmatprep.mubr.bf16.mxu0 0
        %4459 = vmatmul.mubr.bf16.gmra.mxu0 %v3081
        %v4460 = vpop.f32.mrf.mxu0
        %v4461 = vadd.f32 %v4300, %v4460
        %v4462 = vpop.f32.mrf.mxu0
        %v4463 = vpop.f32.mrf.mxu0
        %v4464 = vadd.f32 %v4303, %v4463
        %v4465 = vpop.f32.mrf.mxu0
        %4466 = vmatprep.mubr.bf16.mxu0 0
        %4467 = vmatmul.mubr.bf16.gmra.mxu0 %v3090
        %v4468 = vpop.f32.mrf.mxu0
        %v4469 = vadd.f32 %v4308, %v4468
        %v4470 = vpop.f32.mrf.mxu0
        %v4471 = vpop.f32.mrf.mxu0
        %v4472 = vadd.f32 %v4311, %v4471
        %v4473 = vpop.f32.mrf.mxu0
        %4474 = vmatprep.mubr.bf16.mxu0 0
        %4475 = vmatmul.mubr.bf16.gmra.mxu0 %v3099
        %v4476 = vpop.f32.mrf.mxu0
        %v4477 = vadd.f32 %v4316, %v4476
        %v4478 = vpop.f32.mrf.mxu0
        %v4479 = vpop.f32.mrf.mxu0
        %v4480 = vadd.f32 %v4319, %v4479
        %v4481 = vpop.f32.mrf.mxu0
        %4482 = vmatprep.mubr.bf16.mxu0 0
        %4483 = vmatmul.mubr.bf16.gmra.mxu0 %v3108
        %v4484 = vpop.f32.mrf.mxu0
        %v4485 = vadd.f32 %v4324, %v4484
        %v4486 = vpop.f32.mrf.mxu0
        %v4487 = vpop.f32.mrf.mxu0
        %v4488 = vadd.f32 %v4327, %v4487
        %v4489 = vpop.f32.mrf.mxu0
        %4490 = vmatprep.mubr.bf16.mxu0 0
        %4491 = vmatmul.mubr.bf16.gmra.mxu0 %v3117
        %v4492 = vpop.f32.mrf.mxu0
        %v4493 = vadd.f32 %v4332, %v4492
        %v4494 = vpop.f32.mrf.mxu0
        %v4495 = vpop.f32.mrf.mxu0
        %v4496 = vadd.f32 %v4335, %v4495
        %v4497 = vpop.f32.mrf.mxu0
        %4498 = vdwg.mxu0
        %4499 = vst [vmem:[%s230] sm:$0xff] %v4373
        %4500 = vst [vmem:[%s230 + $0x8] sm:$0xff] %v4376
        %4501 = vst [vmem:[%s230 + $0x10] sm:$0xff] %v4381
        %4502 = vst [vmem:[%s230 + $0x18] sm:$0xff] %v4384
        %4503 = vst [vmem:[%s230 + $0x20] sm:$0xff] %v4389
        %4504 = vst [vmem:[%s230 + $0x28] sm:$0xff] %v4392
        %4505 = vst [vmem:[%s230 + $0x30] sm:$0xff] %v4397
        %4506 = vst [vmem:[%s230 + $0x38] sm:$0xff] %v4400
        %4507 = vst [vmem:[%s230 + $0x40] sm:$0xff] %v4405
        %4508 = vst [vmem:[%s230 + $0x48] sm:$0xff] %v4408
        %4509 = vst [vmem:[%s230 + $0x50] sm:$0xff] %v4413
        %4510 = vst [vmem:[%s230 + $0x58] sm:$0xff] %v4416
        %4511 = vst [vmem:[%s230 + $0x60] sm:$0xff] %v4421
        %4512 = vst [vmem:[%s230 + $0x68] sm:$0xff] %v4424
        %4513 = vst [vmem:[%s230 + $0x70] sm:$0xff] %v4429
        %4514 = vst [vmem:[%s230 + $0x78] sm:$0xff] %v4432
        %4515 = vst [vmem:[%s230 + $0x80] sm:$0xff] %v4437
        %4516 = vst [vmem:[%s230 + $0x88] sm:$0xff] %v4440
        %4517 = vst [vmem:[%s230 + $0x90] sm:$0xff] %v4445
        %4518 = vst [vmem:[%s230 + $0x98] sm:$0xff] %v4448
        %4519 = vst [vmem:[%s230 + $0xa0] sm:$0xff] %v4453
        %4520 = vst [vmem:[%s230 + $0xa8] sm:$0xff] %v4456
        %4521 = vst [vmem:[%s230 + $0xb0] sm:$0xff] %v4461
        %4522 = vst [vmem:[%s230 + $0xb8] sm:$0xff] %v4464
        %4523 = vst [vmem:[%s230 + $0xc0] sm:$0xff] %v4469
        %4524 = vst [vmem:[%s230 + $0xc8] sm:$0xff] %v4472
        %4525 = vst [vmem:[%s230 + $0xd0] sm:$0xff] %v4477
        %4526 = vst [vmem:[%s230 + $0xd8] sm:$0xff] %v4480
        %4527 = vst [vmem:[%s230 + $0xe0] sm:$0xff] %v4485
        %4528 = vst [vmem:[%s230 + $0xe8] sm:$0xff] %v4488
        %4529 = vst [vmem:[%s230 + $0xf0] sm:$0xff] %v4493
        %4530 = vst [vmem:[%s230 + $0xf8] sm:$0xff] %v4496
        %s4531 = sand.u32 %s119, 1
        %s4532 = scalar_lea.sflag [#allocation6], %s4531
        %s4533 = sand.u32 %s119, 1
        %s4534 = smul.addr %s4533, 256
        %s4535 = scalar_lea.vmem [#allocation9], %s4534
        // Predicated region
        $region45: #{tpu_custom_call.1} parent=35 // pred_check
          %p4536 = pneg %p129
        $region46: #{tpu_custom_call.1} parent=35 // pred_check_branch
          %4538 = sbr.rel (%p4536) target = $region48
        $region47: #{tpu_custom_call.1} parent=35 // pred_region
          %s4540 = ssub.s32 4096, 4096
          %4541 = vsyncadd %s4532, %s4540
          %s4542 = smul.addr %s22, 32
          %s4543 = smul.addr %s4542, 128
          %s4544 = scalar_lea.hbm %s4, %s4543
          %s4545 = sshll.u32 %s4535, 4
          %s4546 = int_to_ptr.vmem [resolvable:$true] %s4545
          %4551 = dma.vmem_to_hbm [thread:$0]  %s4546, 4096, %s4544, %s4532, 128, 128, 8
        $region48: #{tpu_custom_call.1} parent=35 // pred_fallthru
          _
      $region36: #{tpu_custom_call.1} parent=5 // pred_fallthru
        _
      %p4552 = scmp.le.s32.totalorder 2, %s17
      // Predicated region
      $region49: #{tpu_custom_call.1} parent=5 // pred_check
        %p4553 = pneg %p4552
      $region50: #{tpu_custom_call.1} parent=5 // pred_check_branch
        %4555 = sbr.rel (%p4553) target = $region52
      $region51: #{tpu_custom_call.1} parent=5 // pred_region
        %s4556 = ssub.s32 %s17, 2
        // Predicated region
        $region53: #{tpu_custom_call.1} parent=51 // pred_check
          %p4557 = pneg %p135
        $region54: #{tpu_custom_call.1} parent=51 // pred_check_branch
          %4559 = sbr.rel (%p4557) target = $region56
        $region55: #{tpu_custom_call.1} parent=51 // pred_region
          %s4560 = sand.u32 %s120, 1
          %s4561 = scalar_lea.sflag [#allocation6], %s4560
          %s4562 = sand.u32 %s120, 1
          %s4563 = smul.addr %s4562, 256
          %s4564 = scalar_lea.vmem [#allocation9], %s4563
          %4565 = dma.done %s4561, 4096
        $region56: #{tpu_custom_call.1} parent=51 // pred_fallthru
          _
      $region52: #{tpu_custom_call.1} parent=5 // pred_fallthru
        _
    $region6: #{tpu_custom_call.1} parent=1 // loop_footer
      %s21 = sadd.s32 1, %s17
    $region7: #{tpu_custom_call.1} parent=1 // loop_footer_branch
      %16 = sbr.rel target = $region3
    $region8: #{tpu_custom_call.1} parent=1 // loop_exit
      _
    %4566 = vsyncpa [#allocation5], 1
    %s4567 = scalar_lea.sflag [#allocation5], 1
    %4568 = vsyncpa %s4567, 1
    %4569 = vsyncpa [#allocation8], 1
    %4570 = vsyncpa [#allocation6], 1
    %s4571 = scalar_lea.sflag [#allocation6], 1
    %4572 = vsyncpa %s4571, 1

</llo_original>
